<compile_context>
chip_gen: v7x
topology: tpu7x:2x2x1
jax: 0.10.0
libtpu: 0.0.40
codegen_flags: <defaults>
</compile_context>

<pallas_src>
import functools

import jax
import jax.numpy as jnp
from jax.experimental import pallas as pl
from jax.experimental.pallas import tpu as pltpu

BF16 = jnp.bfloat16


# ---------------------------------------------------------------------------
# in-kernel math helpers (no implicit casts — callers hoist dtype conversions)
# ---------------------------------------------------------------------------
def _dot(a, b):
    """a @ b with fp32 accumulation (operand dtypes must already match)."""
    return jax.lax.dot_general(a, b, (((1,), (0,)), ((), ())),
                               preferred_element_type=jnp.float32)


def _dot_t(a, b):
    """a.T @ b (contract dim 0 of both; no materialized transpose)."""
    return jax.lax.dot_general(a, b, (((0,), (0,)), ((), ())),
                               preferred_element_type=jnp.float32)


def _silu(t):
    return t * jax.nn.sigmoid(t)


# slots in the stacked per-layer (L, N_W, C, C) square-weight tensor
(W_RES1_1, W_RES1_2, W_DENSE,
 W_RES2A_1, W_RES2A_2, W_RES2B_1, W_RES2B_2) = range(7)
N_W = 7

# slots in the stacked per-layer (L, N_B, C) bias tensor
(B_E, B_S, B_R, B_RES1_1, B_RES1_2, B_DENSE,
 B_RES2A_1, B_RES2A_2, B_RES2B_1, B_RES2B_2) = range(10)
N_B = 10


# ---------------------------------------------------------------------------
# fused kernel: edgenn + conv stack + LayerNorm + residual tail + readout
# ---------------------------------------------------------------------------
def _fused_forward_kernel(
        x_ref, ea_in_ref, sbf_ref, rbf_ref, src_ref, dst_ref,
        g_ref, inv_norm_ref, pool_ref, hproj_ref,
        ew1_ref, eb1_ref, ew2_ref, eb2_ref,
        wqkvo_ref, bqkvo_ref, W_ref, B_ref, we_ref, ws_ref, wr_ref,
        rw1_ref, rb1_ref, rw2_ref, rb2_ref,
        out_ref, act_scr, ea_scr,
        *, eps_ln, eps_sm):
    l = pl.program_id(0)
    last = pl.num_programs(0) - 1

    # ---- layer 0 only: edgenn (Linear -> SiLU -> Linear) + activation init --
    @pl.when(l == 0)
    def _():
        ea = ea_in_ref[...]
        h1 = _silu(_dot(ea.astype(BF16), ew1_ref[...]) + eb1_ref[...])
        h2 = _dot(h1.astype(BF16), ew2_ref[...]) + eb2_ref[...]
        ea_scr[...] = h2.astype(BF16)
        act_scr[...] = x_ref[...]

    x = act_scr[...]                          # (N, C) fp32 carried activation
    C = x.shape[1]

    # hoisted casts / loads (each reused operand converted once per layer)
    x_bf = x.astype(BF16)
    src_bf = src_ref[...]                     # (E, N) bf16 one-hot (src gather)
    dst_f = dst_ref[...]                      # (E, N) fp32 one-hot (dst gather)
    dst_bf = dst_f.astype(BF16)
    ea_bf = ea_scr[...]                       # (E, emb) bf16 edge features
    B_all = B_ref[...]                        # (N_B, C) fp32 per-layer biases

    def b(j):
        return B_all[j:j + 1, :]

    # ---- SBFTransformerConv -------------------------------------------------
    # TODO(synk): SBFTransformerConv source unavailable; PyG TransformerConv
    # semantics with SBF-modulated messages and RBF-modulated output assumed.
    qkvo = _dot(x_bf, wqkvo_ref[...]) + bqkvo_ref[...]     # (N, 4C) fused QKV+root
    q = qkvo[:, 0 * C:1 * C]
    k = qkvo[:, 1 * C:2 * C]
    v = qkvo[:, 2 * C:3 * C]
    root = qkvo[:, 3 * C:4 * C]

    e_f = _dot(ea_bf, we_ref[...]) + b(B_E)                # (E, C) edge embed
    sbf_f = _dot(sbf_ref[...], ws_ref[...]) + b(B_S)       # (E, C) SBF filter
    rbf_f = _dot(rbf_ref[...], wr_ref[...]) + b(B_R)       # (N, C) RBF filter

    q_i = _dot(dst_bf, q.astype(BF16))                     # gather at destination
    k_j = _dot(src_bf, k.astype(BF16)) + e_f               # gather at source+edge
    v_j = (_dot(src_bf, v.astype(BF16)) + e_f) * sbf_f     # SBF-modulated values

    # per-head logits: fp32 head-sum through the scaled block-diag projector
    # (lane-dense, no (E, heads) intermediate; scale folded into hproj on host)
    logit = _dot(q_i * k_j, hproj_ref[...])                # (E, C) fp32

    # segment softmax over destination nodes with a true PER-SEGMENT max.
    big_neg = jnp.float32(-1e30)
    masked = jnp.where(dst_f[:, :, None] > 0.5, logit[:, None, :], big_neg)
    seg_max = jnp.max(masked, axis=0)                      # (N, C)
    m_e = _dot(dst_bf, seg_max.astype(BF16))               # gather shift to edges
    p = jnp.exp(logit - m_e)                               # (E, C) fp32, <= ~1
    denom = _dot_t(dst_f, p)                               # (N, C) fp32 scatter-add
    inv_den = pl.reciprocal(denom + eps_sm, approx=True)   # EUP slot
    num = _dot_t(dst_bf, (p * v_j).astype(BF16))           # (N, C) scatter-add
    h = num * inv_den * rbf_f + root                       # conv out (+ root/skip)

    # ---- graph LayerNorm (mode='graph', affine=False, eps=1e-8 per ctor) ----
    # TODO(synk): PyG graph-wise LayerNorm semantics assumed.  Channel sums are
    # done on the VPU/XLU in fp32; only tiny (N,1)/(B,1) segment matmuls remain.
    g = g_ref[...]                                         # (N, Bg) fp32
    inv_norm = inv_norm_ref[...]                           # (Bg, 1) fp32
    rs = jnp.sum(h, axis=1, keepdims=True)                 # (N, 1)
    mean_g = _dot_t(g, rs) * inv_norm                      # (Bg, 1)
    hc = h - _dot(g, mean_g)                               # center
    rs2 = jnp.sum(hc * hc, axis=1, keepdims=True)          # (N, 1)
    var_g = _dot_t(g, rs2) * inv_norm                      # (Bg, 1)
    h = hc * _dot(g, jax.lax.rsqrt(var_g + eps_ln))        # normalize

    # ---- residual / dense tail ----------------------------------------------
    def residual(t, wi1, bi1, wi2, bi2):
        # TODO(synk): ResidualLayer source unavailable; DimeNet convention used.
        u = _silu(_dot(t.astype(BF16), W_ref[wi1]) + b(bi1))
        u = _silu(_dot(u.astype(BF16), W_ref[wi2]) + b(bi2))
        return t + u

    h = residual(h, W_RES1_1, B_RES1_1, W_RES1_2, B_RES1_2)            # bf_skip
    h = _silu(_dot(h.astype(BF16), W_ref[W_DENSE]) + b(B_DENSE)) + x   # dense+skip
    h = residual(h, W_RES2A_1, B_RES2A_1, W_RES2A_2, B_RES2A_2)        # af_skip[0]
    h = residual(h, W_RES2B_1, B_RES2B_1, W_RES2B_2, B_RES2B_2)        # af_skip[1]

    act_scr[...] = h

    # ---- last layer only: PairWise readout (fused) ---------------------------
    @pl.when(l == last)
    def _():
        # TODO(synk): PairWise source unavailable; pools the cleaved-bond atom
        # features per graph and applies a 2-layer MLP -> scalar.
        pooled = _dot_t(pool_ref[...], h.astype(BF16))     # (Bg, C)
        r = _silu(_dot(pooled.astype(BF16), rw1_ref[...]) + rb1_ref[...])
        out_ref[...] = _dot(r.astype(BF16), rw2_ref[...]) + rb2_ref[...]


def fused_forward(x, edge_attr, sbf, rbf, src_oh, dst_oh, g, inv_norm, pool_w,
                  hproj, params, conv_layers):
    N, C = x.shape
    E, emb = edge_attr.shape
    S = sbf.shape[1]
    R = rbf.shape[1]
    Bg = g.shape[1]
    L = conv_layers

    def const(shape):
        rank = len(shape)

        def imap(l):
            return (0,) * rank

        return pl.BlockSpec(shape, imap)

    def per_layer(shape):
        rank = len(shape)

        def imap(l):
            return (l,) + (0,) * rank

        return pl.BlockSpec((pl.Squeezed(),) + shape, imap)

    ep = params["edgenn"]
    rp = params["readout"]

    in_specs = [
        const((N, C)),            # x
        const((E, emb)),          # edge_attr (raw, consumed at l==0)
        const((E, S)),            # sbf
        const((N, R)),            # rbf
        const((E, N)),            # src one-hot (bf16)
        const((E, N)),            # dst one-hot (fp32)
        const((N, Bg)),           # node -> graph one-hot (fp32)
        const((Bg, 1)),           # 1 / (count * C) per graph
        const((N, Bg)),           # pooling weights (cleave mask * graph one-hot)
        const((C, C)),            # scaled block-diagonal head projector
        const((emb, emb)),        # edgenn w1
        const((1, emb)),          # edgenn b1
        const((emb, emb)),        # edgenn w2
        const((1, emb)),          # edgenn b2
        per_layer((C, 4 * C)),    # fused Q|K|V|root weights
        per_layer((1, 4 * C)),    # fused Q|K|V|root biases
        per_layer((N_W, C, C)),   # stacked square weights
        per_layer((N_B, C)),      # stacked biases
        per_layer((emb, C)),      # edge-embedding weight
        per_layer((S, C)),        # SBF weight
        per_layer((R, C)),        # RBF weight
        const((C, C)),            # readout w1
        const((1, C)),            # readout b1
        const((C, 1)),            # readout w2
        const((1, 1)),            # readout b2
    ]
    out_specs = pl.BlockSpec((Bg, 1), lambda l: (0, 0))

    flops_layer = 2 * (4 * N * C * C + N_W * N * C * C + E * emb * C
                       + E * S * C + N * R * C + E * C * C + 5 * E * N * C)
    cost = pl.CostEstimate(
        flops=int(L * flops_layer + 4 * E * emb * emb + 2 * Bg * C * C),
        transcendentals=int(L * (2 * E * C + 10 * N * C) + E * emb + Bg * C),
        bytes_accessed=int(
            4 * N * C + 4 * E * emb + 2 * E * S + 2 * N * R + 6 * E * N
            + 12 * N * Bg + 4 * C * C + 2 * C * C + 4 * emb * emb
            + L * (2 * C * 4 * C + 2 * N_W * C * C + 4 * N_B * C
                   + 2 * (emb + S + R) * C) + 4 * Bg))

    return pl.pallas_call(
        functools.partial(_fused_forward_kernel, eps_ln=1e-8, eps_sm=1e-16),
        out_shape=jax.ShapeDtypeStruct((Bg, 1), jnp.float32),
        grid=(L,),
        in_specs=in_specs,
        out_specs=out_specs,
        scratch_shapes=[pltpu.VMEM((N, C), jnp.float32),     # activation carry
                        pltpu.VMEM((E, emb), jnp.bfloat16)], # edgenn output
        compiler_params=pltpu.CompilerParams(
            dimension_semantics=("arbitrary",),
            vmem_limit_bytes=32 * 1024 * 1024),
        cost_estimate=cost,
    )(x, edge_attr, sbf, rbf, src_oh, dst_oh, g, inv_norm, pool_w, hproj,
      ep["w1"], ep["b1"], ep["w2"], ep["b2"],
      params["Wqkvo"], params["Bqkvo"], params["W"], params["B"],
      params["we"], params["ws"], params["wr"],
      rp["w1"], rp["b1"], rp["w2"], rp["b2"])


# ---------------------------------------------------------------------------
# parameter init (deterministic)
# ---------------------------------------------------------------------------
def init_params(key, conv_layers, emb, C, S, R):
    kit = iter(jax.random.split(key, 16))

    def glorot(shape, dtype=BF16):
        # TODO(synk): Glorot_Ortho_ approximated with glorot-normal init.
        fan_in, fan_out = shape[-2], shape[-1]
        std = (2.0 / (fan_in + fan_out)) ** 0.5
        w = std * jax.random.normal(next(kit), shape, jnp.float32)
        return w.astype(dtype)

    L = conv_layers
    # fused Q|K|V|root projection: per-matrix glorot, concatenated on out dim
    wqkvo = glorot((L, 4, C, C), jnp.float32)
    wqkvo = jnp.transpose(wqkvo, (0, 2, 1, 3)).reshape(L, C, 4 * C).astype(BF16)
    return {
        "edgenn": {
            "w1": glorot((emb, emb)), "b1": jnp.zeros((1, emb), jnp.float32),
            "w2": glorot((emb, emb)), "b2": jnp.zeros((1, emb), jnp.float32),
        },
        "Wqkvo": wqkvo,
        "Bqkvo": jnp.zeros((L, 1, 4 * C), jnp.float32),
        "W": glorot((L, N_W, C, C)),
        "B": jnp.zeros((L, N_B, C), jnp.float32),
        "we": glorot((L, emb, C)),
        "ws": glorot((L, S, C)),
        "wr": glorot((L, R, C)),
        "readout": {
            "w1": glorot((C, C)), "b1": jnp.zeros((1, C), jnp.float32),
            "w2": glorot((C, 1)), "b2": jnp.zeros((1, 1), jnp.float32),
        },
    }


# ---------------------------------------------------------------------------
# full forward
# ---------------------------------------------------------------------------
def sbf_transformer_forward(params, data, num_graphs, conv_layers, heads):
    x = data["x"]
    N, C = x.shape
    dh = C // heads

    # Graph structure as dense 0/1 matrices (exact): gathers / scatter-adds /
    # segment reductions become MXU matmuls inside the fused kernel.
    # TODO(synk): replace with scalar-prefetched index gathers for large graphs.
    src_oh = jax.nn.one_hot(data["edge_index"][0], N, dtype=BF16)          # (E,N)
    dst_oh = jax.nn.one_hot(data["edge_index"][1], N, dtype=jnp.float32)   # (E,N)
    g = jax.nn.one_hot(data["batch"], num_graphs, dtype=jnp.float32)       # (N,B)
    counts = jnp.sum(g, axis=0)[:, None]                                   # (B,1)
    inv_norm = 1.0 / (jnp.maximum(counts, 1.0) * jnp.float32(C))
    pool_w = (g * data["is_cleave"].astype(jnp.float32)[:, None]).astype(BF16)

    # block-diagonal per-head projector with the 1/sqrt(dh) scale folded in
    hsel = jax.nn.one_hot(jnp.arange(C) // dh, heads, dtype=jnp.float32)
    hproj = (hsel @ hsel.T) * jnp.float32(1.0 / float(dh) ** 0.5)          # (C,C)

    out = fused_forward(
        x, data["edge_attr"],
        data["edge_sbf"].astype(BF16), data["node_rbf"].astype(BF16),
        src_oh, dst_oh, g, inv_norm, pool_w, hproj, params, conv_layers)
    return out.reshape(-1)


# ---------------------------------------------------------------------------
# main
# ---------------------------------------------------------------------------
if __name__ == "__main__":
    # small shapes consistent with the module defaults
    conv_layers = 2
    heads = 8
    in_channels = 128          # default in_channels
    emb_size = 128
    rbf_dim = 16               # default rbf_dim
    sbf_dim = 8                # -> sbf feature dim = sbf_dim * rbf_dim = 128
    sbf_feat = sbf_dim * rbf_dim

    N, E, B = 16, 32, 2        # nodes, edges, graphs

    key = jax.random.PRNGKey(0)
    k_par, kx, kea, ksbf, krbf, ksrc, kdst = jax.random.split(key, 7)

    params = init_params(k_par, conv_layers, emb_size, in_channels,
                         sbf_feat, rbf_dim)

    # graph 0: nodes 0..7, graph 1: nodes 8..15; edges stay within their graph
    src0 = jax.random.randint(ksrc, (E // 2,), 0, N // 2)
    dst0 = jax.random.randint(kdst, (E // 2,), 0, N // 2)
    src = jnp.concatenate([src0, src0 + N // 2]).astype(jnp.int32)
    dst = jnp.concatenate([dst0, dst0 + N // 2]).astype(jnp.int32)

    data = {
        "x": jax.random.normal(kx, (N, in_channels), jnp.float32),
        "edge_attr": jax.random.normal(kea, (E, emb_size), jnp.float32),
        "edge_sbf": jax.random.normal(ksbf, (E, sbf_feat), jnp.float32),
        "node_rbf": jax.random.normal(krbf, (N, rbf_dim), jnp.float32),
        "edge_index": jnp.stack([src, dst]),
        "batch": jnp.concatenate([jnp.zeros(N // 2, jnp.int32),
                                  jnp.ones(N // 2, jnp.int32)]),
        "is_cleave": jnp.zeros((N,), jnp.int32).at[
            jnp.array([0, 3, 8, 11])].set(1),
    }

    out = sbf_transformer_forward(params, data, num_graphs=B,
                                  conv_layers=conv_layers, heads=heads)
    out = jax.block_until_ready(out)

    assert out.shape == (B,), out.shape
    assert bool(jnp.all(jnp.isfinite(out)))
    print("KERNEL_OK")
</pallas_src>

<mosaic_0001>
module attributes {stable_mosaic.version = 11 : i64} {
  func.func @_fused_forward_kernel(%arg0: i32, %arg1: memref<16x128xf32, #tpu.memory_space<vmem>>, %arg2: memref<32x128xf32, #tpu.memory_space<vmem>>, %arg3: memref<32x128xbf16, #tpu.memory_space<vmem>>, %arg4: memref<16x16xbf16, #tpu.memory_space<vmem>>, %arg5: memref<32x16xbf16, #tpu.memory_space<vmem>>, %arg6: memref<32x16xf32, #tpu.memory_space<vmem>>, %arg7: memref<16x2xf32, #tpu.memory_space<vmem>>, %arg8: memref<2x1xf32, #tpu.memory_space<vmem>>, %arg9: memref<16x2xbf16, #tpu.memory_space<vmem>>, %arg10: memref<128x128xf32, #tpu.memory_space<vmem>>, %arg11: memref<128x128xbf16, #tpu.memory_space<vmem>>, %arg12: memref<1x128xf32, #tpu.memory_space<vmem>>, %arg13: memref<128x128xbf16, #tpu.memory_space<vmem>>, %arg14: memref<1x128xf32, #tpu.memory_space<vmem>>, %arg15: memref<1x128x512xbf16, #tpu.memory_space<vmem>>, %arg16: memref<1x1x512xf32, #tpu.memory_space<vmem>>, %arg17: memref<1x7x128x128xbf16, #tpu.memory_space<vmem>>, %arg18: memref<1x10x128xf32, #tpu.memory_space<vmem>>, %arg19: memref<1x128x128xbf16, #tpu.memory_space<vmem>>, %arg20: memref<1x128x128xbf16, #tpu.memory_space<vmem>>, %arg21: memref<1x16x128xbf16, #tpu.memory_space<vmem>>, %arg22: memref<128x128xbf16, #tpu.memory_space<vmem>>, %arg23: memref<1x128xf32, #tpu.memory_space<vmem>>, %arg24: memref<128x1xbf16, #tpu.memory_space<vmem>>, %arg25: memref<1x1xf32, #tpu.memory_space<vmem>>, %arg26: memref<2x1xf32, #tpu.memory_space<vmem>>, %arg27: memref<16x128xf32, #tpu.memory_space<vmem>>, %arg28: memref<32x128xbf16, #tpu.memory_space<vmem>>) attributes {dimension_semantics = [#tpu.dimension_semantics<arbitrary>], iteration_bounds = array<i64: 2>, scalar_prefetch = 0 : i64, scratch_operands = 2 : i64, tpu.core_type = #tpu.core_type<tc>, window_params = [{pipeline_mode = #tpu.pipeline_mode<synchronous>, transform_indices = @transform_0, window_bounds = array<i64: 16, 128>}, {pipeline_mode = #tpu.pipeline_mode<synchronous>, transform_indices = @transform_1, window_bounds = array<i64: 32, 128>}, {pipeline_mode = #tpu.pipeline_mode<synchronous>, transform_indices = @transform_2, window_bounds = array<i64: 32, 128>}, {pipeline_mode = #tpu.pipeline_mode<synchronous>, transform_indices = @transform_3, window_bounds = array<i64: 16, 16>}, {pipeline_mode = #tpu.pipeline_mode<synchronous>, transform_indices = @transform_4, window_bounds = array<i64: 32, 16>}, {pipeline_mode = #tpu.pipeline_mode<synchronous>, transform_indices = @transform_5, window_bounds = array<i64: 32, 16>}, {pipeline_mode = #tpu.pipeline_mode<synchronous>, transform_indices = @transform_6, window_bounds = array<i64: 16, 2>}, {pipeline_mode = #tpu.pipeline_mode<synchronous>, transform_indices = @transform_7, window_bounds = array<i64: 2, 1>}, {pipeline_mode = #tpu.pipeline_mode<synchronous>, transform_indices = @transform_8, window_bounds = array<i64: 16, 2>}, {pipeline_mode = #tpu.pipeline_mode<synchronous>, transform_indices = @transform_9, window_bounds = array<i64: 128, 128>}, {pipeline_mode = #tpu.pipeline_mode<synchronous>, transform_indices = @transform_10, window_bounds = array<i64: 128, 128>}, {pipeline_mode = #tpu.pipeline_mode<synchronous>, transform_indices = @transform_11, window_bounds = array<i64: 1, 128>}, {pipeline_mode = #tpu.pipeline_mode<synchronous>, transform_indices = @transform_12, window_bounds = array<i64: 128, 128>}, {pipeline_mode = #tpu.pipeline_mode<synchronous>, transform_indices = @transform_13, window_bounds = array<i64: 1, 128>}, {transform_indices = @transform_14, window_bounds = array<i64: 1, 128, 512>}, {transform_indices = @transform_15, window_bounds = array<i64: 1, 1, 512>}, {transform_indices = @transform_16, window_bounds = array<i64: 1, 7, 128, 128>}, {transform_indices = @transform_17, window_bounds = array<i64: 1, 10, 128>}, {transform_indices = @transform_18, window_bounds = array<i64: 1, 128, 128>}, {transform_indices = @transform_19, window_bounds = array<i64: 1, 128, 128>}, {transform_indices = @transform_20, window_bounds = array<i64: 1, 16, 128>}, {pipeline_mode = #tpu.pipeline_mode<synchronous>, transform_indices = @transform_21, window_bounds = array<i64: 128, 128>}, {pipeline_mode = #tpu.pipeline_mode<synchronous>, transform_indices = @transform_22, window_bounds = array<i64: 1, 128>}, {pipeline_mode = #tpu.pipeline_mode<synchronous>, transform_indices = @transform_23, window_bounds = array<i64: 128, 1>}, {pipeline_mode = #tpu.pipeline_mode<synchronous>, transform_indices = @transform_24, window_bounds = array<i64: 1, 1>}, {pipeline_mode = #tpu.pipeline_mode<synchronous>, transform_indices = @transform_25, window_bounds = array<i64: 2, 1>}]} {
    %c0_i32 = arith.constant 0 : i32
    %0 = arith.cmpi eq, %arg0, %c0_i32 : i32
    %1 = arith.extui %0 : i1 to i32
    %c0_i32_0 = arith.constant 0 : i32
    %2 = arith.cmpi ne, %1, %c0_i32_0 : i32
    scf.if %2 {
      %c0_96 = arith.constant 0 : index
      %c0_97 = arith.constant 0 : index
      %198 = vector.load %arg2[%c0_96, %c0_97] : memref<32x128xf32, #tpu.memory_space<vmem>>, vector<32x128xf32>
      %199 = arith.truncf %198 : vector<32x128xf32> to vector<32x128xbf16>
      %c0_98 = arith.constant 0 : index
      %c0_99 = arith.constant 0 : index
      %200 = vector.load %arg11[%c0_98, %c0_99] : memref<128x128xbf16, #tpu.memory_space<vmem>>, vector<128x128xbf16>
      %cst_100 = arith.constant dense<0.000000e+00> : vector<32x128xf32>
      %201 = tpu.matmul %199, %200, %cst_100 {dimension_numbers = #tpu.dot_dimension_numbers<[1], [0], [0], [1], [0, 0, 1, 1], [], []>} : vector<32x128xbf16>, vector<128x128xbf16>, vector<32x128xf32> -> vector<32x128xf32>
      %c0_101 = arith.constant 0 : index
      %c0_102 = arith.constant 0 : index
      %202 = vector.load %arg12[%c0_101, %c0_102] : memref<1x128xf32, #tpu.memory_space<vmem>>, vector<1x128xf32>
      %203 = vector.broadcast %202 : vector<1x128xf32> to vector<32x128xf32>
      %204 = arith.addf %201, %203 : vector<32x128xf32>
      %205 = arith.negf %204 : vector<32x128xf32>
      %206 = math.exp %205 : vector<32x128xf32>
      %cst_103 = arith.constant 1.000000e+00 : f32
      %207 = vector.broadcast %cst_103 : f32 to vector<32x128xf32>
      %208 = arith.addf %207, %206 : vector<32x128xf32>
      %209 = arith.divf %207, %208 : vector<32x128xf32>
      %210 = arith.mulf %204, %209 : vector<32x128xf32>
      %211 = arith.truncf %210 : vector<32x128xf32> to vector<32x128xbf16>
      %c0_104 = arith.constant 0 : index
      %c0_105 = arith.constant 0 : index
      %212 = vector.load %arg13[%c0_104, %c0_105] : memref<128x128xbf16, #tpu.memory_space<vmem>>, vector<128x128xbf16>
      %cst_106 = arith.constant dense<0.000000e+00> : vector<32x128xf32>
      %213 = tpu.matmul %211, %212, %cst_106 {dimension_numbers = #tpu.dot_dimension_numbers<[1], [0], [0], [1], [0, 0, 1, 1], [], []>} : vector<32x128xbf16>, vector<128x128xbf16>, vector<32x128xf32> -> vector<32x128xf32>
      %c0_107 = arith.constant 0 : index
      %c0_108 = arith.constant 0 : index
      %214 = vector.load %arg14[%c0_107, %c0_108] : memref<1x128xf32, #tpu.memory_space<vmem>>, vector<1x128xf32>
      %215 = vector.broadcast %214 : vector<1x128xf32> to vector<32x128xf32>
      %216 = arith.addf %213, %215 : vector<32x128xf32>
      %217 = arith.truncf %216 : vector<32x128xf32> to vector<32x128xbf16>
      %c0_109 = arith.constant 0 : index
      %c0_110 = arith.constant 0 : index
      %218 = vector.load %arg28[%c0_109, %c0_110] : memref<32x128xbf16, #tpu.memory_space<vmem>>, vector<32x128xbf16>
      tpu.vector_store %arg28[%c0_109, %c0_110], %217 {strides = array<i32>} : memref<32x128xbf16, #tpu.memory_space<vmem>>, vector<32x128xbf16>,
      %c0_111 = arith.constant 0 : index
      %c0_112 = arith.constant 0 : index
      %219 = vector.load %arg1[%c0_111, %c0_112] : memref<16x128xf32, #tpu.memory_space<vmem>>, vector<16x128xf32>
      %c0_113 = arith.constant 0 : index
      %c0_114 = arith.constant 0 : index
      %220 = vector.load %arg27[%c0_113, %c0_114] : memref<16x128xf32, #tpu.memory_space<vmem>>, vector<16x128xf32>
      tpu.vector_store %arg27[%c0_113, %c0_114], %219 {strides = array<i32>} : memref<16x128xf32, #tpu.memory_space<vmem>>, vector<16x128xf32>,
    } else {
    }
    %c0 = arith.constant 0 : index
    %c0_1 = arith.constant 0 : index
    %3 = vector.load %arg27[%c0, %c0_1] : memref<16x128xf32, #tpu.memory_space<vmem>>, vector<16x128xf32>
    %4 = arith.truncf %3 : vector<16x128xf32> to vector<16x128xbf16>
    %c0_2 = arith.constant 0 : index
    %c0_3 = arith.constant 0 : index
    %5 = vector.load %arg5[%c0_2, %c0_3] : memref<32x16xbf16, #tpu.memory_space<vmem>>, vector<32x16xbf16>
    %c0_4 = arith.constant 0 : index
    %c0_5 = arith.constant 0 : index
    %6 = vector.load %arg6[%c0_4, %c0_5] : memref<32x16xf32, #tpu.memory_space<vmem>>, vector<32x16xf32>
    %7 = arith.truncf %6 : vector<32x16xf32> to vector<32x16xbf16>
    %c0_6 = arith.constant 0 : index
    %c0_7 = arith.constant 0 : index
    %8 = vector.load %arg28[%c0_6, %c0_7] : memref<32x128xbf16, #tpu.memory_space<vmem>>, vector<32x128xbf16>
    %c0_8 = arith.constant 0 : index
    %c0_9 = arith.constant 0 : index
    %c0_10 = arith.constant 0 : index
    %9 = vector.load %arg18[%c0_8, %c0_9, %c0_10] : memref<1x10x128xf32, #tpu.memory_space<vmem>>, vector<1x10x128xf32>
    %10 = vector.shape_cast %9 : vector<1x10x128xf32> to vector<10x128xf32>
    %c0_11 = arith.constant 0 : index
    %c0_12 = arith.constant 0 : index
    %c0_13 = arith.constant 0 : index
    %11 = vector.load %arg15[%c0_11, %c0_12, %c0_13] : memref<1x128x512xbf16, #tpu.memory_space<vmem>>, vector<1x128x512xbf16>
    %12 = vector.shape_cast %11 : vector<1x128x512xbf16> to vector<128x512xbf16>
    %cst = arith.constant dense<0.000000e+00> : vector<16x512xf32>
    %13 = tpu.matmul %4, %12, %cst {dimension_numbers = #tpu.dot_dimension_numbers<[1], [0], [0], [1], [0, 0, 1, 1], [], []>} : vector<16x128xbf16>, vector<128x512xbf16>, vector<16x512xf32> -> vector<16x512xf32>
    %c0_14 = arith.constant 0 : index
    %c0_15 = arith.constant 0 : index
    %c0_16 = arith.constant 0 : index
    %14 = vector.load %arg16[%c0_14, %c0_15, %c0_16] : memref<1x1x512xf32, #tpu.memory_space<vmem>>, vector<1x1x512xf32>
    %15 = vector.shape_cast %14 : vector<1x1x512xf32> to vector<1x512xf32>
    %16 = vector.broadcast %15 : vector<1x512xf32> to vector<16x512xf32>
    %17 = arith.addf %13, %16 : vector<16x512xf32>
    %18 = vector.extract_strided_slice %17 {offsets = [0, 0], sizes = [16, 128], strides = [1, 1]} : vector<16x512xf32> to vector<16x128xf32>
    %19 = vector.extract_strided_slice %17 {offsets = [0, 128], sizes = [16, 128], strides = [1, 1]} : vector<16x512xf32> to vector<16x128xf32>
    %20 = vector.extract_strided_slice %17 {offsets = [0, 256], sizes = [16, 128], strides = [1, 1]} : vector<16x512xf32> to vector<16x128xf32>
    %21 = vector.extract_strided_slice %17 {offsets = [0, 384], sizes = [16, 128], strides = [1, 1]} : vector<16x512xf32> to vector<16x128xf32>
    %c0_17 = arith.constant 0 : index
    %c0_18 = arith.constant 0 : index
    %c0_19 = arith.constant 0 : index
    %22 = vector.load %arg19[%c0_17, %c0_18, %c0_19] : memref<1x128x128xbf16, #tpu.memory_space<vmem>>, vector<1x128x128xbf16>
    %23 = vector.shape_cast %22 : vector<1x128x128xbf16> to vector<128x128xbf16>
    %cst_20 = arith.constant dense<0.000000e+00> : vector<32x128xf32>
    %24 = tpu.matmul %8, %23, %cst_20 {dimension_numbers = #tpu.dot_dimension_numbers<[1], [0], [0], [1], [0, 0, 1, 1], [], []>} : vector<32x128xbf16>, vector<128x128xbf16>, vector<32x128xf32> -> vector<32x128xf32>
    %25 = vector.extract_strided_slice %10 {offsets = [0, 0], sizes = [1, 128], strides = [1, 1]} : vector<10x128xf32> to vector<1x128xf32>
    %26 = vector.broadcast %25 : vector<1x128xf32> to vector<32x128xf32>
    %27 = arith.addf %24, %26 : vector<32x128xf32>
    %c0_21 = arith.constant 0 : index
    %c0_22 = arith.constant 0 : index
    %28 = vector.load %arg3[%c0_21, %c0_22] : memref<32x128xbf16, #tpu.memory_space<vmem>>, vector<32x128xbf16>
    %c0_23 = arith.constant 0 : index
    %c0_24 = arith.constant 0 : index
    %c0_25 = arith.constant 0 : index
    %29 = vector.load %arg20[%c0_23, %c0_24, %c0_25] : memref<1x128x128xbf16, #tpu.memory_space<vmem>>, vector<1x128x128xbf16>
    %30 = vector.shape_cast %29 : vector<1x128x128xbf16> to vector<128x128xbf16>
    %cst_26 = arith.constant dense<0.000000e+00> : vector<32x128xf32>
    %31 = tpu.matmul %28, %30, %cst_26 {dimension_numbers = #tpu.dot_dimension_numbers<[1], [0], [0], [1], [0, 0, 1, 1], [], []>} : vector<32x128xbf16>, vector<128x128xbf16>, vector<32x128xf32> -> vector<32x128xf32>
    %32 = vector.extract_strided_slice %10 {offsets = [1, 0], sizes = [1, 128], strides = [1, 1]} : vector<10x128xf32> to vector<1x128xf32>
    %33 = vector.broadcast %32 : vector<1x128xf32> to vector<32x128xf32>
    %34 = arith.addf %31, %33 : vector<32x128xf32>
    %c0_27 = arith.constant 0 : index
    %c0_28 = arith.constant 0 : index
    %35 = vector.load %arg4[%c0_27, %c0_28] : memref<16x16xbf16, #tpu.memory_space<vmem>>, vector<16x16xbf16>
    %c0_29 = arith.constant 0 : index
    %c0_30 = arith.constant 0 : index
    %c0_31 = arith.constant 0 : index
    %36 = vector.load %arg21[%c0_29, %c0_30, %c0_31] : memref<1x16x128xbf16, #tpu.memory_space<vmem>>, vector<1x16x128xbf16>
    %37 = vector.shape_cast %36 : vector<1x16x128xbf16> to vector<16x128xbf16>
    %cst_32 = arith.constant dense<0.000000e+00> : vector<16x128xf32>
    %38 = tpu.matmul %35, %37, %cst_32 {dimension_numbers = #tpu.dot_dimension_numbers<[1], [0], [0], [1], [0, 0, 1, 1], [], []>} : vector<16x16xbf16>, vector<16x128xbf16>, vector<16x128xf32> -> vector<16x128xf32>
    %39 = vector.extract_strided_slice %10 {offsets = [2, 0], sizes = [1, 128], strides = [1, 1]} : vector<10x128xf32> to vector<1x128xf32>
    %40 = vector.broadcast %39 : vector<1x128xf32> to vector<16x128xf32>
    %41 = arith.addf %38, %40 : vector<16x128xf32>
    %42 = arith.truncf %18 : vector<16x128xf32> to vector<16x128xbf16>
    %cst_33 = arith.constant dense<0.000000e+00> : vector<32x128xf32>
    %43 = tpu.matmul %7, %42, %cst_33 {dimension_numbers = #tpu.dot_dimension_numbers<[1], [0], [0], [1], [0, 0, 1, 1], [], []>} : vector<32x16xbf16>, vector<16x128xbf16>, vector<32x128xf32> -> vector<32x128xf32>
    %44 = arith.truncf %19 : vector<16x128xf32> to vector<16x128xbf16>
    %cst_34 = arith.constant dense<0.000000e+00> : vector<32x128xf32>
    %45 = tpu.matmul %5, %44, %cst_34 {dimension_numbers = #tpu.dot_dimension_numbers<[1], [0], [0], [1], [0, 0, 1, 1], [], []>} : vector<32x16xbf16>, vector<16x128xbf16>, vector<32x128xf32> -> vector<32x128xf32>
    %46 = arith.addf %45, %27 : vector<32x128xf32>
    %47 = arith.truncf %20 : vector<16x128xf32> to vector<16x128xbf16>
    %cst_35 = arith.constant dense<0.000000e+00> : vector<32x128xf32>
    %48 = tpu.matmul %5, %47, %cst_35 {dimension_numbers = #tpu.dot_dimension_numbers<[1], [0], [0], [1], [0, 0, 1, 1], [], []>} : vector<32x16xbf16>, vector<16x128xbf16>, vector<32x128xf32> -> vector<32x128xf32>
    %49 = arith.addf %48, %27 : vector<32x128xf32>
    %50 = arith.mulf %49, %34 : vector<32x128xf32>
    %51 = arith.mulf %43, %46 : vector<32x128xf32>
    %c0_36 = arith.constant 0 : index
    %c0_37 = arith.constant 0 : index
    %52 = vector.load %arg10[%c0_36, %c0_37] : memref<128x128xf32, #tpu.memory_space<vmem>>, vector<128x128xf32>
    %cst_38 = arith.constant dense<0.000000e+00> : vector<32x128xf32>
    %53 = tpu.matmul %51, %52, %cst_38 {dimension_numbers = #tpu.dot_dimension_numbers<[1], [0], [0], [1], [0, 0, 1, 1], [], []>} : vector<32x128xf32>, vector<128x128xf32>, vector<32x128xf32> -> vector<32x128xf32>
    %54 = vector.shape_cast %6 : vector<32x16xf32> to vector<32x16x1xf32>
    %cst_39 = arith.constant 5.000000e-01 : f32
    %55 = vector.broadcast %cst_39 : f32 to vector<32x16x1xf32>
    %56 = arith.cmpf ogt, %54, %55 : vector<32x16x1xf32>
    %57 = vector.shape_cast %53 : vector<32x128xf32> to vector<32x1x128xf32>
    %cst_40 = arith.constant -1.000000e+30 : f32
    %58 = vector.shape_cast %56 : vector<32x16x1xi1> to vector<32x16x1xi1>
    %59 = vector.broadcast %58 : vector<32x16x1xi1> to vector<32x16x128xi1>
    %60 = vector.shape_cast %57 : vector<32x1x128xf32> to vector<32x1x128xf32>
    %61 = vector.broadcast %60 : vector<32x1x128xf32> to vector<32x16x128xf32>
    %62 = vector.broadcast %cst_40 : f32 to vector<32x16x128xf32>
    %63 = arith.select %59, %61, %62 : vector<32x16x128xi1>, vector<32x16x128xf32>
    %cst_41 = arith.constant dense<0xFF800000> : vector<16x128xf32>
    %64 = vector.multi_reduction <maximumf>, %63, %cst_41 [0] : vector<32x16x128xf32> to vector<16x128xf32>
    %65 = arith.truncf %64 : vector<16x128xf32> to vector<16x128xbf16>
    %cst_42 = arith.constant dense<0.000000e+00> : vector<32x128xf32>
    %66 = tpu.matmul %7, %65, %cst_42 {dimension_numbers = #tpu.dot_dimension_numbers<[1], [0], [0], [1], [0, 0, 1, 1], [], []>} : vector<32x16xbf16>, vector<16x128xbf16>, vector<32x128xf32> -> vector<32x128xf32>
    %67 = arith.subf %53, %66 : vector<32x128xf32>
    %68 = math.exp %67 : vector<32x128xf32>
    %cst_43 = arith.constant dense<0.000000e+00> : vector<16x128xf32>
    %69 = tpu.matmul %6, %68, %cst_43 {dimension_numbers = #tpu.dot_dimension_numbers<[0], [0], [1], [1], [0, 1, 1, 1], [], []>} : vector<32x16xf32>, vector<32x128xf32>, vector<16x128xf32> -> vector<16x128xf32>
    %cst_44 = arith.constant 1.000000e-16 : f32
    %70 = vector.broadcast %cst_44 : f32 to vector<16x128xf32>
    %71 = arith.addf %69, %70 : vector<16x128xf32>
    %72 = tpu.reciprocal %71 {approx = true} : vector<16x128xf32> -> vector<16x128xf32>
    %73 = arith.mulf %68, %50 : vector<32x128xf32>
    %74 = arith.truncf %73 : vector<32x128xf32> to vector<32x128xbf16>
    %cst_45 = arith.constant dense<0.000000e+00> : vector<16x128xf32>
    %75 = tpu.matmul %7, %74, %cst_45 {dimension_numbers = #tpu.dot_dimension_numbers<[0], [0], [1], [1], [0, 1, 1, 1], [], []>} : vector<32x16xbf16>, vector<32x128xbf16>, vector<16x128xf32> -> vector<16x128xf32>
    %76 = arith.mulf %75, %72 : vector<16x128xf32>
    %77 = arith.mulf %76, %41 : vector<16x128xf32>
    %78 = arith.addf %77, %21 : vector<16x128xf32>
    %c0_46 = arith.constant 0 : index
    %c0_47 = arith.constant 0 : index
    %79 = vector.load %arg7[%c0_46, %c0_47] : memref<16x2xf32, #tpu.memory_space<vmem>>, vector<16x2xf32>
    %c0_48 = arith.constant 0 : index
    %c0_49 = arith.constant 0 : index
    %80 = vector.load %arg8[%c0_48, %c0_49] : memref<2x1xf32, #tpu.memory_space<vmem>>, vector<2x1xf32>
    %cst_50 = arith.constant dense<0.000000e+00> : vector<16xf32>
    %81 = vector.multi_reduction <add>, %78, %cst_50 [1] : vector<16x128xf32> to vector<16xf32>
    %82 = vector.shape_cast %81 : vector<16xf32> to vector<16x1xf32>
    %cst_51 = arith.constant dense<0.000000e+00> : vector<2x1xf32>
    %83 = tpu.matmul %79, %82, %cst_51 {dimension_numbers = #tpu.dot_dimension_numbers<[0], [0], [1], [1], [0, 1, 1, 1], [], []>} : vector<16x2xf32>, vector<16x1xf32>, vector<2x1xf32> -> vector<2x1xf32>
    %84 = arith.mulf %83, %80 : vector<2x1xf32>
    %cst_52 = arith.constant dense<0.000000e+00> : vector<16x1xf32>
    %85 = tpu.matmul %79, %84, %cst_52 {dimension_numbers = #tpu.dot_dimension_numbers<[1], [0], [0], [1], [0, 0, 1, 1], [], []>} : vector<16x2xf32>, vector<2x1xf32>, vector<16x1xf32> -> vector<16x1xf32>
    %86 = vector.broadcast %85 : vector<16x1xf32> to vector<16x128xf32>
    %87 = arith.subf %78, %86 : vector<16x128xf32>
    %88 = arith.mulf %87, %87 : vector<16x128xf32>
    %cst_53 = arith.constant dense<0.000000e+00> : vector<16xf32>
    %89 = vector.multi_reduction <add>, %88, %cst_53 [1] : vector<16x128xf32> to vector<16xf32>
    %90 = vector.shape_cast %89 : vector<16xf32> to vector<16x1xf32>
    %cst_54 = arith.constant dense<0.000000e+00> : vector<2x1xf32>
    %91 = tpu.matmul %79, %90, %cst_54 {dimension_numbers = #tpu.dot_dimension_numbers<[0], [0], [1], [1], [0, 1, 1, 1], [], []>} : vector<16x2xf32>, vector<16x1xf32>, vector<2x1xf32> -> vector<2x1xf32>
    %92 = arith.mulf %91, %80 : vector<2x1xf32>
    %cst_55 = arith.constant 9.99999993E-9 : f32
    %93 = vector.broadcast %cst_55 : f32 to vector<2x1xf32>
    %94 = arith.addf %92, %93 : vector<2x1xf32>
    %95 = math.rsqrt %94 : vector<2x1xf32>
    %cst_56 = arith.constant dense<0.000000e+00> : vector<16x1xf32>
    %96 = tpu.matmul %79, %95, %cst_56 {dimension_numbers = #tpu.dot_dimension_numbers<[1], [0], [0], [1], [0, 0, 1, 1], [], []>} : vector<16x2xf32>, vector<2x1xf32>, vector<16x1xf32> -> vector<16x1xf32>
    %97 = vector.broadcast %96 : vector<16x1xf32> to vector<16x128xf32>
    %98 = arith.mulf %87, %97 : vector<16x128xf32>
    %99 = arith.truncf %98 : vector<16x128xf32> to vector<16x128xbf16>
    %c0_57 = arith.constant 0 : index
    %c0_58 = arith.constant 0 : index
    %c0_59 = arith.constant 0 : index
    %c0_60 = arith.constant 0 : index
    %100 = vector.load %arg17[%c0_57, %c0_58, %c0_59, %c0_60] : memref<1x7x128x128xbf16, #tpu.memory_space<vmem>>, vector<1x1x128x128xbf16>
    %101 = vector.shape_cast %100 : vector<1x1x128x128xbf16> to vector<128x128xbf16>
    %cst_61 = arith.constant dense<0.000000e+00> : vector<16x128xf32>
    %102 = tpu.matmul %99, %101, %cst_61 {dimension_numbers = #tpu.dot_dimension_numbers<[1], [0], [0], [1], [0, 0, 1, 1], [], []>} : vector<16x128xbf16>, vector<128x128xbf16>, vector<16x128xf32> -> vector<16x128xf32>
    %103 = vector.extract_strided_slice %10 {offsets = [3, 0], sizes = [1, 128], strides = [1, 1]} : vector<10x128xf32> to vector<1x128xf32>
    %104 = vector.broadcast %103 : vector<1x128xf32> to vector<16x128xf32>
    %105 = arith.addf %102, %104 : vector<16x128xf32>
    %106 = arith.negf %105 : vector<16x128xf32>
    %107 = math.exp %106 : vector<16x128xf32>
    %cst_62 = arith.constant 1.000000e+00 : f32
    %108 = vector.broadcast %cst_62 : f32 to vector<16x128xf32>
    %109 = arith.addf %108, %107 : vector<16x128xf32>
    %110 = arith.divf %108, %109 : vector<16x128xf32>
    %111 = arith.mulf %105, %110 : vector<16x128xf32>
    %112 = arith.truncf %111 : vector<16x128xf32> to vector<16x128xbf16>
    %c0_63 = arith.constant 0 : index
    %c1 = arith.constant 1 : index
    %c0_64 = arith.constant 0 : index
    %c0_65 = arith.constant 0 : index
    %113 = vector.load %arg17[%c0_63, %c1, %c0_64, %c0_65] : memref<1x7x128x128xbf16, #tpu.memory_space<vmem>>, vector<1x1x128x128xbf16>
    %114 = vector.shape_cast %113 : vector<1x1x128x128xbf16> to vector<128x128xbf16>
    %cst_66 = arith.constant dense<0.000000e+00> : vector<16x128xf32>
    %115 = tpu.matmul %112, %114, %cst_66 {dimension_numbers = #tpu.dot_dimension_numbers<[1], [0], [0], [1], [0, 0, 1, 1], [], []>} : vector<16x128xbf16>, vector<128x128xbf16>, vector<16x128xf32> -> vector<16x128xf32>
    %116 = vector.extract_strided_slice %10 {offsets = [4, 0], sizes = [1, 128], strides = [1, 1]} : vector<10x128xf32> to vector<1x128xf32>
    %117 = vector.broadcast %116 : vector<1x128xf32> to vector<16x128xf32>
    %118 = arith.addf %115, %117 : vector<16x128xf32>
    %119 = arith.negf %118 : vector<16x128xf32>
    %120 = math.exp %119 : vector<16x128xf32>
    %cst_67 = arith.constant 1.000000e+00 : f32
    %121 = vector.broadcast %cst_67 : f32 to vector<16x128xf32>
    %122 = arith.addf %121, %120 : vector<16x128xf32>
    %123 = arith.divf %121, %122 : vector<16x128xf32>
    %124 = arith.mulf %118, %123 : vector<16x128xf32>
    %125 = arith.addf %98, %124 : vector<16x128xf32>
    %126 = arith.truncf %125 : vector<16x128xf32> to vector<16x128xbf16>
    %c0_68 = arith.constant 0 : index
    %c2 = arith.constant 2 : index
    %c0_69 = arith.constant 0 : index
    %c0_70 = arith.constant 0 : index
    %127 = vector.load %arg17[%c0_68, %c2, %c0_69, %c0_70] : memref<1x7x128x128xbf16, #tpu.memory_space<vmem>>, vector<1x1x128x128xbf16>
    %128 = vector.shape_cast %127 : vector<1x1x128x128xbf16> to vector<128x128xbf16>
    %cst_71 = arith.constant dense<0.000000e+00> : vector<16x128xf32>
    %129 = tpu.matmul %126, %128, %cst_71 {dimension_numbers = #tpu.dot_dimension_numbers<[1], [0], [0], [1], [0, 0, 1, 1], [], []>} : vector<16x128xbf16>, vector<128x128xbf16>, vector<16x128xf32> -> vector<16x128xf32>
    %130 = vector.extract_strided_slice %10 {offsets = [5, 0], sizes = [1, 128], strides = [1, 1]} : vector<10x128xf32> to vector<1x128xf32>
    %131 = vector.broadcast %130 : vector<1x128xf32> to vector<16x128xf32>
    %132 = arith.addf %129, %131 : vector<16x128xf32>
    %133 = arith.negf %132 : vector<16x128xf32>
    %134 = math.exp %133 : vector<16x128xf32>
    %cst_72 = arith.constant 1.000000e+00 : f32
    %135 = vector.broadcast %cst_72 : f32 to vector<16x128xf32>
    %136 = arith.addf %135, %134 : vector<16x128xf32>
    %137 = arith.divf %135, %136 : vector<16x128xf32>
    %138 = arith.mulf %132, %137 : vector<16x128xf32>
    %139 = arith.addf %138, %3 : vector<16x128xf32>
    %140 = arith.truncf %139 : vector<16x128xf32> to vector<16x128xbf16>
    %c0_73 = arith.constant 0 : index
    %c3 = arith.constant 3 : index
    %c0_74 = arith.constant 0 : index
    %c0_75 = arith.constant 0 : index
    %141 = vector.load %arg17[%c0_73, %c3, %c0_74, %c0_75] : memref<1x7x128x128xbf16, #tpu.memory_space<vmem>>, vector<1x1x128x128xbf16>
    %142 = vector.shape_cast %141 : vector<1x1x128x128xbf16> to vector<128x128xbf16>
    %cst_76 = arith.constant dense<0.000000e+00> : vector<16x128xf32>
    %143 = tpu.matmul %140, %142, %cst_76 {dimension_numbers = #tpu.dot_dimension_numbers<[1], [0], [0], [1], [0, 0, 1, 1], [], []>} : vector<16x128xbf16>, vector<128x128xbf16>, vector<16x128xf32> -> vector<16x128xf32>
    %144 = vector.extract_strided_slice %10 {offsets = [6, 0], sizes = [1, 128], strides = [1, 1]} : vector<10x128xf32> to vector<1x128xf32>
    %145 = vector.broadcast %144 : vector<1x128xf32> to vector<16x128xf32>
    %146 = arith.addf %143, %145 : vector<16x128xf32>
    %147 = arith.negf %146 : vector<16x128xf32>
    %148 = math.exp %147 : vector<16x128xf32>
    %cst_77 = arith.constant 1.000000e+00 : f32
    %149 = vector.broadcast %cst_77 : f32 to vector<16x128xf32>
    %150 = arith.addf %149, %148 : vector<16x128xf32>
    %151 = arith.divf %149, %150 : vector<16x128xf32>
    %152 = arith.mulf %146, %151 : vector<16x128xf32>
    %153 = arith.truncf %152 : vector<16x128xf32> to vector<16x128xbf16>
    %c0_78 = arith.constant 0 : index
    %c4 = arith.constant 4 : index
    %c0_79 = arith.constant 0 : index
    %c0_80 = arith.constant 0 : index
    %154 = vector.load %arg17[%c0_78, %c4, %c0_79, %c0_80] : memref<1x7x128x128xbf16, #tpu.memory_space<vmem>>, vector<1x1x128x128xbf16>
    %155 = vector.shape_cast %154 : vector<1x1x128x128xbf16> to vector<128x128xbf16>
    %cst_81 = arith.constant dense<0.000000e+00> : vector<16x128xf32>
    %156 = tpu.matmul %153, %155, %cst_81 {dimension_numbers = #tpu.dot_dimension_numbers<[1], [0], [0], [1], [0, 0, 1, 1], [], []>} : vector<16x128xbf16>, vector<128x128xbf16>, vector<16x128xf32> -> vector<16x128xf32>
    %157 = vector.extract_strided_slice %10 {offsets = [7, 0], sizes = [1, 128], strides = [1, 1]} : vector<10x128xf32> to vector<1x128xf32>
    %158 = vector.broadcast %157 : vector<1x128xf32> to vector<16x128xf32>
    %159 = arith.addf %156, %158 : vector<16x128xf32>
    %160 = arith.negf %159 : vector<16x128xf32>
    %161 = math.exp %160 : vector<16x128xf32>
    %cst_82 = arith.constant 1.000000e+00 : f32
    %162 = vector.broadcast %cst_82 : f32 to vector<16x128xf32>
    %163 = arith.addf %162, %161 : vector<16x128xf32>
    %164 = arith.divf %162, %163 : vector<16x128xf32>
    %165 = arith.mulf %159, %164 : vector<16x128xf32>
    %166 = arith.addf %139, %165 : vector<16x128xf32>
    %167 = arith.truncf %166 : vector<16x128xf32> to vector<16x128xbf16>
    %c0_83 = arith.constant 0 : index
    %c5 = arith.constant 5 : index
    %c0_84 = arith.constant 0 : index
    %c0_85 = arith.constant 0 : index
    %168 = vector.load %arg17[%c0_83, %c5, %c0_84, %c0_85] : memref<1x7x128x128xbf16, #tpu.memory_space<vmem>>, vector<1x1x128x128xbf16>
    %169 = vector.shape_cast %168 : vector<1x1x128x128xbf16> to vector<128x128xbf16>
    %cst_86 = arith.constant dense<0.000000e+00> : vector<16x128xf32>
    %170 = tpu.matmul %167, %169, %cst_86 {dimension_numbers = #tpu.dot_dimension_numbers<[1], [0], [0], [1], [0, 0, 1, 1], [], []>} : vector<16x128xbf16>, vector<128x128xbf16>, vector<16x128xf32> -> vector<16x128xf32>
    %171 = vector.extract_strided_slice %10 {offsets = [8, 0], sizes = [1, 128], strides = [1, 1]} : vector<10x128xf32> to vector<1x128xf32>
    %172 = vector.broadcast %171 : vector<1x128xf32> to vector<16x128xf32>
    %173 = arith.addf %170, %172 : vector<16x128xf32>
    %174 = arith.negf %173 : vector<16x128xf32>
    %175 = math.exp %174 : vector<16x128xf32>
    %cst_87 = arith.constant 1.000000e+00 : f32
    %176 = vector.broadcast %cst_87 : f32 to vector<16x128xf32>
    %177 = arith.addf %176, %175 : vector<16x128xf32>
    %178 = arith.divf %176, %177 : vector<16x128xf32>
    %179 = arith.mulf %173, %178 : vector<16x128xf32>
    %180 = arith.truncf %179 : vector<16x128xf32> to vector<16x128xbf16>
    %c0_88 = arith.constant 0 : index
    %c6 = arith.constant 6 : index
    %c0_89 = arith.constant 0 : index
    %c0_90 = arith.constant 0 : index
    %181 = vector.load %arg17[%c0_88, %c6, %c0_89, %c0_90] : memref<1x7x128x128xbf16, #tpu.memory_space<vmem>>, vector<1x1x128x128xbf16>
    %182 = vector.shape_cast %181 : vector<1x1x128x128xbf16> to vector<128x128xbf16>
    %cst_91 = arith.constant dense<0.000000e+00> : vector<16x128xf32>
    %183 = tpu.matmul %180, %182, %cst_91 {dimension_numbers = #tpu.dot_dimension_numbers<[1], [0], [0], [1], [0, 0, 1, 1], [], []>} : vector<16x128xbf16>, vector<128x128xbf16>, vector<16x128xf32> -> vector<16x128xf32>
    %184 = vector.extract_strided_slice %10 {offsets = [9, 0], sizes = [1, 128], strides = [1, 1]} : vector<10x128xf32> to vector<1x128xf32>
    %185 = vector.broadcast %184 : vector<1x128xf32> to vector<16x128xf32>
    %186 = arith.addf %183, %185 : vector<16x128xf32>
    %187 = arith.negf %186 : vector<16x128xf32>
    %188 = math.exp %187 : vector<16x128xf32>
    %cst_92 = arith.constant 1.000000e+00 : f32
    %189 = vector.broadcast %cst_92 : f32 to vector<16x128xf32>
    %190 = arith.addf %189, %188 : vector<16x128xf32>
    %191 = arith.divf %189, %190 : vector<16x128xf32>
    %192 = arith.mulf %186, %191 : vector<16x128xf32>
    %193 = arith.addf %166, %192 : vector<16x128xf32>
    %c0_93 = arith.constant 0 : index
    %c0_94 = arith.constant 0 : index
    %194 = vector.load %arg27[%c0_93, %c0_94] : memref<16x128xf32, #tpu.memory_space<vmem>>, vector<16x128xf32>
    tpu.vector_store %arg27[%c0_93, %c0_94], %193 {strides = array<i32>} : memref<16x128xf32, #tpu.memory_space<vmem>>, vector<16x128xf32>,
    %c1_i32 = arith.constant 1 : i32
    %195 = arith.cmpi eq, %arg0, %c1_i32 : i32
    %196 = arith.extui %195 : i1 to i32
    %c0_i32_95 = arith.constant 0 : i32
    %197 = arith.cmpi ne, %196, %c0_i32_95 : i32
    scf.if %197 {
      %c0_96 = arith.constant 0 : index
      %c0_97 = arith.constant 0 : index
      %198 = vector.load %arg9[%c0_96, %c0_97] : memref<16x2xbf16, #tpu.memory_space<vmem>>, vector<16x2xbf16>
      %199 = arith.truncf %193 : vector<16x128xf32> to vector<16x128xbf16>
      %cst_98 = arith.constant dense<0.000000e+00> : vector<2x128xf32>
      %200 = tpu.matmul %198, %199, %cst_98 {dimension_numbers = #tpu.dot_dimension_numbers<[0], [0], [1], [1], [0, 1, 1, 1], [], []>} : vector<16x2xbf16>, vector<16x128xbf16>, vector<2x128xf32> -> vector<2x128xf32>
      %201 = arith.truncf %200 : vector<2x128xf32> to vector<2x128xbf16>
      %c0_99 = arith.constant 0 : index
      %c0_100 = arith.constant 0 : index
      %202 = vector.load %arg22[%c0_99, %c0_100] : memref<128x128xbf16, #tpu.memory_space<vmem>>, vector<128x128xbf16>
      %cst_101 = arith.constant dense<0.000000e+00> : vector<2x128xf32>
      %203 = tpu.matmul %201, %202, %cst_101 {dimension_numbers = #tpu.dot_dimension_numbers<[1], [0], [0], [1], [0, 0, 1, 1], [], []>} : vector<2x128xbf16>, vector<128x128xbf16>, vector<2x128xf32> -> vector<2x128xf32>
      %c0_102 = arith.constant 0 : index
      %c0_103 = arith.constant 0 : index
      %204 = vector.load %arg23[%c0_102, %c0_103] : memref<1x128xf32, #tpu.memory_space<vmem>>, vector<1x128xf32>
      %205 = vector.broadcast %204 : vector<1x128xf32> to vector<2x128xf32>
      %206 = arith.addf %203, %205 : vector<2x128xf32>
      %207 = arith.negf %206 : vector<2x128xf32>
      %208 = math.exp %207 : vector<2x128xf32>
      %cst_104 = arith.constant 1.000000e+00 : f32
      %209 = vector.broadcast %cst_104 : f32 to vector<2x128xf32>
      %210 = arith.addf %209, %208 : vector<2x128xf32>
      %211 = arith.divf %209, %210 : vector<2x128xf32>
      %212 = arith.mulf %206, %211 : vector<2x128xf32>
      %213 = arith.truncf %212 : vector<2x128xf32> to vector<2x128xbf16>
      %c0_105 = arith.constant 0 : index
      %c0_106 = arith.constant 0 : index
      %214 = vector.load %arg24[%c0_105, %c0_106] : memref<128x1xbf16, #tpu.memory_space<vmem>>, vector<128x1xbf16>
      %cst_107 = arith.constant dense<0.000000e+00> : vector<2x1xf32>
      %215 = tpu.matmul %213, %214, %cst_107 {dimension_numbers = #tpu.dot_dimension_numbers<[1], [0], [0], [1], [0, 0, 1, 1], [], []>} : vector<2x128xbf16>, vector<128x1xbf16>, vector<2x1xf32> -> vector<2x1xf32>
      %c0_108 = arith.constant 0 : index
      %c0_109 = arith.constant 0 : index
      %216 = vector.load %arg25[%c0_108, %c0_109] : memref<1x1xf32, #tpu.memory_space<vmem>>, vector<1x1xf32>
      %217 = vector.broadcast %216 : vector<1x1xf32> to vector<2x1xf32>
      %218 = arith.addf %215, %217 : vector<2x1xf32>
      %c0_110 = arith.constant 0 : index
      %c0_111 = arith.constant 0 : index
      %219 = vector.load %arg26[%c0_110, %c0_111] : memref<2x1xf32, #tpu.memory_space<vmem>>, vector<2x1xf32>
      tpu.vector_store %arg26[%c0_110, %c0_111], %218 {strides = array<i32>} : memref<2x1xf32, #tpu.memory_space<vmem>>, vector<2x1xf32>,
    } else {
    }
    return
  }
  func.func @transform_0(%arg0: i32) -> (i32, i32) {
    %c0_i32 = arith.constant 0 : i32
    %c0_i32_0 = arith.constant 0 : i32
    %c0_i32_1 = arith.constant 0 : i32
    return %c0_i32, %c0_i32_0 : i32, i32
  }
  func.func @transform_1(%arg0: i32) -> (i32, i32) {
    %c0_i32 = arith.constant 0 : i32
    %c0_i32_0 = arith.constant 0 : i32
    %c0_i32_1 = arith.constant 0 : i32
    return %c0_i32, %c0_i32_0 : i32, i32
  }
  func.func @transform_2(%arg0: i32) -> (i32, i32) {
    %c0_i32 = arith.constant 0 : i32
    %c0_i32_0 = arith.constant 0 : i32
    %c0_i32_1 = arith.constant 0 : i32
    return %c0_i32, %c0_i32_0 : i32, i32
  }
  func.func @transform_3(%arg0: i32) -> (i32, i32) {
    %c0_i32 = arith.constant 0 : i32
    %c0_i32_0 = arith.constant 0 : i32
    %c0_i32_1 = arith.constant 0 : i32
    return %c0_i32, %c0_i32_0 : i32, i32
  }
  func.func @transform_4(%arg0: i32) -> (i32, i32) {
    %c0_i32 = arith.constant 0 : i32
    %c0_i32_0 = arith.constant 0 : i32
    %c0_i32_1 = arith.constant 0 : i32
    return %c0_i32, %c0_i32_0 : i32, i32
  }
  func.func @transform_5(%arg0: i32) -> (i32, i32) {
    %c0_i32 = arith.constant 0 : i32
    %c0_i32_0 = arith.constant 0 : i32
    %c0_i32_1 = arith.constant 0 : i32
    return %c0_i32, %c0_i32_0 : i32, i32
  }
  func.func @transform_6(%arg0: i32) -> (i32, i32) {
    %c0_i32 = arith.constant 0 : i32
    %c0_i32_0 = arith.constant 0 : i32
    %c0_i32_1 = arith.constant 0 : i32
    return %c0_i32, %c0_i32_0 : i32, i32
  }
  func.func @transform_7(%arg0: i32) -> (i32, i32) {
    %c0_i32 = arith.constant 0 : i32
    %c0_i32_0 = arith.constant 0 : i32
    %c0_i32_1 = arith.constant 0 : i32
    return %c0_i32, %c0_i32_0 : i32, i32
  }
  func.func @transform_8(%arg0: i32) -> (i32, i32) {
    %c0_i32 = arith.constant 0 : i32
    %c0_i32_0 = arith.constant 0 : i32
    %c0_i32_1 = arith.constant 0 : i32
    return %c0_i32, %c0_i32_0 : i32, i32
  }
  func.func @transform_9(%arg0: i32) -> (i32, i32) {
    %c0_i32 = arith.constant 0 : i32
    %c0_i32_0 = arith.constant 0 : i32
    %c0_i32_1 = arith.constant 0 : i32
    return %c0_i32, %c0_i32_0 : i32, i32
  }
  func.func @transform_10(%arg0: i32) -> (i32, i32) {
    %c0_i32 = arith.constant 0 : i32
    %c0_i32_0 = arith.constant 0 : i32
    %c0_i32_1 = arith.constant 0 : i32
    return %c0_i32, %c0_i32_0 : i32, i32
  }
  func.func @transform_11(%arg0: i32) -> (i32, i32) {
    %c0_i32 = arith.constant 0 : i32
    %c0_i32_0 = arith.constant 0 : i32
    %c0_i32_1 = arith.constant 0 : i32
    return %c0_i32, %c0_i32_0 : i32, i32
  }
  func.func @transform_12(%arg0: i32) -> (i32, i32) {
    %c0_i32 = arith.constant 0 : i32
    %c0_i32_0 = arith.constant 0 : i32
    %c0_i32_1 = arith.constant 0 : i32
    return %c0_i32, %c0_i32_0 : i32, i32
  }
  func.func @transform_13(%arg0: i32) -> (i32, i32) {
    %c0_i32 = arith.constant 0 : i32
    %c0_i32_0 = arith.constant 0 : i32
    %c0_i32_1 = arith.constant 0 : i32
    return %c0_i32, %c0_i32_0 : i32, i32
  }
  func.func @transform_14(%arg0: i32) -> (i32, i32, i32) {
    %c0_i32 = arith.constant 0 : i32
    %c0_i32_0 = arith.constant 0 : i32
    %c0_i32_1 = arith.constant 0 : i32
    return %arg0, %c0_i32, %c0_i32_0 : i32, i32, i32
  }
  func.func @transform_15(%arg0: i32) -> (i32, i32, i32) {
    %c0_i32 = arith.constant 0 : i32
    %c0_i32_0 = arith.constant 0 : i32
    %c0_i32_1 = arith.constant 0 : i32
    return %arg0, %c0_i32, %c0_i32_0 : i32, i32, i32
  }
  func.func @transform_16(%arg0: i32) -> (i32, i32, i32, i32) {
    %c0_i32 = arith.constant 0 : i32
    %c0_i32_0 = arith.constant 0 : i32
    %c0_i32_1 = arith.constant 0 : i32
    %c0_i32_2 = arith.constant 0 : i32
    return %arg0, %c0_i32, %c0_i32_0, %c0_i32_1 : i32, i32, i32, i32
  }
  func.func @transform_17(%arg0: i32) -> (i32, i32, i32) {
    %c0_i32 = arith.constant 0 : i32
    %c0_i32_0 = arith.constant 0 : i32
    %c0_i32_1 = arith.constant 0 : i32
    return %arg0, %c0_i32, %c0_i32_0 : i32, i32, i32
  }
  func.func @transform_18(%arg0: i32) -> (i32, i32, i32) {
    %c0_i32 = arith.constant 0 : i32
    %c0_i32_0 = arith.constant 0 : i32
    %c0_i32_1 = arith.constant 0 : i32
    return %arg0, %c0_i32, %c0_i32_0 : i32, i32, i32
  }
  func.func @transform_19(%arg0: i32) -> (i32, i32, i32) {
    %c0_i32 = arith.constant 0 : i32
    %c0_i32_0 = arith.constant 0 : i32
    %c0_i32_1 = arith.constant 0 : i32
    return %arg0, %c0_i32, %c0_i32_0 : i32, i32, i32
  }
  func.func @transform_20(%arg0: i32) -> (i32, i32, i32) {
    %c0_i32 = arith.constant 0 : i32
    %c0_i32_0 = arith.constant 0 : i32
    %c0_i32_1 = arith.constant 0 : i32
    return %arg0, %c0_i32, %c0_i32_0 : i32, i32, i32
  }
  func.func @transform_21(%arg0: i32) -> (i32, i32) {
    %c0_i32 = arith.constant 0 : i32
    %c0_i32_0 = arith.constant 0 : i32
    %c0_i32_1 = arith.constant 0 : i32
    return %c0_i32, %c0_i32_0 : i32, i32
  }
  func.func @transform_22(%arg0: i32) -> (i32, i32) {
    %c0_i32 = arith.constant 0 : i32
    %c0_i32_0 = arith.constant 0 : i32
    %c0_i32_1 = arith.constant 0 : i32
    return %c0_i32, %c0_i32_0 : i32, i32
  }
  func.func @transform_23(%arg0: i32) -> (i32, i32) {
    %c0_i32 = arith.constant 0 : i32
    %c0_i32_0 = arith.constant 0 : i32
    %c0_i32_1 = arith.constant 0 : i32
    return %c0_i32, %c0_i32_0 : i32, i32
  }
  func.func @transform_24(%arg0: i32) -> (i32, i32) {
    %c0_i32 = arith.constant 0 : i32
    %c0_i32_0 = arith.constant 0 : i32
    %c0_i32_1 = arith.constant 0 : i32
    return %c0_i32, %c0_i32_0 : i32, i32
  }
  func.func @transform_25(%arg0: i32) -> (i32, i32) {
    %c0_i32 = arith.constant 0 : i32
    %c0_i32_0 = arith.constant 0 : i32
    %c0_i32_1 = arith.constant 0 : i32
    return %c0_i32, %c0_i32_0 : i32, i32
  }
}

</mosaic_0001>

<llo_original>
// kernel: tpu_custom_call.1
$region0: #{tpu_custom_call.1}
  #allocation0 [shape = 'u32[]', space=smem, size = 0x4, offset = 0x4, fixed_abs, tag = 'smem constant byte address 0x4 - core index']
  #allocation1 [shape = 'u32[144,128]{1,0:T(1,128)}', space=vmem, size = 0x12000, scoped, tag = 'internal scratch']
  #allocation2 [shape = 'f32[16,128]{1,0:T(8,128)}', space=vmem, size = 0x2000, scoped, tag = 'scratch operand']
  #allocation3 [shape = 'bf16[32,128]{1,0:T(16,128)(2,1)}', space=vmem, size = 0x2000, scoped, tag = 'scratch operand']
  #allocation4 [shape = 'f32[1,1]{1,0:T(1,128)S(1)}', space=vmem, size = 0x200, scoped, tag = 'scoped memory for tpu_custom_call.1']
  %s0 = inlined_call_operand.hbm [shape: f32[16,128], index: 0, kind: input, shape index: {}]
  %s1 = inlined_call_operand.hbm [shape: f32[32,128], index: 1, kind: input, shape index: {}]
  %s2 = inlined_call_operand.hbm [shape: bf16[32,128], index: 2, kind: input, shape index: {}]
  %s3 = inlined_call_operand.hbm [shape: bf16[16,16], index: 3, kind: input, shape index: {}]
  %s4 = inlined_call_operand.vmem [shape: bf16[32,16], index: 4, kind: input, shape index: {}]
  %s5 = inlined_call_operand.vmem [shape: f32[32,16], index: 5, kind: input, shape index: {}]
  %s6 = inlined_call_operand.vmem [shape: f32[16,2], index: 6, kind: input, shape index: {}]
  %s7 = inlined_call_operand.vmem [shape: f32[2,1], index: 7, kind: input, shape index: {}]
  %s8 = inlined_call_operand.vmem [shape: bf16[16,2], index: 8, kind: input, shape index: {}]
  %s9 = inlined_call_operand.vmem [shape: f32[128,128], index: 9, kind: input, shape index: {}]
  %s10 = inlined_call_operand.hbm [shape: bf16[128,128], index: 10, kind: input, shape index: {}]
  %s11 = inlined_call_operand.hbm [shape: f32[1,128], index: 11, kind: input, shape index: {}]
  %s12 = inlined_call_operand.hbm [shape: bf16[128,128], index: 12, kind: input, shape index: {}]
  %s13 = inlined_call_operand.hbm [shape: f32[1,128], index: 13, kind: input, shape index: {}]
  %s14 = inlined_call_operand.hbm [shape: bf16[2,128,512], index: 14, kind: input, shape index: {}]
  %s15 = inlined_call_operand.hbm [shape: f32[2,1,512], index: 15, kind: input, shape index: {}]
  %s16 = inlined_call_operand.hbm [shape: bf16[2,7,128,128], index: 16, kind: input, shape index: {}]
  %s17 = inlined_call_operand.vmem [shape: f32[2,10,128], index: 17, kind: input, shape index: {}]
  %s18 = inlined_call_operand.vmem [shape: bf16[2,128,128], index: 18, kind: input, shape index: {}]
  %s19 = inlined_call_operand.hbm [shape: bf16[2,128,128], index: 19, kind: input, shape index: {}]
  %s20 = inlined_call_operand.vmem [shape: bf16[2,16,128], index: 20, kind: input, shape index: {}]
  %s21 = inlined_call_operand.hbm [shape: bf16[128,128], index: 21, kind: input, shape index: {}]
  %s22 = inlined_call_operand.vmem [shape: f32[1,128], index: 22, kind: input, shape index: {}]
  %s23 = inlined_call_operand.vmem [shape: bf16[128,1], index: 23, kind: input, shape index: {}]
  %s24 = inlined_call_operand.<no memory space> [shape: f32[1,1], index: 24, kind: input, shape index: {}]
  %s25 = inlined_call_operand.vmem [shape: f32[2,1], index: 25, kind: output, shape index: {}]
  %s26 = sld [smem:[#allocation0]]
  $region193: #{tpu_custom_call.1} parent=0
    _
  %s28 = ssub.s32 1, %s26
  %s29 = scalar_select 0, %s28, %s26
  %v30 = vstv %s24
  %31 = vst [vmem:[#allocation4] sm:$0x1] %v30
  $region1: #{tpu_custom_call.1} parent=0
    #allocation5 [shape = 'u8[8192]{0}', space=vmem, size = 0x2000, scoped, tag = 'input window, operand 0, single buffered']
    #allocation6 [shape = 's32[2]{0}', space=sflag, size = 0x8, scoped, tag = 'scoped memory for tpu_custom_call.1']
    #allocation7 [shape = 'u8[16384]{0}', space=vmem, size = 0x4000, scoped, tag = 'input window, operand 1, single buffered']
    #allocation8 [shape = 's32[1]{0}', space=sflag, size = 0x4, scoped, tag = 'scoped memory for tpu_custom_call.1']
    #allocation9 [shape = 'u8[8192]{0}', space=vmem, size = 0x2000, scoped, tag = 'input window, operand 2, single buffered']
    #allocation10 [shape = 'u8[4096]{0}', space=vmem, size = 0x1000, scoped, tag = 'input window, operand 3, single buffered']
    #allocation11 [shape = 's32[1]{0}', space=sflag, size = 0x4, scoped, tag = 'scoped memory for tpu_custom_call.1']
    #allocation12 [shape = 'u8[32768]{0}', space=vmem, size = 0x8000, scoped, tag = 'input window, operand 10, single buffered']
    #allocation13 [shape = 'u8[512]{0}', space=vmem, size = 0x400, scoped, tag = 'input window, operand 11, single buffered']
    #allocation14 [shape = 's32[1]{0}', space=sflag, size = 0x4, scoped, tag = 'scoped memory for tpu_custom_call.1']
    #allocation15 [shape = 'u8[32768]{0}', space=vmem, size = 0x8000, scoped, tag = 'input window, operand 12, single buffered']
    #allocation16 [shape = 'u8[512]{0}', space=vmem, size = 0x400, scoped, tag = 'input window, operand 13, single buffered']
    #allocation17 [shape = 's32[1]{0}', space=sflag, size = 0x4, scoped, tag = 'scoped memory for tpu_custom_call.1']
    #allocation18 [shape = 'u8[262144]{0}', space=vmem, size = 0x40000, scoped, tag = 'input window, operand 14']
    #allocation19 [shape = 'u8[4096]{0}', space=vmem, size = 0x1000, scoped, tag = 'input window, operand 15']
    #allocation20 [shape = 'u8[458752]{0}', space=vmem, size = 0x70000, scoped, tag = 'input window, operand 16']
    #allocation21 [shape = 'u8[65536]{0}', space=vmem, size = 0x10000, scoped, tag = 'input window, operand 19']
    #allocation22 [shape = 'u8[32768]{0}', space=vmem, size = 0x8000, scoped, tag = 'input window, operand 21, single buffered']
    %32 = vsyncpa [#allocation6], 0
    %33 = vsyncpa [#allocation8], 0
    %34 = vsyncpa [#allocation11], 0
    %35 = vsyncpa [#allocation14], 0
    %36 = vsyncpa [#allocation17], 0
    loop: start=0, step=1, limit=4
    $region2: #{tpu_custom_call.1} parent=1 // loop_pre_header
      _
    $region3: #{tpu_custom_call.1} parent=1 // loop_header
      %s38 = sphi 0, %s42
      %p39 = scmp.ge.s32.totalorder %s38, 4
      %s46 = sphi 0, %s46
      %s48 = sphi 0, %s46
      %s49 = sphi 0, %s48
      %s63 = sphi 0, %s49
      %s67 = sphi 0, %s67
      %s69 = sphi 0, %s67
      %s70 = sphi 0, %s69
      %s84 = sphi 0, %s70
      %s88 = sphi 0, %s88
      %s90 = sphi 0, %s88
      %s91 = sphi 0, %s90
      %s105 = sphi 0, %s91
      %s109 = sphi 0, %s109
      %s111 = sphi 0, %s109
      %s112 = sphi 0, %s111
      %s126 = sphi 0, %s112
      %s130 = sphi 0, %s130
      %s132 = sphi 0, %s130
      %s133 = sphi 0, %s132
      %s147 = sphi 0, %s133
      %s151 = sphi 0, %s151
      %s153 = sphi 0, %s151
      %s154 = sphi 0, %s153
      %s168 = sphi 0, %s154
      %s172 = sphi 0, %s172
      %s174 = sphi 0, %s172
      %s175 = sphi 0, %s174
      %s189 = sphi 0, %s175
      %s193 = sphi 0, %s193
      %s195 = sphi 0, %s193
      %s196 = sphi 0, %s195
      %s210 = sphi 0, %s196
      %s214 = sphi 0, %s214
      %s216 = sphi 0, %s214
      %s217 = sphi 0, %s216
      %s231 = sphi 0, %s217
      %s235 = sphi 0, %s235
      %s237 = sphi 0, %s235
      %s238 = sphi 0, %s237
      %s252 = sphi 0, %s238
      %s256 = sphi 0, %s256
      %s258 = sphi 0, %s256
      %s259 = sphi 0, %s258
      %s273 = sphi 0, %s259
      %s277 = sphi 0, %s277
      %s279 = sphi 0, %s277
      %s280 = sphi 0, %s279
      %s294 = sphi 0, %s280
      %s298 = sphi 0, %s298
      %s300 = sphi 0, %s298
      %s301 = sphi 0, %s300
      %s315 = sphi 0, %s301
      %s319 = sphi 0, %s319
      %s321 = sphi 0, %s319
      %s322 = sphi 0, %s321
      %s336 = sphi 0, %s322
      %s342 = sphi 0, %s344
      %s345 = sphi 0, %s342
      %s346 = sphi 0, %s345
      %s362 = sphi 0, %s346
      %s368 = sphi 0, %s370
      %s371 = sphi 0, %s368
      %s372 = sphi 0, %s371
      %s388 = sphi 0, %s372
      %s394 = sphi 0, %s396
      %s397 = sphi 0, %s394
      %s398 = sphi 0, %s397
      %s414 = sphi 0, %s398
      %s420 = sphi 0, %s422
      %s423 = sphi 0, %s420
      %s424 = sphi 0, %s423
      %s440 = sphi 0, %s424
      %s446 = sphi 0, %s448
      %s449 = sphi 0, %s446
      %s450 = sphi 0, %s449
      %s466 = sphi 0, %s450
      %s472 = sphi 0, %s474
      %s475 = sphi 0, %s472
      %s476 = sphi 0, %s475
      %s492 = sphi 0, %s476
      %s498 = sphi 0, %s500
      %s501 = sphi 0, %s498
      %s502 = sphi 0, %s501
      %s518 = sphi 0, %s502
      %s522 = sphi 0, %s522
      %s524 = sphi 0, %s522
      %s525 = sphi 0, %s524
      %s539 = sphi 0, %s525
      %s543 = sphi 0, %s543
      %s545 = sphi 0, %s543
      %s546 = sphi 0, %s545
      %s560 = sphi 0, %s546
      %s564 = sphi 0, %s564
      %s566 = sphi 0, %s564
      %s567 = sphi 0, %s566
      %s581 = sphi 0, %s567
      %s585 = sphi 0, %s585
      %s587 = sphi 0, %s585
      %s588 = sphi 0, %s587
      %s602 = sphi 0, %s588
      %s606 = sphi 0, %s606
      %s608 = sphi 0, %s606
      %s609 = sphi 0, %s608
      %s623 = sphi 0, %s609
    $region4: #{tpu_custom_call.1} parent=1 // loop_header_branch
      %41 = sbr.rel (%p39) target = $region8
    $region5: #{tpu_custom_call.1} parent=1 // loop_body
      %s43 = ssub.s32 %s38, 1
      %s44 = ssub.s32 %s38, 2
      %s45 = sadd.s32 %s38, 1
      %s47 = sadd.s32 %s46, 1
      %p50 = scmp.eq.s32.totalorder %s38, 1
      %p51 = scmp.ne.s32.totalorder %s46, %s48
      %p52 = scmp.eq.s32.totalorder %s38, 0
      %p53 = por %p51, %p52
      %p54 = scmp.ne.s32.totalorder %s46, %s48
      %p55 = scmp.eq.s32.totalorder %s43, 1
      %p56 = por %p54, %p55
      %p57 = scmp.ne.s32.totalorder %s48, %s49
      %p58 = scmp.eq.s32.totalorder %s43, 0
      %p59 = por %p57, %p58
      %p60 = scmp.ne.s32.totalorder %s48, %s49
      %p61 = scmp.eq.s32.totalorder %s44, 1
      %p62 = por %p60, %p61
      %p64 = scmp.ne.s32.totalorder %s49, %s63
      %p65 = scmp.eq.s32.totalorder %s44, 0
      %p66 = por %p64, %p65
      %s68 = sadd.s32 %s67, 1
      %p71 = scmp.eq.s32.totalorder %s38, 1
      %p72 = scmp.ne.s32.totalorder %s67, %s69
      %p73 = scmp.eq.s32.totalorder %s38, 0
      %p74 = por %p72, %p73
      %p75 = scmp.ne.s32.totalorder %s67, %s69
      %p76 = scmp.eq.s32.totalorder %s43, 1
      %p77 = por %p75, %p76
      %p78 = scmp.ne.s32.totalorder %s69, %s70
      %p79 = scmp.eq.s32.totalorder %s43, 0
      %p80 = por %p78, %p79
      %p81 = scmp.ne.s32.totalorder %s69, %s70
      %p82 = scmp.eq.s32.totalorder %s44, 1
      %p83 = por %p81, %p82
      %p85 = scmp.ne.s32.totalorder %s70, %s84
      %p86 = scmp.eq.s32.totalorder %s44, 0
      %p87 = por %p85, %p86
      %s89 = sadd.s32 %s88, 1
      %p92 = scmp.eq.s32.totalorder %s38, 1
      %p93 = scmp.ne.s32.totalorder %s88, %s90
      %p94 = scmp.eq.s32.totalorder %s38, 0
      %p95 = por %p93, %p94
      %p96 = scmp.ne.s32.totalorder %s88, %s90
      %p97 = scmp.eq.s32.totalorder %s43, 1
      %p98 = por %p96, %p97
      %p99 = scmp.ne.s32.totalorder %s90, %s91
      %p100 = scmp.eq.s32.totalorder %s43, 0
      %p101 = por %p99, %p100
      %p102 = scmp.ne.s32.totalorder %s90, %s91
      %p103 = scmp.eq.s32.totalorder %s44, 1
      %p104 = por %p102, %p103
      %p106 = scmp.ne.s32.totalorder %s91, %s105
      %p107 = scmp.eq.s32.totalorder %s44, 0
      %p108 = por %p106, %p107
      %s110 = sadd.s32 %s109, 1
      %p113 = scmp.eq.s32.totalorder %s38, 1
      %p114 = scmp.ne.s32.totalorder %s109, %s111
      %p115 = scmp.eq.s32.totalorder %s38, 0
      %p116 = por %p114, %p115
      %p117 = scmp.ne.s32.totalorder %s109, %s111
      %p118 = scmp.eq.s32.totalorder %s43, 1
      %p119 = por %p117, %p118
      %p120 = scmp.ne.s32.totalorder %s111, %s112
      %p121 = scmp.eq.s32.totalorder %s43, 0
      %p122 = por %p120, %p121
      %p123 = scmp.ne.s32.totalorder %s111, %s112
      %p124 = scmp.eq.s32.totalorder %s44, 1
      %p125 = por %p123, %p124
      %p127 = scmp.ne.s32.totalorder %s112, %s126
      %p128 = scmp.eq.s32.totalorder %s44, 0
      %p129 = por %p127, %p128
      %s131 = sadd.s32 %s130, 1
      %p134 = scmp.eq.s32.totalorder %s38, 1
      %p135 = scmp.ne.s32.totalorder %s130, %s132
      %p136 = scmp.eq.s32.totalorder %s38, 0
      %p137 = por %p135, %p136
      %p138 = scmp.ne.s32.totalorder %s130, %s132
      %p139 = scmp.eq.s32.totalorder %s43, 1
      %p140 = por %p138, %p139
      %p141 = scmp.ne.s32.totalorder %s132, %s133
      %p142 = scmp.eq.s32.totalorder %s43, 0
      %p143 = por %p141, %p142
      %p144 = scmp.ne.s32.totalorder %s132, %s133
      %p145 = scmp.eq.s32.totalorder %s44, 1
      %p146 = por %p144, %p145
      %p148 = scmp.ne.s32.totalorder %s133, %s147
      %p149 = scmp.eq.s32.totalorder %s44, 0
      %p150 = por %p148, %p149
      %s152 = sadd.s32 %s151, 1
      %p155 = scmp.eq.s32.totalorder %s38, 1
      %p156 = scmp.ne.s32.totalorder %s151, %s153
      %p157 = scmp.eq.s32.totalorder %s38, 0
      %p158 = por %p156, %p157
      %p159 = scmp.ne.s32.totalorder %s151, %s153
      %p160 = scmp.eq.s32.totalorder %s43, 1
      %p161 = por %p159, %p160
      %p162 = scmp.ne.s32.totalorder %s153, %s154
      %p163 = scmp.eq.s32.totalorder %s43, 0
      %p164 = por %p162, %p163
      %p165 = scmp.ne.s32.totalorder %s153, %s154
      %p166 = scmp.eq.s32.totalorder %s44, 1
      %p167 = por %p165, %p166
      %p169 = scmp.ne.s32.totalorder %s154, %s168
      %p170 = scmp.eq.s32.totalorder %s44, 0
      %p171 = por %p169, %p170
      %s173 = sadd.s32 %s172, 1
      %p176 = scmp.eq.s32.totalorder %s38, 1
      %p177 = scmp.ne.s32.totalorder %s172, %s174
      %p178 = scmp.eq.s32.totalorder %s38, 0
      %p179 = por %p177, %p178
      %p180 = scmp.ne.s32.totalorder %s172, %s174
      %p181 = scmp.eq.s32.totalorder %s43, 1
      %p182 = por %p180, %p181
      %p183 = scmp.ne.s32.totalorder %s174, %s175
      %p184 = scmp.eq.s32.totalorder %s43, 0
      %p185 = por %p183, %p184
      %p186 = scmp.ne.s32.totalorder %s174, %s175
      %p187 = scmp.eq.s32.totalorder %s44, 1
      %p188 = por %p186, %p187
      %p190 = scmp.ne.s32.totalorder %s175, %s189
      %p191 = scmp.eq.s32.totalorder %s44, 0
      %p192 = por %p190, %p191
      %s194 = sadd.s32 %s193, 1
      %p197 = scmp.eq.s32.totalorder %s38, 1
      %p198 = scmp.ne.s32.totalorder %s193, %s195
      %p199 = scmp.eq.s32.totalorder %s38, 0
      %p200 = por %p198, %p199
      %p201 = scmp.ne.s32.totalorder %s193, %s195
      %p202 = scmp.eq.s32.totalorder %s43, 1
      %p203 = por %p201, %p202
      %p204 = scmp.ne.s32.totalorder %s195, %s196
      %p205 = scmp.eq.s32.totalorder %s43, 0
      %p206 = por %p204, %p205
      %p207 = scmp.ne.s32.totalorder %s195, %s196
      %p208 = scmp.eq.s32.totalorder %s44, 1
      %p209 = por %p207, %p208
      %p211 = scmp.ne.s32.totalorder %s196, %s210
      %p212 = scmp.eq.s32.totalorder %s44, 0
      %p213 = por %p211, %p212
      %s215 = sadd.s32 %s214, 1
      %p218 = scmp.eq.s32.totalorder %s38, 1
      %p219 = scmp.ne.s32.totalorder %s214, %s216
      %p220 = scmp.eq.s32.totalorder %s38, 0
      %p221 = por %p219, %p220
      %p222 = scmp.ne.s32.totalorder %s214, %s216
      %p223 = scmp.eq.s32.totalorder %s43, 1
      %p224 = por %p222, %p223
      %p225 = scmp.ne.s32.totalorder %s216, %s217
      %p226 = scmp.eq.s32.totalorder %s43, 0
      %p227 = por %p225, %p226
      %p228 = scmp.ne.s32.totalorder %s216, %s217
      %p229 = scmp.eq.s32.totalorder %s44, 1
      %p230 = por %p228, %p229
      %p232 = scmp.ne.s32.totalorder %s217, %s231
      %p233 = scmp.eq.s32.totalorder %s44, 0
      %p234 = por %p232, %p233
      %s236 = sadd.s32 %s235, 1
      %p239 = scmp.eq.s32.totalorder %s38, 1
      %p240 = scmp.ne.s32.totalorder %s235, %s237
      %p241 = scmp.eq.s32.totalorder %s38, 0
      %p242 = por %p240, %p241
      %p243 = scmp.ne.s32.totalorder %s235, %s237
      %p244 = scmp.eq.s32.totalorder %s43, 1
      %p245 = por %p243, %p244
      %p246 = scmp.ne.s32.totalorder %s237, %s238
      %p247 = scmp.eq.s32.totalorder %s43, 0
      %p248 = por %p246, %p247
      %p249 = scmp.ne.s32.totalorder %s237, %s238
      %p250 = scmp.eq.s32.totalorder %s44, 1
      %p251 = por %p249, %p250
      %p253 = scmp.ne.s32.totalorder %s238, %s252
      %p254 = scmp.eq.s32.totalorder %s44, 0
      %p255 = por %p253, %p254
      %s257 = sadd.s32 %s256, 1
      %p260 = scmp.eq.s32.totalorder %s38, 1
      %p261 = scmp.ne.s32.totalorder %s256, %s258
      %p262 = scmp.eq.s32.totalorder %s38, 0
      %p263 = por %p261, %p262
      %p264 = scmp.ne.s32.totalorder %s256, %s258
      %p265 = scmp.eq.s32.totalorder %s43, 1
      %p266 = por %p264, %p265
      %p267 = scmp.ne.s32.totalorder %s258, %s259
      %p268 = scmp.eq.s32.totalorder %s43, 0
      %p269 = por %p267, %p268
      %p270 = scmp.ne.s32.totalorder %s258, %s259
      %p271 = scmp.eq.s32.totalorder %s44, 1
      %p272 = por %p270, %p271
      %p274 = scmp.ne.s32.totalorder %s259, %s273
      %p275 = scmp.eq.s32.totalorder %s44, 0
      %p276 = por %p274, %p275
      %s278 = sadd.s32 %s277, 1
      %p281 = scmp.eq.s32.totalorder %s38, 1
      %p282 = scmp.ne.s32.totalorder %s277, %s279
      %p283 = scmp.eq.s32.totalorder %s38, 0
      %p284 = por %p282, %p283
      %p285 = scmp.ne.s32.totalorder %s277, %s279
      %p286 = scmp.eq.s32.totalorder %s43, 1
      %p287 = por %p285, %p286
      %p288 = scmp.ne.s32.totalorder %s279, %s280
      %p289 = scmp.eq.s32.totalorder %s43, 0
      %p290 = por %p288, %p289
      %p291 = scmp.ne.s32.totalorder %s279, %s280
      %p292 = scmp.eq.s32.totalorder %s44, 1
      %p293 = por %p291, %p292
      %p295 = scmp.ne.s32.totalorder %s280, %s294
      %p296 = scmp.eq.s32.totalorder %s44, 0
      %p297 = por %p295, %p296
      %s299 = sadd.s32 %s298, 1
      %p302 = scmp.eq.s32.totalorder %s38, 1
      %p303 = scmp.ne.s32.totalorder %s298, %s300
      %p304 = scmp.eq.s32.totalorder %s38, 0
      %p305 = por %p303, %p304
      %p306 = scmp.ne.s32.totalorder %s298, %s300
      %p307 = scmp.eq.s32.totalorder %s43, 1
      %p308 = por %p306, %p307
      %p309 = scmp.ne.s32.totalorder %s300, %s301
      %p310 = scmp.eq.s32.totalorder %s43, 0
      %p311 = por %p309, %p310
      %p312 = scmp.ne.s32.totalorder %s300, %s301
      %p313 = scmp.eq.s32.totalorder %s44, 1
      %p314 = por %p312, %p313
      %p316 = scmp.ne.s32.totalorder %s301, %s315
      %p317 = scmp.eq.s32.totalorder %s44, 0
      %p318 = por %p316, %p317
      %s320 = sadd.s32 %s319, 1
      %p323 = scmp.eq.s32.totalorder %s38, 1
      %p324 = scmp.ne.s32.totalorder %s319, %s321
      %p325 = scmp.eq.s32.totalorder %s38, 0
      %p326 = por %p324, %p325
      %p327 = scmp.ne.s32.totalorder %s319, %s321
      %p328 = scmp.eq.s32.totalorder %s43, 1
      %p329 = por %p327, %p328
      %p330 = scmp.ne.s32.totalorder %s321, %s322
      %p331 = scmp.eq.s32.totalorder %s43, 0
      %p332 = por %p330, %p331
      %p333 = scmp.ne.s32.totalorder %s321, %s322
      %p334 = scmp.eq.s32.totalorder %s44, 1
      %p335 = por %p333, %p334
      %p337 = scmp.ne.s32.totalorder %s322, %s336
      %p338 = scmp.eq.s32.totalorder %s44, 0
      %p339 = por %p337, %p338
      %s340 = ssub.s32 %s38, %s45
      %p341 = scmp.eq.s32.totalorder %s340, 0
      %s343 = sadd.s32 %s342, 1
      %s344 = scalar_select %p341, %s342, %s343
      %p347 = pneg %p341
      %p348 = scmp.eq.s32.totalorder %s38, 1
      %p349 = por %p347, %p348
      %p350 = scmp.ne.s32.totalorder %s342, %s345
      %p351 = scmp.eq.s32.totalorder %s38, 0
      %p352 = por %p350, %p351
      %p353 = scmp.ne.s32.totalorder %s342, %s345
      %p354 = scmp.eq.s32.totalorder %s43, 1
      %p355 = por %p353, %p354
      %p356 = scmp.ne.s32.totalorder %s345, %s346
      %p357 = scmp.eq.s32.totalorder %s43, 0
      %p358 = por %p356, %p357
      %p359 = scmp.ne.s32.totalorder %s345, %s346
      %p360 = scmp.eq.s32.totalorder %s44, 1
      %p361 = por %p359, %p360
      %p363 = scmp.ne.s32.totalorder %s346, %s362
      %p364 = scmp.eq.s32.totalorder %s44, 0
      %p365 = por %p363, %p364
      %s366 = ssub.s32 %s38, %s45
      %p367 = scmp.eq.s32.totalorder %s366, 0
      %s369 = sadd.s32 %s368, 1
      %s370 = scalar_select %p367, %s368, %s369
      %p373 = pneg %p367
      %p374 = scmp.eq.s32.totalorder %s38, 1
      %p375 = por %p373, %p374
      %p376 = scmp.ne.s32.totalorder %s368, %s371
      %p377 = scmp.eq.s32.totalorder %s38, 0
      %p378 = por %p376, %p377
      %p379 = scmp.ne.s32.totalorder %s368, %s371
      %p380 = scmp.eq.s32.totalorder %s43, 1
      %p381 = por %p379, %p380
      %p382 = scmp.ne.s32.totalorder %s371, %s372
      %p383 = scmp.eq.s32.totalorder %s43, 0
      %p384 = por %p382, %p383
      %p385 = scmp.ne.s32.totalorder %s371, %s372
      %p386 = scmp.eq.s32.totalorder %s44, 1
      %p387 = por %p385, %p386
      %p389 = scmp.ne.s32.totalorder %s372, %s388
      %p390 = scmp.eq.s32.totalorder %s44, 0
      %p391 = por %p389, %p390
      %s392 = ssub.s32 %s38, %s45
      %p393 = scmp.eq.s32.totalorder %s392, 0
      %s395 = sadd.s32 %s394, 1
      %s396 = scalar_select %p393, %s394, %s395
      %p399 = pneg %p393
      %p400 = scmp.eq.s32.totalorder %s38, 1
      %p401 = por %p399, %p400
      %p402 = scmp.ne.s32.totalorder %s394, %s397
      %p403 = scmp.eq.s32.totalorder %s38, 0
      %p404 = por %p402, %p403
      %p405 = scmp.ne.s32.totalorder %s394, %s397
      %p406 = scmp.eq.s32.totalorder %s43, 1
      %p407 = por %p405, %p406
      %p408 = scmp.ne.s32.totalorder %s397, %s398
      %p409 = scmp.eq.s32.totalorder %s43, 0
      %p410 = por %p408, %p409
      %p411 = scmp.ne.s32.totalorder %s397, %s398
      %p412 = scmp.eq.s32.totalorder %s44, 1
      %p413 = por %p411, %p412
      %p415 = scmp.ne.s32.totalorder %s398, %s414
      %p416 = scmp.eq.s32.totalorder %s44, 0
      %p417 = por %p415, %p416
      %s418 = ssub.s32 %s38, %s45
      %p419 = scmp.eq.s32.totalorder %s418, 0
      %s421 = sadd.s32 %s420, 1
      %s422 = scalar_select %p419, %s420, %s421
      %p425 = pneg %p419
      %p426 = scmp.eq.s32.totalorder %s38, 1
      %p427 = por %p425, %p426
      %p428 = scmp.ne.s32.totalorder %s420, %s423
      %p429 = scmp.eq.s32.totalorder %s38, 0
      %p430 = por %p428, %p429
      %p431 = scmp.ne.s32.totalorder %s420, %s423
      %p432 = scmp.eq.s32.totalorder %s43, 1
      %p433 = por %p431, %p432
      %p434 = scmp.ne.s32.totalorder %s423, %s424
      %p435 = scmp.eq.s32.totalorder %s43, 0
      %p436 = por %p434, %p435
      %p437 = scmp.ne.s32.totalorder %s423, %s424
      %p438 = scmp.eq.s32.totalorder %s44, 1
      %p439 = por %p437, %p438
      %p441 = scmp.ne.s32.totalorder %s424, %s440
      %p442 = scmp.eq.s32.totalorder %s44, 0
      %p443 = por %p441, %p442
      %s444 = ssub.s32 %s38, %s45
      %p445 = scmp.eq.s32.totalorder %s444, 0
      %s447 = sadd.s32 %s446, 1
      %s448 = scalar_select %p445, %s446, %s447
      %p451 = pneg %p445
      %p452 = scmp.eq.s32.totalorder %s38, 1
      %p453 = por %p451, %p452
      %p454 = scmp.ne.s32.totalorder %s446, %s449
      %p455 = scmp.eq.s32.totalorder %s38, 0
      %p456 = por %p454, %p455
      %p457 = scmp.ne.s32.totalorder %s446, %s449
      %p458 = scmp.eq.s32.totalorder %s43, 1
      %p459 = por %p457, %p458
      %p460 = scmp.ne.s32.totalorder %s449, %s450
      %p461 = scmp.eq.s32.totalorder %s43, 0
      %p462 = por %p460, %p461
      %p463 = scmp.ne.s32.totalorder %s449, %s450
      %p464 = scmp.eq.s32.totalorder %s44, 1
      %p465 = por %p463, %p464
      %p467 = scmp.ne.s32.totalorder %s450, %s466
      %p468 = scmp.eq.s32.totalorder %s44, 0
      %p469 = por %p467, %p468
      %s470 = ssub.s32 %s38, %s45
      %p471 = scmp.eq.s32.totalorder %s470, 0
      %s473 = sadd.s32 %s472, 1
      %s474 = scalar_select %p471, %s472, %s473
      %p477 = pneg %p471
      %p478 = scmp.eq.s32.totalorder %s38, 1
      %p479 = por %p477, %p478
      %p480 = scmp.ne.s32.totalorder %s472, %s475
      %p481 = scmp.eq.s32.totalorder %s38, 0
      %p482 = por %p480, %p481
      %p483 = scmp.ne.s32.totalorder %s472, %s475
      %p484 = scmp.eq.s32.totalorder %s43, 1
      %p485 = por %p483, %p484
      %p486 = scmp.ne.s32.totalorder %s475, %s476
      %p487 = scmp.eq.s32.totalorder %s43, 0
      %p488 = por %p486, %p487
      %p489 = scmp.ne.s32.totalorder %s475, %s476
      %p490 = scmp.eq.s32.totalorder %s44, 1
      %p491 = por %p489, %p490
      %p493 = scmp.ne.s32.totalorder %s476, %s492
      %p494 = scmp.eq.s32.totalorder %s44, 0
      %p495 = por %p493, %p494
      %s496 = ssub.s32 %s38, %s45
      %p497 = scmp.eq.s32.totalorder %s496, 0
      %s499 = sadd.s32 %s498, 1
      %s500 = scalar_select %p497, %s498, %s499
      %p503 = pneg %p497
      %p504 = scmp.eq.s32.totalorder %s38, 1
      %p505 = por %p503, %p504
      %p506 = scmp.ne.s32.totalorder %s498, %s501
      %p507 = scmp.eq.s32.totalorder %s38, 0
      %p508 = por %p506, %p507
      %p509 = scmp.ne.s32.totalorder %s498, %s501
      %p510 = scmp.eq.s32.totalorder %s43, 1
      %p511 = por %p509, %p510
      %p512 = scmp.ne.s32.totalorder %s501, %s502
      %p513 = scmp.eq.s32.totalorder %s43, 0
      %p514 = por %p512, %p513
      %p515 = scmp.ne.s32.totalorder %s501, %s502
      %p516 = scmp.eq.s32.totalorder %s44, 1
      %p517 = por %p515, %p516
      %p519 = scmp.ne.s32.totalorder %s502, %s518
      %p520 = scmp.eq.s32.totalorder %s44, 0
      %p521 = por %p519, %p520
      %s523 = sadd.s32 %s522, 1
      %p526 = scmp.eq.s32.totalorder %s38, 1
      %p527 = scmp.ne.s32.totalorder %s522, %s524
      %p528 = scmp.eq.s32.totalorder %s38, 0
      %p529 = por %p527, %p528
      %p530 = scmp.ne.s32.totalorder %s522, %s524
      %p531 = scmp.eq.s32.totalorder %s43, 1
      %p532 = por %p530, %p531
      %p533 = scmp.ne.s32.totalorder %s524, %s525
      %p534 = scmp.eq.s32.totalorder %s43, 0
      %p535 = por %p533, %p534
      %p536 = scmp.ne.s32.totalorder %s524, %s525
      %p537 = scmp.eq.s32.totalorder %s44, 1
      %p538 = por %p536, %p537
      %p540 = scmp.ne.s32.totalorder %s525, %s539
      %p541 = scmp.eq.s32.totalorder %s44, 0
      %p542 = por %p540, %p541
      %s544 = sadd.s32 %s543, 1
      %p547 = scmp.eq.s32.totalorder %s38, 1
      %p548 = scmp.ne.s32.totalorder %s543, %s545
      %p549 = scmp.eq.s32.totalorder %s38, 0
      %p550 = por %p548, %p549
      %p551 = scmp.ne.s32.totalorder %s543, %s545
      %p552 = scmp.eq.s32.totalorder %s43, 1
      %p553 = por %p551, %p552
      %p554 = scmp.ne.s32.totalorder %s545, %s546
      %p555 = scmp.eq.s32.totalorder %s43, 0
      %p556 = por %p554, %p555
      %p557 = scmp.ne.s32.totalorder %s545, %s546
      %p558 = scmp.eq.s32.totalorder %s44, 1
      %p559 = por %p557, %p558
      %p561 = scmp.ne.s32.totalorder %s546, %s560
      %p562 = scmp.eq.s32.totalorder %s44, 0
      %p563 = por %p561, %p562
      %s565 = sadd.s32 %s564, 1
      %p568 = scmp.eq.s32.totalorder %s38, 1
      %p569 = scmp.ne.s32.totalorder %s564, %s566
      %p570 = scmp.eq.s32.totalorder %s38, 0
      %p571 = por %p569, %p570
      %p572 = scmp.ne.s32.totalorder %s564, %s566
      %p573 = scmp.eq.s32.totalorder %s43, 1
      %p574 = por %p572, %p573
      %p575 = scmp.ne.s32.totalorder %s566, %s567
      %p576 = scmp.eq.s32.totalorder %s43, 0
      %p577 = por %p575, %p576
      %p578 = scmp.ne.s32.totalorder %s566, %s567
      %p579 = scmp.eq.s32.totalorder %s44, 1
      %p580 = por %p578, %p579
      %p582 = scmp.ne.s32.totalorder %s567, %s581
      %p583 = scmp.eq.s32.totalorder %s44, 0
      %p584 = por %p582, %p583
      %s586 = sadd.s32 %s585, 1
      %p589 = scmp.eq.s32.totalorder %s38, 1
      %p590 = scmp.ne.s32.totalorder %s585, %s587
      %p591 = scmp.eq.s32.totalorder %s38, 0
      %p592 = por %p590, %p591
      %p593 = scmp.ne.s32.totalorder %s585, %s587
      %p594 = scmp.eq.s32.totalorder %s43, 1
      %p595 = por %p593, %p594
      %p596 = scmp.ne.s32.totalorder %s587, %s588
      %p597 = scmp.eq.s32.totalorder %s43, 0
      %p598 = por %p596, %p597
      %p599 = scmp.ne.s32.totalorder %s587, %s588
      %p600 = scmp.eq.s32.totalorder %s44, 1
      %p601 = por %p599, %p600
      %p603 = scmp.ne.s32.totalorder %s588, %s602
      %p604 = scmp.eq.s32.totalorder %s44, 0
      %p605 = por %p603, %p604
      %s607 = sadd.s32 %s606, 1
      %p610 = scmp.eq.s32.totalorder %s38, 1
      %p611 = scmp.ne.s32.totalorder %s606, %s608
      %p612 = scmp.eq.s32.totalorder %s38, 0
      %p613 = por %p611, %p612
      %p614 = scmp.ne.s32.totalorder %s606, %s608
      %p615 = scmp.eq.s32.totalorder %s43, 1
      %p616 = por %p614, %p615
      %p617 = scmp.ne.s32.totalorder %s608, %s609
      %p618 = scmp.eq.s32.totalorder %s43, 0
      %p619 = por %p617, %p618
      %p620 = scmp.ne.s32.totalorder %s608, %s609
      %p621 = scmp.eq.s32.totalorder %s44, 1
      %p622 = por %p620, %p621
      %p624 = scmp.ne.s32.totalorder %s609, %s623
      %p625 = scmp.eq.s32.totalorder %s44, 0
      %p626 = por %p624, %p625
      %p627 = scmp.le.s32.totalorder 1, %s38
      %p628 = scmp.lt.s32.totalorder %s38, 3
      %p629 = pnand %p627, %p628
      %p630 = pneg %p629
      // Predicated region
      $region9: #{tpu_custom_call.1} parent=5 // pred_check
        _
      $region10: #{tpu_custom_call.1} parent=5 // pred_check_branch
        %632 = sbr.rel (%p629) target = $region12
      $region11: #{tpu_custom_call.1} parent=5 // pred_region
        %s633 = ssub.s32 %s38, 1
        // Predicated region
        $region13: #{tpu_custom_call.1} parent=11 // pred_check
          %p634 = pneg %p59
        $region14: #{tpu_custom_call.1} parent=11 // pred_check_branch
          %636 = sbr.rel (%p634) target = $region16
        $region15: #{tpu_custom_call.1} parent=11 // pred_region
          %s638 = ssub.s32 256, 256
          %639 = vsyncadd [#allocation6], %s638
          %s640 = sshll.u32 [#allocation5], 4
          %s641 = int_to_ptr.vmem [resolvable:$true] %s640
          %646 = dma.hbm_to_vmem [thread:$0]  %s0, 256, %s641, [#allocation6], 128, 128, 8
        $region16: #{tpu_custom_call.1} parent=11 // pred_fallthru
          _
        // Predicated region
        $region17: #{tpu_custom_call.1} parent=11 // pred_check
          %p647 = pneg %p80
        $region18: #{tpu_custom_call.1} parent=11 // pred_check_branch
          %649 = sbr.rel (%p647) target = $region20
        $region19: #{tpu_custom_call.1} parent=11 // pred_region
          %s651 = ssub.s32 512, 512
          %652 = vsyncadd [#allocation8], %s651
          %s653 = sshll.u32 [#allocation7], 4
          %s654 = int_to_ptr.vmem [resolvable:$true] %s653
          %659 = dma.hbm_to_vmem [thread:$0]  %s1, 512, %s654, [#allocation8], 128, 128, 8
        $region20: #{tpu_custom_call.1} parent=11 // pred_fallthru
          _
        // Predicated region
        $region21: #{tpu_custom_call.1} parent=11 // pred_check
          %p660 = pneg %p101
        $region22: #{tpu_custom_call.1} parent=11 // pred_check_branch
          %662 = sbr.rel (%p660) target = $region24
        $region23: #{tpu_custom_call.1} parent=11 // pred_region
          %s664 = ssub.s32 256, 256
          %665 = vsyncadd [#allocation8], %s664
          %s666 = sshll.u32 [#allocation9], 4
          %s667 = int_to_ptr.vmem [resolvable:$true] %s666
          %672 = dma.hbm_to_vmem [thread:$0]  %s2, 256, %s667, [#allocation8], 64, 64, 4
        $region24: #{tpu_custom_call.1} parent=11 // pred_fallthru
          _
        // Predicated region
        $region25: #{tpu_custom_call.1} parent=11 // pred_check
          %p673 = pneg %p122
        $region26: #{tpu_custom_call.1} parent=11 // pred_check_branch
          %675 = sbr.rel (%p673) target = $region28
        $region27: #{tpu_custom_call.1} parent=11 // pred_region
          %s677 = ssub.s32 128, 128
          %678 = vsyncadd [#allocation11], %s677
          %s679 = sshll.u32 [#allocation10], 4
          %s680 = int_to_ptr.vmem [resolvable:$true] %s679
          %685 = dma.hbm_to_vmem [thread:$0]  %s3, 128, %s680, [#allocation11], 64, 64, 4
        $region28: #{tpu_custom_call.1} parent=11 // pred_fallthru
          _
        // Predicated region
        $region29: #{tpu_custom_call.1} parent=11 // pred_check
          %p686 = pneg %p143
        $region30: #{tpu_custom_call.1} parent=11 // pred_check_branch
          %688 = sbr.rel (%p686) target = $region32
        $region31: #{tpu_custom_call.1} parent=11 // pred_region
          _
        $region32: #{tpu_custom_call.1} parent=11 // pred_fallthru
          _
        // Predicated region
        $region33: #{tpu_custom_call.1} parent=11 // pred_check
          %p689 = pneg %p164
        $region34: #{tpu_custom_call.1} parent=11 // pred_check_branch
          %691 = sbr.rel (%p689) target = $region36
        $region35: #{tpu_custom_call.1} parent=11 // pred_region
          _
        $region36: #{tpu_custom_call.1} parent=11 // pred_fallthru
          _
        // Predicated region
        $region37: #{tpu_custom_call.1} parent=11 // pred_check
          %p692 = pneg %p185
        $region38: #{tpu_custom_call.1} parent=11 // pred_check_branch
          %694 = sbr.rel (%p692) target = $region40
        $region39: #{tpu_custom_call.1} parent=11 // pred_region
          _
        $region40: #{tpu_custom_call.1} parent=11 // pred_fallthru
          _
        // Predicated region
        $region41: #{tpu_custom_call.1} parent=11 // pred_check
          %p695 = pneg %p206
        $region42: #{tpu_custom_call.1} parent=11 // pred_check_branch
          %697 = sbr.rel (%p695) target = $region44
        $region43: #{tpu_custom_call.1} parent=11 // pred_region
          _
        $region44: #{tpu_custom_call.1} parent=11 // pred_fallthru
          _
        // Predicated region
        $region45: #{tpu_custom_call.1} parent=11 // pred_check
          %p698 = pneg %p227
        $region46: #{tpu_custom_call.1} parent=11 // pred_check_branch
          %700 = sbr.rel (%p698) target = $region48
        $region47: #{tpu_custom_call.1} parent=11 // pred_region
          _
        $region48: #{tpu_custom_call.1} parent=11 // pred_fallthru
          _
        // Predicated region
        $region49: #{tpu_custom_call.1} parent=11 // pred_check
          %p701 = pneg %p248
        $region50: #{tpu_custom_call.1} parent=11 // pred_check_branch
          %703 = sbr.rel (%p701) target = $region52
        $region51: #{tpu_custom_call.1} parent=11 // pred_region
          _
        $region52: #{tpu_custom_call.1} parent=11 // pred_fallthru
          _
        // Predicated region
        $region53: #{tpu_custom_call.1} parent=11 // pred_check
          %p704 = pneg %p269
        $region54: #{tpu_custom_call.1} parent=11 // pred_check_branch
          %706 = sbr.rel (%p704) target = $region56
        $region55: #{tpu_custom_call.1} parent=11 // pred_region
          %s708 = ssub.s32 1024, 1024
          %709 = vsyncadd [#allocation11], %s708
          %s710 = sshll.u32 [#allocation12], 4
          %s711 = int_to_ptr.vmem [resolvable:$true] %s710
          %716 = dma.hbm_to_vmem [thread:$0]  %s10, 1024, %s711, [#allocation11], 64, 64, 4
        $region56: #{tpu_custom_call.1} parent=11 // pred_fallthru
          _
        // Predicated region
        $region57: #{tpu_custom_call.1} parent=11 // pred_check
          %p717 = pneg %p290
        $region58: #{tpu_custom_call.1} parent=11 // pred_check_branch
          %719 = sbr.rel (%p717) target = $region60
        $region59: #{tpu_custom_call.1} parent=11 // pred_region
          %s721 = ssub.s32 16, 16
          %722 = vsyncadd [#allocation14], %s721
          %s724 = sshll.u32 [#allocation13], 4
          %s725 = int_to_ptr.vmem [resolvable:$true] %s724
          %727 = dma.hbm_to_vmem [thread:$0]  %s11, 16, %s725, [#allocation14]
        $region60: #{tpu_custom_call.1} parent=11 // pred_fallthru
          _
        // Predicated region
        $region61: #{tpu_custom_call.1} parent=11 // pred_check
          %p728 = pneg %p311
        $region62: #{tpu_custom_call.1} parent=11 // pred_check_branch
          %730 = sbr.rel (%p728) target = $region64
        $region63: #{tpu_custom_call.1} parent=11 // pred_region
          %s732 = ssub.s32 1024, 1024
          %733 = vsyncadd [#allocation14], %s732
          %s734 = sshll.u32 [#allocation15], 4
          %s735 = int_to_ptr.vmem [resolvable:$true] %s734
          %740 = dma.hbm_to_vmem [thread:$0]  %s12, 1024, %s735, [#allocation14], 64, 64, 4
        $region64: #{tpu_custom_call.1} parent=11 // pred_fallthru
          _
        // Predicated region
        $region65: #{tpu_custom_call.1} parent=11 // pred_check
          %p741 = pneg %p332
        $region66: #{tpu_custom_call.1} parent=11 // pred_check_branch
          %743 = sbr.rel (%p741) target = $region68
        $region67: #{tpu_custom_call.1} parent=11 // pred_region
          %s745 = ssub.s32 16, 16
          %746 = vsyncadd [#allocation17], %s745
          %s748 = sshll.u32 [#allocation16], 4
          %s749 = int_to_ptr.vmem [resolvable:$true] %s748
          %751 = dma.hbm_to_vmem [thread:$0]  %s13, 16, %s749, [#allocation17]
        $region68: #{tpu_custom_call.1} parent=11 // pred_fallthru
          _
        // Predicated region
        $region69: #{tpu_custom_call.1} parent=11 // pred_check
          %p752 = pneg %p535
        $region70: #{tpu_custom_call.1} parent=11 // pred_check_branch
          %754 = sbr.rel (%p752) target = $region72
        $region71: #{tpu_custom_call.1} parent=11 // pred_region
          %s756 = ssub.s32 1024, 1024
          %757 = vsyncadd [#allocation8], %s756
          %s758 = sshll.u32 [#allocation22], 4
          %s759 = int_to_ptr.vmem [resolvable:$true] %s758
          %764 = dma.hbm_to_vmem [thread:$0]  %s21, 1024, %s759, [#allocation8], 64, 64, 4
        $region72: #{tpu_custom_call.1} parent=11 // pred_fallthru
          _
        // Predicated region
        $region73: #{tpu_custom_call.1} parent=11 // pred_check
          %p765 = pneg %p556
        $region74: #{tpu_custom_call.1} parent=11 // pred_check_branch
          %767 = sbr.rel (%p765) target = $region76
        $region75: #{tpu_custom_call.1} parent=11 // pred_region
          _
        $region76: #{tpu_custom_call.1} parent=11 // pred_fallthru
          _
        // Predicated region
        $region77: #{tpu_custom_call.1} parent=11 // pred_check
          %p768 = pneg %p577
        $region78: #{tpu_custom_call.1} parent=11 // pred_check_branch
          %770 = sbr.rel (%p768) target = $region80
        $region79: #{tpu_custom_call.1} parent=11 // pred_region
          _
        $region80: #{tpu_custom_call.1} parent=11 // pred_fallthru
          _
        // Predicated region
        $region81: #{tpu_custom_call.1} parent=11 // pred_check
          %p771 = pneg %p598
        $region82: #{tpu_custom_call.1} parent=11 // pred_check_branch
          %773 = sbr.rel (%p771) target = $region84
        $region83: #{tpu_custom_call.1} parent=11 // pred_region
          _
        $region84: #{tpu_custom_call.1} parent=11 // pred_fallthru
          _
      $region12: #{tpu_custom_call.1} parent=5 // pred_fallthru
        _
      %p774 = scmp.lt.s32.totalorder %s38, 2
      // Predicated region
      $region85: #{tpu_custom_call.1} parent=5 // pred_check
        %p775 = pneg %p774
      $region86: #{tpu_custom_call.1} parent=5 // pred_check_branch
        %777 = sbr.rel (%p775) target = $region88
      $region87: #{tpu_custom_call.1} parent=5 // pred_region
        // Predicated region
        $region89: #{tpu_custom_call.1} parent=87 // pred_check
          %p778 = pneg %p352
        $region90: #{tpu_custom_call.1} parent=87 // pred_check_branch
          %780 = sbr.rel (%p778) target = $region92
        $region91: #{tpu_custom_call.1} parent=87 // pred_region
          %s781 = sand.u32 %s38, 1
          %s782 = scalar_lea.sflag [#allocation6], %s781
          %s783 = sand.u32 %s342, 1
          %s784 = smul.addr %s783, 256
          %s785 = scalar_lea.vmem [#allocation18], %s784
          %s787 = ssub.s32 4096, 4096
          %788 = vsyncadd %s782, %s787
          %s789 = smul.addr %s38, 64
          %s790 = smul.addr %s789, 64
          %s791 = scalar_lea.hbm %s14, %s790
          %s792 = sshll.u32 %s785, 4
          %s793 = int_to_ptr.vmem [resolvable:$true] %s792
          %798 = dma.hbm_to_vmem [thread:$0]  %s791, 4096, %s793, %s782, 256, 256, 16
        $region92: #{tpu_custom_call.1} parent=87 // pred_fallthru
          _
        // Predicated region
        $region93: #{tpu_custom_call.1} parent=87 // pred_check
          %p799 = pneg %p378
        $region94: #{tpu_custom_call.1} parent=87 // pred_check_branch
          %801 = sbr.rel (%p799) target = $region96
        $region95: #{tpu_custom_call.1} parent=87 // pred_region
          %s802 = sand.u32 %s38, 1
          %s803 = scalar_lea.sflag [#allocation6], %s802
          %s804 = sand.u32 %s368, 1
          %s805 = smul.addr %s804, 4
          %s806 = scalar_lea.vmem [#allocation19], %s805
          %s808 = ssub.s32 64, 64
          %809 = vsyncadd %s803, %s808
          %s810 = smul.addr %s38, 4
          %s811 = smul.addr %s810, 16
          %s812 = scalar_lea.hbm %s15, %s811
          %s814 = sshll.u32 %s806, 4
          %s815 = int_to_ptr.vmem [resolvable:$true] %s814
          %817 = dma.hbm_to_vmem [thread:$0]  %s812, 64, %s815, %s803
        $region96: #{tpu_custom_call.1} parent=87 // pred_fallthru
          _
        // Predicated region
        $region97: #{tpu_custom_call.1} parent=87 // pred_check
          %p818 = pneg %p404
        $region98: #{tpu_custom_call.1} parent=87 // pred_check_branch
          %820 = sbr.rel (%p818) target = $region100
        $region99: #{tpu_custom_call.1} parent=87 // pred_region
          %s821 = sand.u32 %s38, 1
          %s822 = scalar_lea.sflag [#allocation6], %s821
          %s823 = sand.u32 %s394, 1
          %s824 = smul.addr %s823, 448
          %s825 = scalar_lea.vmem [#allocation20], %s824
          %s827 = ssub.s32 7168, 7168
          %828 = vsyncadd %s822, %s827
          %s829 = smul.addr %s38, 112
          %s830 = smul.addr %s829, 64
          %s831 = scalar_lea.hbm %s16, %s830
          %s832 = sshll.u32 %s825, 4
          %s833 = int_to_ptr.vmem [resolvable:$true] %s832
          %838 = dma.hbm_to_vmem [thread:$0]  %s831, 7168, %s833, %s822, 64, 64, 4
        $region100: #{tpu_custom_call.1} parent=87 // pred_fallthru
          _
        // Predicated region
        $region101: #{tpu_custom_call.1} parent=87 // pred_check
          %p839 = pneg %p430
        $region102: #{tpu_custom_call.1} parent=87 // pred_check_branch
          %841 = sbr.rel (%p839) target = $region104
        $region103: #{tpu_custom_call.1} parent=87 // pred_region
          %p842 = scmp.lt.s32.totalorder %s38, 1
          %s843 = scalar_select %p842, %s38, 1
          %s844 = smul.addr %s843, 2
          %s845 = smul.addr %s844, 8
          %s846 = scalar_lea.vmem %s17, %s845
        $region104: #{tpu_custom_call.1} parent=87 // pred_fallthru
          _
        // Predicated region
        $region105: #{tpu_custom_call.1} parent=87 // pred_check
          %p847 = pneg %p456
        $region106: #{tpu_custom_call.1} parent=87 // pred_check_branch
          %849 = sbr.rel (%p847) target = $region108
        $region107: #{tpu_custom_call.1} parent=87 // pred_region
          %p850 = scmp.lt.s32.totalorder %s38, 1
          %s851 = scalar_select %p850, %s38, 1
          %s852 = smul.addr %s851, 16
          %s853 = smul.addr %s852, 4
          %s854 = scalar_lea.vmem %s18, %s853
        $region108: #{tpu_custom_call.1} parent=87 // pred_fallthru
          _
        // Predicated region
        $region109: #{tpu_custom_call.1} parent=87 // pred_check
          %p855 = pneg %p482
        $region110: #{tpu_custom_call.1} parent=87 // pred_check_branch
          %857 = sbr.rel (%p855) target = $region112
        $region111: #{tpu_custom_call.1} parent=87 // pred_region
          %s858 = sand.u32 %s38, 1
          %s859 = scalar_lea.sflag [#allocation6], %s858
          %s860 = sand.u32 %s472, 1
          %s861 = smul.addr %s860, 64
          %s862 = scalar_lea.vmem [#allocation21], %s861
          %s864 = ssub.s32 1024, 1024
          %865 = vsyncadd %s859, %s864
          %s866 = smul.addr %s38, 16
          %s867 = smul.addr %s866, 64
          %s868 = scalar_lea.hbm %s19, %s867
          %s869 = sshll.u32 %s862, 4
          %s870 = int_to_ptr.vmem [resolvable:$true] %s869
          %875 = dma.hbm_to_vmem [thread:$0]  %s868, 1024, %s870, %s859, 64, 64, 4
        $region112: #{tpu_custom_call.1} parent=87 // pred_fallthru
          _
        // Predicated region
        $region113: #{tpu_custom_call.1} parent=87 // pred_check
          %p876 = pneg %p508
        $region114: #{tpu_custom_call.1} parent=87 // pred_check_branch
          %878 = sbr.rel (%p876) target = $region116
        $region115: #{tpu_custom_call.1} parent=87 // pred_region
          %p879 = scmp.lt.s32.totalorder %s38, 1
          %s880 = scalar_select %p879, %s38, 1
          %s881 = smul.addr %s880, 2
          %s882 = smul.addr %s881, 4
          %s883 = scalar_lea.vmem %s20, %s882
        $region116: #{tpu_custom_call.1} parent=87 // pred_fallthru
          _
      $region88: #{tpu_custom_call.1} parent=5 // pred_fallthru
        _
      %p884 = scmp.le.s32.totalorder 1, %s38
      %p885 = scmp.lt.s32.totalorder %s38, 3
      %p886 = pnand %p884, %p885
      %p887 = pneg %p886
      // Predicated region
      $region117: #{tpu_custom_call.1} parent=5 // pred_check
        _
      $region118: #{tpu_custom_call.1} parent=5 // pred_check_branch
        %889 = sbr.rel (%p886) target = $region120
      $region119: #{tpu_custom_call.1} parent=5 // pred_region
        %s890 = ssub.s32 %s38, 1
        // Predicated region
        $region121: #{tpu_custom_call.1} parent=119 // pred_check
          %p891 = pneg %p59
        $region122: #{tpu_custom_call.1} parent=119 // pred_check_branch
          %893 = sbr.rel (%p891) target = $region124
        $region123: #{tpu_custom_call.1} parent=119 // pred_region
          %894 = dma.done [#allocation6], 256
        $region124: #{tpu_custom_call.1} parent=119 // pred_fallthru
          _
        // Predicated region
        $region125: #{tpu_custom_call.1} parent=119 // pred_check
          %p895 = pneg %p80
        $region126: #{tpu_custom_call.1} parent=119 // pred_check_branch
          %897 = sbr.rel (%p895) target = $region128
        $region127: #{tpu_custom_call.1} parent=119 // pred_region
          %898 = dma.done [#allocation8], 512
        $region128: #{tpu_custom_call.1} parent=119 // pred_fallthru
          _
        // Predicated region
        $region129: #{tpu_custom_call.1} parent=119 // pred_check
          %p899 = pneg %p101
        $region130: #{tpu_custom_call.1} parent=119 // pred_check_branch
          %901 = sbr.rel (%p899) target = $region132
        $region131: #{tpu_custom_call.1} parent=119 // pred_region
          %902 = dma.done [#allocation8], 256
        $region132: #{tpu_custom_call.1} parent=119 // pred_fallthru
          _
        // Predicated region
        $region133: #{tpu_custom_call.1} parent=119 // pred_check
          %p903 = pneg %p122
        $region134: #{tpu_custom_call.1} parent=119 // pred_check_branch
          %905 = sbr.rel (%p903) target = $region136
        $region135: #{tpu_custom_call.1} parent=119 // pred_region
          %906 = dma.done [#allocation11], 128
        $region136: #{tpu_custom_call.1} parent=119 // pred_fallthru
          _
        // Predicated region
        $region137: #{tpu_custom_call.1} parent=119 // pred_check
          %p907 = pneg %p269
        $region138: #{tpu_custom_call.1} parent=119 // pred_check_branch
          %909 = sbr.rel (%p907) target = $region140
        $region139: #{tpu_custom_call.1} parent=119 // pred_region
          %910 = dma.done [#allocation11], 1024
        $region140: #{tpu_custom_call.1} parent=119 // pred_fallthru
          _
        // Predicated region
        $region141: #{tpu_custom_call.1} parent=119 // pred_check
          %p911 = pneg %p290
        $region142: #{tpu_custom_call.1} parent=119 // pred_check_branch
          %913 = sbr.rel (%p911) target = $region144
        $region143: #{tpu_custom_call.1} parent=119 // pred_region
          %914 = dma.done [#allocation14], 16
        $region144: #{tpu_custom_call.1} parent=119 // pred_fallthru
          _
        // Predicated region
        $region145: #{tpu_custom_call.1} parent=119 // pred_check
          %p915 = pneg %p311
        $region146: #{tpu_custom_call.1} parent=119 // pred_check_branch
          %917 = sbr.rel (%p915) target = $region148
        $region147: #{tpu_custom_call.1} parent=119 // pred_region
          %918 = dma.done [#allocation14], 1024
        $region148: #{tpu_custom_call.1} parent=119 // pred_fallthru
          _
        // Predicated region
        $region149: #{tpu_custom_call.1} parent=119 // pred_check
          %p919 = pneg %p332
        $region150: #{tpu_custom_call.1} parent=119 // pred_check_branch
          %921 = sbr.rel (%p919) target = $region152
        $region151: #{tpu_custom_call.1} parent=119 // pred_region
          %922 = dma.done [#allocation17], 16
        $region152: #{tpu_custom_call.1} parent=119 // pred_fallthru
          _
        %s923 = sand.u32 %s43, 1
        %s924 = scalar_lea.sflag [#allocation6], %s923
        %s925 = sand.u32 %s345, 1
        %s926 = smul.addr %s925, 256
        %s927 = scalar_lea.vmem [#allocation18], %s926
        // Predicated region
        $region153: #{tpu_custom_call.1} parent=119 // pred_check
          %p928 = pneg %p358
        $region154: #{tpu_custom_call.1} parent=119 // pred_check_branch
          %930 = sbr.rel (%p928) target = $region156
        $region155: #{tpu_custom_call.1} parent=119 // pred_region
          %931 = dma.done %s924, 4096
        $region156: #{tpu_custom_call.1} parent=119 // pred_fallthru
          _
        %s932 = sand.u32 %s43, 1
        %s933 = scalar_lea.sflag [#allocation6], %s932
        %s934 = sand.u32 %s371, 1
        %s935 = smul.addr %s934, 4
        %s936 = scalar_lea.vmem [#allocation19], %s935
        // Predicated region
        $region157: #{tpu_custom_call.1} parent=119 // pred_check
          %p937 = pneg %p384
        $region158: #{tpu_custom_call.1} parent=119 // pred_check_branch
          %939 = sbr.rel (%p937) target = $region160
        $region159: #{tpu_custom_call.1} parent=119 // pred_region
          %940 = dma.done %s933, 64
        $region160: #{tpu_custom_call.1} parent=119 // pred_fallthru
          _
        %s941 = sand.u32 %s43, 1
        %s942 = scalar_lea.sflag [#allocation6], %s941
        %s943 = sand.u32 %s397, 1
        %s944 = smul.addr %s943, 448
        %s945 = scalar_lea.vmem [#allocation20], %s944
        // Predicated region
        $region161: #{tpu_custom_call.1} parent=119 // pred_check
          %p946 = pneg %p410
        $region162: #{tpu_custom_call.1} parent=119 // pred_check_branch
          %948 = sbr.rel (%p946) target = $region164
        $region163: #{tpu_custom_call.1} parent=119 // pred_region
          %949 = dma.done %s942, 7168
        $region164: #{tpu_custom_call.1} parent=119 // pred_fallthru
          _
        %s950 = sand.u32 %s43, 1
        %s951 = scalar_lea.sflag [#allocation6], %s950
        %s952 = sand.u32 %s475, 1
        %s953 = smul.addr %s952, 64
        %s954 = scalar_lea.vmem [#allocation21], %s953
        // Predicated region
        $region165: #{tpu_custom_call.1} parent=119 // pred_check
          %p955 = pneg %p488
        $region166: #{tpu_custom_call.1} parent=119 // pred_check_branch
          %957 = sbr.rel (%p955) target = $region168
        $region167: #{tpu_custom_call.1} parent=119 // pred_region
          %958 = dma.done %s951, 1024
        $region168: #{tpu_custom_call.1} parent=119 // pred_fallthru
          _
        // Predicated region
        $region169: #{tpu_custom_call.1} parent=119 // pred_check
          %p959 = pneg %p535
        $region170: #{tpu_custom_call.1} parent=119 // pred_check_branch
          %961 = sbr.rel (%p959) target = $region172
        $region171: #{tpu_custom_call.1} parent=119 // pred_region
          %962 = dma.done [#allocation8], 1024
        $region172: #{tpu_custom_call.1} parent=119 // pred_fallthru
          _
        %p963 = pneg %p59
        %p964 = pneg %p56
        %p965 = pneg %p80
        %p966 = pneg %p77
        %p967 = pneg %p101
        %p968 = pneg %p98
        %p969 = pneg %p122
        %p970 = pneg %p119
        %p971 = pneg %p143
        %p972 = pneg %p140
        %p973 = pneg %p164
        %p974 = pneg %p161
        %p975 = pneg %p185
        %p976 = pneg %p182
        %p977 = pneg %p206
        %p978 = pneg %p203
        %p979 = pneg %p227
        %p980 = pneg %p224
        %p981 = pneg %p248
        %p982 = pneg %p245
        %p983 = pneg %p269
        %p984 = pneg %p266
        %p985 = pneg %p290
        %p986 = pneg %p287
        %p987 = pneg %p311
        %p988 = pneg %p308
        %p989 = pneg %p332
        %p990 = pneg %p329
        %s991 = sand.u32 %s43, 1
        %s992 = scalar_lea.sflag [#allocation6], %s991
        %s993 = sand.u32 %s345, 1
        %s994 = smul.addr %s993, 256
        %s995 = scalar_lea.vmem [#allocation18], %s994
        %p996 = pneg %p358
        %p997 = pneg %p355
        %s998 = sand.u32 %s43, 1
        %s999 = scalar_lea.sflag [#allocation6], %s998
        %s1000 = sand.u32 %s371, 1
        %s1001 = smul.addr %s1000, 4
        %s1002 = scalar_lea.vmem [#allocation19], %s1001
        %p1003 = pneg %p384
        %p1004 = pneg %p381
        %s1005 = sand.u32 %s43, 1
        %s1006 = scalar_lea.sflag [#allocation6], %s1005
        %s1007 = sand.u32 %s397, 1
        %s1008 = smul.addr %s1007, 448
        %s1009 = scalar_lea.vmem [#allocation20], %s1008
        %p1010 = pneg %p410
        %p1011 = pneg %p407
        %p1012 = scmp.lt.s32.totalorder %s43, 1
        %s1013 = scalar_select %p1012, %s43, 1
        %s1014 = smul.addr %s1013, 2
        %s1015 = smul.addr %s1014, 8
        %s1016 = scalar_lea.vmem %s17, %s1015
        %p1017 = pneg %p436
        %p1018 = pneg %p433
        %p1019 = scmp.lt.s32.totalorder %s43, 1
        %s1020 = scalar_select %p1019, %s43, 1
        %s1021 = smul.addr %s1020, 16
        %s1022 = smul.addr %s1021, 4
        %s1023 = scalar_lea.vmem %s18, %s1022
        %p1024 = pneg %p462
        %p1025 = pneg %p459
        %s1026 = sand.u32 %s43, 1
        %s1027 = scalar_lea.sflag [#allocation6], %s1026
        %s1028 = sand.u32 %s475, 1
        %s1029 = smul.addr %s1028, 64
        %s1030 = scalar_lea.vmem [#allocation21], %s1029
        %p1031 = pneg %p488
        %p1032 = pneg %p485
        %p1033 = scmp.lt.s32.totalorder %s43, 1
        %s1034 = scalar_select %p1033, %s43, 1
        %s1035 = smul.addr %s1034, 2
        %s1036 = smul.addr %s1035, 4
        %s1037 = scalar_lea.vmem %s20, %s1036
        %p1038 = pneg %p514
        %p1039 = pneg %p511
        %p1040 = pneg %p535
        %p1041 = pneg %p532
        %p1042 = pneg %p556
        %p1043 = pneg %p553
        %p1044 = pneg %p577
        %p1045 = pneg %p574
        %p1046 = pneg %p598
        %p1047 = pneg %p595
        %p1048 = pneg %p619
        %p1049 = pneg %p616
        %p1050 = scmp.lt.s32.totalorder %s43, 1
        %s1051 = scalar_select %p1050, %s43, 1
        %s1052 = smul.addr %s1051, 2
        %s1053 = smul.addr %s1052, 8
        %s1054 = scalar_lea.vmem %s17, %s1053
        %p1055 = scmp.lt.s32.totalorder %s43, 1
        %s1056 = scalar_select %p1055, %s43, 1
        %s1057 = smul.addr %s1056, 16
        %s1058 = smul.addr %s1057, 4
        %s1059 = scalar_lea.vmem %s18, %s1058
        %p1060 = scmp.lt.s32.totalorder %s43, 1
        %s1061 = scalar_select %p1060, %s43, 1
        %s1062 = smul.addr %s1061, 2
        %s1063 = smul.addr %s1062, 4
        %s1064 = scalar_lea.vmem %s20, %s1063
        %p1066 = scmp.eq.s32.totalorder %s43, 0
        // Predicated region
        $region173: #{tpu_custom_call.1} parent=119 // pred_check
          %p1067 = pneg %p1066
        $region174: #{tpu_custom_call.1} parent=119 // pred_check_branch
          %1069 = sbr.rel (%p1067) target = $region176
        $region175: #{tpu_custom_call.1} parent=119 // pred_region
          %v1070 = vld [vmem:[#allocation7] sm:$0xff]
          %v1071 = vld [vmem:[#allocation7 + $0x8] sm:$0xff]
          %v1072 = vld [vmem:[#allocation7 + $0x10] sm:$0xff]
          %v1073 = vld [vmem:[#allocation7 + $0x18] sm:$0xff]
          %v1074 = vpack.c.bf16 %v1071, %v1070
          %v1075 = vpack.c.bf16 %v1073, %v1072
          %v1076 = vld [vmem:[#allocation12] sm:$0xf]
          %v1077 = vld [vmem:[#allocation12 + $0x4] sm:$0xf]
          %v1078 = vld [vmem:[#allocation12 + $0x8] sm:$0xf]
          %v1079 = vld [vmem:[#allocation12 + $0xc] sm:$0xf]
          %v1080 = vld [vmem:[#allocation12 + $0x10] sm:$0xf]
          %v1081 = vld [vmem:[#allocation12 + $0x14] sm:$0xf]
          %v1082 = vld [vmem:[#allocation12 + $0x18] sm:$0xf]
          %v1083 = vld [vmem:[#allocation12 + $0x1c] sm:$0xf]
          %v1084 = vld [vmem:[#allocation12 + $0x20] sm:$0xf]
          %v1085 = vld [vmem:[#allocation12 + $0x24] sm:$0xf]
          %v1086 = vld [vmem:[#allocation12 + $0x28] sm:$0xf]
          %v1087 = vld [vmem:[#allocation12 + $0x2c] sm:$0xf]
          %v1088 = vld [vmem:[#allocation12 + $0x30] sm:$0xf]
          %v1089 = vld [vmem:[#allocation12 + $0x34] sm:$0xf]
          %v1090 = vld [vmem:[#allocation12 + $0x38] sm:$0xf]
          %v1091 = vld [vmem:[#allocation12 + $0x3c] sm:$0xf]
          %v1092 = vld [vmem:[#allocation13] sm:$0x1]
          %v1094 = vlaneseq
          %v1095 = vshrl.u32 %v1094, 7
          %v1096 = vsub.s32 0, %v1095
          %v1097 = vrot.slane %v1092, %v1096
          %v1115 = vunpack.c.l.b16 %v1076
          %v1116 = vunpack.c.l.b16 %v1077
          %v1117 = vunpack.c.l.b16 %v1078
          %v1118 = vunpack.c.l.b16 %v1079
          %v1119 = vunpack.c.l.b16 %v1080
          %v1120 = vunpack.c.l.b16 %v1081
          %v1121 = vunpack.c.l.b16 %v1082
          %v1122 = vunpack.c.l.b16 %v1083
          %v1123 = vunpack.c.l.b16 %v1084
          %v1124 = vunpack.c.l.b16 %v1085
          %v1125 = vunpack.c.l.b16 %v1086
          %v1126 = vunpack.c.l.b16 %v1087
          %v1127 = vunpack.c.l.b16 %v1088
          %v1128 = vunpack.c.l.b16 %v1089
          %v1129 = vunpack.c.l.b16 %v1090
          %v1130 = vunpack.c.l.b16 %v1091
          %v1131 = vpack.c.b16 %v1116, %v1115
          %v1132 = vpack.c.b16 %v1118, %v1117
          %v1133 = vpack.c.b16 %v1120, %v1119
          %v1134 = vpack.c.b16 %v1122, %v1121
          %v1135 = vpack.c.b16 %v1124, %v1123
          %v1136 = vpack.c.b16 %v1126, %v1125
          %v1137 = vpack.c.b16 %v1128, %v1127
          %v1138 = vpack.c.b16 %v1130, %v1129
          %1147 = vmatprep.subr.bf16.mxu0 0
          %1148 = vmatpush1.bf16.msra.mxu0 %v1131
          %1149 = vmatprep.subr.bf16.mxu0 0
          %1150 = vmatpush1.bf16.msra.mxu0 %v1132
          %1151 = vmatprep.subr.bf16.mxu0 0
          %1152 = vmatpush1.bf16.msra.mxu0 %v1133
          %1153 = vmatprep.subr.bf16.mxu0 0
          %1154 = vmatpush1.bf16.msra.mxu0 %v1134
          %1155 = vmatprep.subr.bf16.mxu0 0
          %1156 = vmatpush1.bf16.msra.mxu0 %v1135
          %1157 = vmatprep.subr.bf16.mxu0 0
          %1158 = vmatpush1.bf16.msra.mxu0 %v1136
          %1159 = vmatprep.subr.bf16.mxu0 0
          %1160 = vmatpush1.bf16.msra.mxu0 %v1137
          %1161 = vmatprep.subr.bf16.mxu0 0
          %1162 = vmatpush1.bf16.msra.mxu0 %v1138
          %1163 = vmatprep.subr.bf16.mxu0 0
          %1164 = vmatpush1.bf16.msra.mxu0 0
          %1165 = vmatprep.subr.bf16.mxu0 0
          %1166 = vmatpush1.bf16.msra.mxu0 0
          %1167 = vmatprep.subr.bf16.mxu0 0
          %1168 = vmatpush1.bf16.msra.mxu0 0
          %1169 = vmatprep.subr.bf16.mxu0 0
          %1170 = vmatpush1.bf16.msra.mxu0 0
          %1171 = vmatprep.subr.bf16.mxu0 0
          %1172 = vmatpush1.bf16.msra.mxu0 0
          %1173 = vmatprep.subr.bf16.mxu0 0
          %1174 = vmatpush1.bf16.msra.mxu0 0
          %1175 = vmatprep.subr.bf16.mxu0 0
          %1176 = vmatpush1.bf16.msra.mxu0 0
          %1177 = vmatprep.subr.bf16.mxu0 0
          %1178 = vmatpush1.bf16.msra.mxu0 0
          %1179 = vmatprep.mubr.bf16.mxu0 0
          %1180 = vmatmul.mubr.bf16.gmra.mrb[0].mxu0 %v1074
          %v1181 = vpop.f32.mrb[0].mxu0
          %v1182 = vadd.f32 %v1097, %v1181
          %v1183 = vpop.f32.mrb[0].mxu0
          %v1184 = vpop.f32.mrb[0].mxu0
          %v1185 = vadd.f32 %v1097, %v1184
          %v1186 = vpop.f32.mrb[0].mxu0
          %1187 = vmatprep.mubr.bf16.mxu0 0
          %1188 = vmatmul.mubr.bf16.gmra.mrb[0].mxu0 %v1075
          %v1189 = vpop.f32.mrb[0].mxu0
          %v1190 = vadd.f32 %v1097, %v1189
          %v1191 = vpop.f32.mrb[0].mxu0
          %v1192 = vpop.f32.mrb[0].mxu0
          %v1193 = vadd.f32 %v1097, %v1192
          %v1194 = vpop.f32.mrb[0].mxu0
          %1195 = vdwg.mxu0
          %v1196 = vxor.u32 %v1182, 2147483648
          %v1197 = vxor.u32 %v1185, 2147483648
          %v1198 = vxor.u32 %v1190, 2147483648
          %v1199 = vxor.u32 %v1193, 2147483648
          %v1200 = vmul.f32 %v1196, 1.442695
          %v1201 = vpow.pop %v1200
          %v1202 = vmul.f32 %v1197, 1.442695
          %v1203 = vpow.pop %v1202
          %v1204 = vmul.f32 %v1198, 1.442695
          %v1205 = vpow.pop %v1204
          %v1206 = vmul.f32 %v1199, 1.442695
          %v1207 = vpow.pop %v1206
          %v1208 = vadd.f32 %v1201, 1.0
          %v1209 = vadd.f32 %v1203, 1.0
          %v1210 = vadd.f32 %v1205, 1.0
          %v1211 = vadd.f32 %v1207, 1.0
          %v1212 = vrcp.pop %v1208
          %v1213 = vmul.f32 1.0, %v1212
          %v1214 = vrcp.pop %v1209
          %v1215 = vmul.f32 1.0, %v1214
          %v1216 = vrcp.pop %v1210
          %v1217 = vmul.f32 1.0, %v1216
          %v1218 = vrcp.pop %v1211
          %v1219 = vmul.f32 1.0, %v1218
          %v1220 = vmul.f32 %v1182, %v1213
          %v1221 = vmul.f32 %v1185, %v1215
          %v1222 = vmul.f32 %v1190, %v1217
          %v1223 = vmul.f32 %v1193, %v1219
          %v1224 = vpack.c.bf16 %v1221, %v1220
          %v1225 = vpack.c.bf16 %v1223, %v1222
          %v1226 = vld [vmem:[#allocation15] sm:$0xf]
          %v1227 = vld [vmem:[#allocation15 + $0x4] sm:$0xf]
          %v1228 = vld [vmem:[#allocation15 + $0x8] sm:$0xf]
          %v1229 = vld [vmem:[#allocation15 + $0xc] sm:$0xf]
          %v1230 = vld [vmem:[#allocation15 + $0x10] sm:$0xf]
          %v1231 = vld [vmem:[#allocation15 + $0x14] sm:$0xf]
          %v1232 = vld [vmem:[#allocation15 + $0x18] sm:$0xf]
          %v1233 = vld [vmem:[#allocation15 + $0x1c] sm:$0xf]
          %v1234 = vld [vmem:[#allocation15 + $0x20] sm:$0xf]
          %v1235 = vld [vmem:[#allocation15 + $0x24] sm:$0xf]
          %v1236 = vld [vmem:[#allocation15 + $0x28] sm:$0xf]
          %v1237 = vld [vmem:[#allocation15 + $0x2c] sm:$0xf]
          %v1238 = vld [vmem:[#allocation15 + $0x30] sm:$0xf]
          %v1239 = vld [vmem:[#allocation15 + $0x34] sm:$0xf]
          %v1240 = vld [vmem:[#allocation15 + $0x38] sm:$0xf]
          %v1241 = vld [vmem:[#allocation15 + $0x3c] sm:$0xf]
          %v1242 = vld [vmem:[#allocation16] sm:$0x1]
          %v1244 = vlaneseq
          %v1245 = vshrl.u32 %v1244, 7
          %v1246 = vsub.s32 0, %v1245
          %v1247 = vrot.slane %v1242, %v1246
          %v1265 = vunpack.c.l.b16 %v1226
          %v1266 = vunpack.c.l.b16 %v1227
          %v1267 = vunpack.c.l.b16 %v1228
          %v1268 = vunpack.c.l.b16 %v1229
          %v1269 = vunpack.c.l.b16 %v1230
          %v1270 = vunpack.c.l.b16 %v1231
          %v1271 = vunpack.c.l.b16 %v1232
          %v1272 = vunpack.c.l.b16 %v1233
          %v1273 = vunpack.c.l.b16 %v1234
          %v1274 = vunpack.c.l.b16 %v1235
          %v1275 = vunpack.c.l.b16 %v1236
          %v1276 = vunpack.c.l.b16 %v1237
          %v1277 = vunpack.c.l.b16 %v1238
          %v1278 = vunpack.c.l.b16 %v1239
          %v1279 = vunpack.c.l.b16 %v1240
          %v1280 = vunpack.c.l.b16 %v1241
          %v1281 = vpack.c.b16 %v1266, %v1265
          %v1282 = vpack.c.b16 %v1268, %v1267
          %v1283 = vpack.c.b16 %v1270, %v1269
          %v1284 = vpack.c.b16 %v1272, %v1271
          %v1285 = vpack.c.b16 %v1274, %v1273
          %v1286 = vpack.c.b16 %v1276, %v1275
          %v1287 = vpack.c.b16 %v1278, %v1277
          %v1288 = vpack.c.b16 %v1280, %v1279
          %1297 = vmatprep.subr.bf16.mxu0 0
          %1298 = vmatpush1.bf16.msra.mxu0 %v1281
          %1299 = vmatprep.subr.bf16.mxu0 0
          %1300 = vmatpush1.bf16.msra.mxu0 %v1282
          %1301 = vmatprep.subr.bf16.mxu0 0
          %1302 = vmatpush1.bf16.msra.mxu0 %v1283
          %1303 = vmatprep.subr.bf16.mxu0 0
          %1304 = vmatpush1.bf16.msra.mxu0 %v1284
          %1305 = vmatprep.subr.bf16.mxu0 0
          %1306 = vmatpush1.bf16.msra.mxu0 %v1285
          %1307 = vmatprep.subr.bf16.mxu0 0
          %1308 = vmatpush1.bf16.msra.mxu0 %v1286
          %1309 = vmatprep.subr.bf16.mxu0 0
          %1310 = vmatpush1.bf16.msra.mxu0 %v1287
          %1311 = vmatprep.subr.bf16.mxu0 0
          %1312 = vmatpush1.bf16.msra.mxu0 %v1288
          %1313 = vmatprep.subr.bf16.mxu0 0
          %1314 = vmatpush1.bf16.msra.mxu0 0
          %1315 = vmatprep.subr.bf16.mxu0 0
          %1316 = vmatpush1.bf16.msra.mxu0 0
          %1317 = vmatprep.subr.bf16.mxu0 0
          %1318 = vmatpush1.bf16.msra.mxu0 0
          %1319 = vmatprep.subr.bf16.mxu0 0
          %1320 = vmatpush1.bf16.msra.mxu0 0
          %1321 = vmatprep.subr.bf16.mxu0 0
          %1322 = vmatpush1.bf16.msra.mxu0 0
          %1323 = vmatprep.subr.bf16.mxu0 0
          %1324 = vmatpush1.bf16.msra.mxu0 0
          %1325 = vmatprep.subr.bf16.mxu0 0
          %1326 = vmatpush1.bf16.msra.mxu0 0
          %1327 = vmatprep.subr.bf16.mxu0 0
          %1328 = vmatpush1.bf16.msra.mxu0 0
          %1329 = vmatprep.mubr.bf16.mxu0 0
          %1330 = vmatmul.mubr.bf16.gmra.mrb[0].mxu0 %v1224
          %v1331 = vpop.f32.mrb[0].mxu0
          %v1332 = vadd.f32 %v1247, %v1331
          %v1333 = vpop.f32.mrb[0].mxu0
          %v1334 = vpop.f32.mrb[0].mxu0
          %v1335 = vadd.f32 %v1247, %v1334
          %v1336 = vpop.f32.mrb[0].mxu0
          %1337 = vmatprep.mubr.bf16.mxu0 0
          %1338 = vmatmul.mubr.bf16.gmra.mrb[0].mxu0 %v1225
          %v1339 = vpop.f32.mrb[0].mxu0
          %v1340 = vadd.f32 %v1247, %v1339
          %v1341 = vpop.f32.mrb[0].mxu0
          %v1342 = vpop.f32.mrb[0].mxu0
          %v1343 = vadd.f32 %v1247, %v1342
          %v1344 = vpop.f32.mrb[0].mxu0
          %1345 = vdwg.mxu0
          %v1346 = vpack.c.bf16 %v1335, %v1332
          %v1347 = vpack.c.bf16 %v1343, %v1340
          %1348 = vst [vmem:[#allocation3] sm:$0xff] %v1346
          %1349 = vst [vmem:[#allocation3 + $0x8] sm:$0xff] %v1347
          %v1350 = vld [vmem:[#allocation5] sm:$0xff]
          %v1351 = vld [vmem:[#allocation5 + $0x8] sm:$0xff]
          %1352 = vst [vmem:[#allocation2] sm:$0xff] %v1350
          %1353 = vst [vmem:[#allocation2 + $0x8] sm:$0xff] %v1351
        $region176: #{tpu_custom_call.1} parent=119 // pred_fallthru
          _
        %v1354 = vld [vmem:[#allocation2] sm:$0xff]
        %v1355 = vld [vmem:[#allocation2 + $0x8] sm:$0xff]
        %v1356 = vpack.c.bf16 %v1355, %v1354
        %v1357 = vld [vmem:[%s4] sm:$0xf]
        %v1358 = vld [vmem:[%s4 + $0x4] sm:$0xf]
        %v1359 = vld [vmem:[%s4 + $0x8] sm:$0xf]
        %v1360 = vld [vmem:[%s4 + $0xc] sm:$0xf]
        %v1361 = vld [vmem:[%s5] sm:$0xff]
        %v1362 = vld [vmem:[%s5 + $0x8] sm:$0xff]
        %v1363 = vld [vmem:[%s5 + $0x10] sm:$0xff]
        %v1364 = vld [vmem:[%s5 + $0x18] sm:$0xff]
        %v1365 = vpack.c.bf16 %v1362, %v1361
        %v1366 = vpack.c.bf16 %v1364, %v1363
        %v1367 = vld [vmem:[#allocation3] sm:$0xff]
        %v1368 = vld [vmem:[#allocation3 + $0x8] sm:$0xff]
        %v1369 = vld [vmem:[%s1054] sm:$0xff]
        %v1370 = vld [vmem:[%s1054 + $0x8] sm:$0x3]
        %v1371 = vld [vmem:[%s927] sm:$0xff]
        %v1372 = vld [vmem:[%s927 + $0x8] sm:$0xff]
        %v1373 = vld [vmem:[%s927 + $0x10] sm:$0xff]
        %v1374 = vld [vmem:[%s927 + $0x18] sm:$0xff]
        %v1375 = vld [vmem:[%s927 + $0x20] sm:$0xff]
        %v1376 = vld [vmem:[%s927 + $0x28] sm:$0xff]
        %v1377 = vld [vmem:[%s927 + $0x30] sm:$0xff]
        %v1378 = vld [vmem:[%s927 + $0x38] sm:$0xff]
        %v1379 = vld [vmem:[%s927 + $0x40] sm:$0xff]
        %v1380 = vld [vmem:[%s927 + $0x48] sm:$0xff]
        %v1381 = vld [vmem:[%s927 + $0x50] sm:$0xff]
        %v1382 = vld [vmem:[%s927 + $0x58] sm:$0xff]
        %v1383 = vld [vmem:[%s927 + $0x60] sm:$0xff]
        %v1384 = vld [vmem:[%s927 + $0x68] sm:$0xff]
        %v1385 = vld [vmem:[%s927 + $0x70] sm:$0xff]
        %v1386 = vld [vmem:[%s927 + $0x78] sm:$0xff]
        %v1387 = vld [vmem:[%s927 + $0x80] sm:$0xff]
        %v1388 = vld [vmem:[%s927 + $0x88] sm:$0xff]
        %v1389 = vld [vmem:[%s927 + $0x90] sm:$0xff]
        %v1390 = vld [vmem:[%s927 + $0x98] sm:$0xff]
        %v1391 = vld [vmem:[%s927 + $0xa0] sm:$0xff]
        %v1392 = vld [vmem:[%s927 + $0xa8] sm:$0xff]
        %v1393 = vld [vmem:[%s927 + $0xb0] sm:$0xff]
        %v1394 = vld [vmem:[%s927 + $0xb8] sm:$0xff]
        %v1395 = vld [vmem:[%s927 + $0xc0] sm:$0xff]
        %v1396 = vld [vmem:[%s927 + $0xc8] sm:$0xff]
        %v1397 = vld [vmem:[%s927 + $0xd0] sm:$0xff]
        %v1398 = vld [vmem:[%s927 + $0xd8] sm:$0xff]
        %v1399 = vld [vmem:[%s927 + $0xe0] sm:$0xff]
        %v1400 = vld [vmem:[%s927 + $0xe8] sm:$0xff]
        %v1401 = vld [vmem:[%s927 + $0xf0] sm:$0xff]
        %v1402 = vld [vmem:[%s927 + $0xf8] sm:$0xff]
        %v1403 = vld [vmem:[%s936] sm:$0xf]
        %v1405 = vlaneseq
        %v1406 = vshrl.u32 %v1405, 7
        %v1407 = vsub.s32 0, %v1406
        %v1408 = vrot.slane %v1403, %v1407
        %v1409 = vlaneseq
        %v1410 = vshrl.u32 %v1409, 7
        %v1411 = vsub.s32 1, %v1410
        %v1412 = vrot.slane %v1403, %v1411
        %v1413 = vlaneseq
        %v1414 = vshrl.u32 %v1413, 7
        %v1415 = vsub.s32 2, %v1414
        %v1416 = vrot.slane %v1403, %v1415
        %v1417 = vlaneseq
        %v1418 = vshrl.u32 %v1417, 7
        %v1419 = vsub.s32 3, %v1418
        %v1420 = vrot.slane %v1403, %v1419
        %v1457 = vunpack.c.l.b16 %v1371
        %v1458 = vunpack.c.h.b16 %v1371
        %v1459 = vunpack.c.l.b16 %v1372
        %v1460 = vunpack.c.h.b16 %v1372
        %v1461 = vunpack.c.l.b16 %v1373
        %v1462 = vunpack.c.h.b16 %v1373
        %v1463 = vunpack.c.l.b16 %v1374
        %v1464 = vunpack.c.h.b16 %v1374
        %v1465 = vunpack.c.l.b16 %v1375
        %v1466 = vunpack.c.h.b16 %v1375
        %v1467 = vunpack.c.l.b16 %v1376
        %v1468 = vunpack.c.h.b16 %v1376
        %v1469 = vunpack.c.l.b16 %v1377
        %v1470 = vunpack.c.h.b16 %v1377
        %v1471 = vunpack.c.l.b16 %v1378
        %v1472 = vunpack.c.h.b16 %v1378
        %v1473 = vunpack.c.l.b16 %v1379
        %v1474 = vunpack.c.h.b16 %v1379
        %v1475 = vunpack.c.l.b16 %v1380
        %v1476 = vunpack.c.h.b16 %v1380
        %v1477 = vunpack.c.l.b16 %v1381
        %v1478 = vunpack.c.h.b16 %v1381
        %v1479 = vunpack.c.l.b16 %v1382
        %v1480 = vunpack.c.h.b16 %v1382
        %v1481 = vunpack.c.l.b16 %v1383
        %v1482 = vunpack.c.h.b16 %v1383
        %v1483 = vunpack.c.l.b16 %v1384
        %v1484 = vunpack.c.h.b16 %v1384
        %v1485 = vunpack.c.l.b16 %v1385
        %v1486 = vunpack.c.h.b16 %v1385
        %v1487 = vunpack.c.l.b16 %v1386
        %v1488 = vunpack.c.h.b16 %v1386
        %v1489 = vunpack.c.l.b16 %v1387
        %v1490 = vunpack.c.h.b16 %v1387
        %v1491 = vunpack.c.l.b16 %v1388
        %v1492 = vunpack.c.h.b16 %v1388
        %v1493 = vunpack.c.l.b16 %v1389
        %v1494 = vunpack.c.h.b16 %v1389
        %v1495 = vunpack.c.l.b16 %v1390
        %v1496 = vunpack.c.h.b16 %v1390
        %v1497 = vunpack.c.l.b16 %v1391
        %v1498 = vunpack.c.h.b16 %v1391
        %v1499 = vunpack.c.l.b16 %v1392
        %v1500 = vunpack.c.h.b16 %v1392
        %v1501 = vunpack.c.l.b16 %v1393
        %v1502 = vunpack.c.h.b16 %v1393
        %v1503 = vunpack.c.l.b16 %v1394
        %v1504 = vunpack.c.h.b16 %v1394
        %v1505 = vunpack.c.l.b16 %v1395
        %v1506 = vunpack.c.h.b16 %v1395
        %v1507 = vunpack.c.l.b16 %v1396
        %v1508 = vunpack.c.h.b16 %v1396
        %v1509 = vunpack.c.l.b16 %v1397
        %v1510 = vunpack.c.h.b16 %v1397
        %v1511 = vunpack.c.l.b16 %v1398
        %v1512 = vunpack.c.h.b16 %v1398
        %v1513 = vunpack.c.l.b16 %v1399
        %v1514 = vunpack.c.h.b16 %v1399
        %v1515 = vunpack.c.l.b16 %v1400
        %v1516 = vunpack.c.h.b16 %v1400
        %v1517 = vunpack.c.l.b16 %v1401
        %v1518 = vunpack.c.h.b16 %v1401
        %v1519 = vunpack.c.l.b16 %v1402
        %v1520 = vunpack.c.h.b16 %v1402
        %v1521 = vpack.c.b16 %v1461, %v1457
        %v1522 = vpack.c.b16 %v1462, %v1458
        %v1523 = vpack.c.b16 %v1463, %v1459
        %v1524 = vpack.c.b16 %v1464, %v1460
        %v1525 = vpack.c.b16 %v1469, %v1465
        %v1526 = vpack.c.b16 %v1470, %v1466
        %v1527 = vpack.c.b16 %v1471, %v1467
        %v1528 = vpack.c.b16 %v1472, %v1468
        %v1529 = vpack.c.b16 %v1477, %v1473
        %v1530 = vpack.c.b16 %v1478, %v1474
        %v1531 = vpack.c.b16 %v1479, %v1475
        %v1532 = vpack.c.b16 %v1480, %v1476
        %v1533 = vpack.c.b16 %v1485, %v1481
        %v1534 = vpack.c.b16 %v1486, %v1482
        %v1535 = vpack.c.b16 %v1487, %v1483
        %v1536 = vpack.c.b16 %v1488, %v1484
        %v1537 = vpack.c.b16 %v1493, %v1489
        %v1538 = vpack.c.b16 %v1494, %v1490
        %v1539 = vpack.c.b16 %v1495, %v1491
        %v1540 = vpack.c.b16 %v1496, %v1492
        %v1541 = vpack.c.b16 %v1501, %v1497
        %v1542 = vpack.c.b16 %v1502, %v1498
        %v1543 = vpack.c.b16 %v1503, %v1499
        %v1544 = vpack.c.b16 %v1504, %v1500
        %v1545 = vpack.c.b16 %v1509, %v1505
        %v1546 = vpack.c.b16 %v1510, %v1506
        %v1547 = vpack.c.b16 %v1511, %v1507
        %v1548 = vpack.c.b16 %v1512, %v1508
        %v1549 = vpack.c.b16 %v1517, %v1513
        %v1550 = vpack.c.b16 %v1518, %v1514
        %v1551 = vpack.c.b16 %v1519, %v1515
        %v1552 = vpack.c.b16 %v1520, %v1516
        %1585 = vmatprep.subr.bf16.mxu0 %v1522
        %1586 = vmatpush1.bf16.msra.mxu0 %v1521
        %1587 = vmatprep.subr.bf16.mxu0 %v1526
        %1588 = vmatpush1.bf16.msra.mxu0 %v1525
        %1589 = vmatprep.subr.bf16.mxu0 %v1530
        %1590 = vmatpush1.bf16.msra.mxu0 %v1529
        %1591 = vmatprep.subr.bf16.mxu0 %v1534
        %1592 = vmatpush1.bf16.msra.mxu0 %v1533
        %1593 = vmatprep.subr.bf16.mxu0 %v1538
        %1594 = vmatpush1.bf16.msra.mxu0 %v1537
        %1595 = vmatprep.subr.bf16.mxu0 %v1542
        %1596 = vmatpush1.bf16.msra.mxu0 %v1541
        %1597 = vmatprep.subr.bf16.mxu0 %v1546
        %1598 = vmatpush1.bf16.msra.mxu0 %v1545
        %1599 = vmatprep.subr.bf16.mxu0 %v1550
        %1600 = vmatpush1.bf16.msra.mxu0 %v1549
        %1601 = vmatprep.subr.bf16.mxu0 0
        %1602 = vmatpush1.bf16.msra.mxu0 0
        %1603 = vmatprep.subr.bf16.mxu0 0
        %1604 = vmatpush1.bf16.msra.mxu0 0
        %1605 = vmatprep.subr.bf16.mxu0 0
        %1606 = vmatpush1.bf16.msra.mxu0 0
        %1607 = vmatprep.subr.bf16.mxu0 0
        %1608 = vmatpush1.bf16.msra.mxu0 0
        %1609 = vmatprep.subr.bf16.mxu0 0
        %1610 = vmatpush1.bf16.msra.mxu0 0
        %1611 = vmatprep.subr.bf16.mxu0 0
        %1612 = vmatpush1.bf16.msra.mxu0 0
        %1613 = vmatprep.subr.bf16.mxu0 0
        %1614 = vmatpush1.bf16.msra.mxu0 0
        %1615 = vmatprep.subr.bf16.mxu0 0
        %1616 = vmatpush1.bf16.msra.mxu0 0
        %1617 = vmatprep.mubr.bf16.mxu0 0
        %1618 = vmatmul.mubr.bf16.gmra.mrb[0].mxu0 %v1356
        %v1619 = vpop.f32.mrb[0].mxu0
        %v1620 = vadd.f32 %v1408, %v1619
        %v1621 = vpop.f32.mrb[0].mxu0
        %v1622 = vadd.f32 %v1412, %v1621
        %v1623 = vpop.f32.mrb[0].mxu0
        %v1624 = vadd.f32 %v1408, %v1623
        %v1625 = vpop.f32.mrb[0].mxu0
        %v1626 = vadd.f32 %v1412, %v1625
        %1627 = vdwg.mxu0
        %1628 = vmatprep.subr.bf16.mxu0 %v1524
        %1629 = vmatpush1.bf16.msra.mxu0 %v1523
        %1630 = vmatprep.subr.bf16.mxu0 %v1528
        %1631 = vmatpush1.bf16.msra.mxu0 %v1527
        %1632 = vmatprep.subr.bf16.mxu0 %v1532
        %1633 = vmatpush1.bf16.msra.mxu0 %v1531
        %1634 = vmatprep.subr.bf16.mxu0 %v1536
        %1635 = vmatpush1.bf16.msra.mxu0 %v1535
        %1636 = vmatprep.subr.bf16.mxu0 %v1540
        %1637 = vmatpush1.bf16.msra.mxu0 %v1539
        %1638 = vmatprep.subr.bf16.mxu0 %v1544
        %1639 = vmatpush1.bf16.msra.mxu0 %v1543
        %1640 = vmatprep.subr.bf16.mxu0 %v1548
        %1641 = vmatpush1.bf16.msra.mxu0 %v1547
        %1642 = vmatprep.subr.bf16.mxu0 %v1552
        %1643 = vmatpush1.bf16.msra.mxu0 %v1551
        %1644 = vmatprep.subr.bf16.mxu0 0
        %1645 = vmatpush1.bf16.msra.mxu0 0
        %1646 = vmatprep.subr.bf16.mxu0 0
        %1647 = vmatpush1.bf16.msra.mxu0 0
        %1648 = vmatprep.subr.bf16.mxu0 0
        %1649 = vmatpush1.bf16.msra.mxu0 0
        %1650 = vmatprep.subr.bf16.mxu0 0
        %1651 = vmatpush1.bf16.msra.mxu0 0
        %1652 = vmatprep.subr.bf16.mxu0 0
        %1653 = vmatpush1.bf16.msra.mxu0 0
        %1654 = vmatprep.subr.bf16.mxu0 0
        %1655 = vmatpush1.bf16.msra.mxu0 0
        %1656 = vmatprep.subr.bf16.mxu0 0
        %1657 = vmatpush1.bf16.msra.mxu0 0
        %1658 = vmatprep.subr.bf16.mxu0 0
        %1659 = vmatpush1.bf16.msra.mxu0 0
        %1660 = vmatprep.mubr.bf16.mxu0 0
        %1661 = vmatmul.mubr.bf16.gmra.mrb[0].mxu0 %v1356
        %v1662 = vpop.f32.mrb[0].mxu0
        %v1663 = vadd.f32 %v1416, %v1662
        %v1664 = vpop.f32.mrb[0].mxu0
        %v1665 = vadd.f32 %v1420, %v1664
        %v1666 = vpop.f32.mrb[0].mxu0
        %v1667 = vadd.f32 %v1416, %v1666
        %v1668 = vpop.f32.mrb[0].mxu0
        %v1669 = vadd.f32 %v1420, %v1668
        %1670 = vdwg.mxu0
        %v1671 = vld [vmem:[%s1059] sm:$0xf]
        %v1672 = vld [vmem:[%s1059 + $0x4] sm:$0xf]
        %v1673 = vld [vmem:[%s1059 + $0x8] sm:$0xf]
        %v1674 = vld [vmem:[%s1059 + $0xc] sm:$0xf]
        %v1675 = vld [vmem:[%s1059 + $0x10] sm:$0xf]
        %v1676 = vld [vmem:[%s1059 + $0x14] sm:$0xf]
        %v1677 = vld [vmem:[%s1059 + $0x18] sm:$0xf]
        %v1678 = vld [vmem:[%s1059 + $0x1c] sm:$0xf]
        %v1679 = vld [vmem:[%s1059 + $0x20] sm:$0xf]
        %v1680 = vld [vmem:[%s1059 + $0x24] sm:$0xf]
        %v1681 = vld [vmem:[%s1059 + $0x28] sm:$0xf]
        %v1682 = vld [vmem:[%s1059 + $0x2c] sm:$0xf]
        %v1683 = vld [vmem:[%s1059 + $0x30] sm:$0xf]
        %v1684 = vld [vmem:[%s1059 + $0x34] sm:$0xf]
        %v1685 = vld [vmem:[%s1059 + $0x38] sm:$0xf]
        %v1686 = vld [vmem:[%s1059 + $0x3c] sm:$0xf]
        %v1687 = vlaneseq
        %v1688 = vshrl.u32 %v1687, 7
        %v1689 = vsub.s32 0, %v1688
        %v1690 = vrot.slane %v1369, %v1689
        %v1707 = vunpack.c.l.b16 %v1671
        %v1708 = vunpack.c.l.b16 %v1672
        %v1709 = vunpack.c.l.b16 %v1673
        %v1710 = vunpack.c.l.b16 %v1674
        %v1711 = vunpack.c.l.b16 %v1675
        %v1712 = vunpack.c.l.b16 %v1676
        %v1713 = vunpack.c.l.b16 %v1677
        %v1714 = vunpack.c.l.b16 %v1678
        %v1715 = vunpack.c.l.b16 %v1679
        %v1716 = vunpack.c.l.b16 %v1680
        %v1717 = vunpack.c.l.b16 %v1681
        %v1718 = vunpack.c.l.b16 %v1682
        %v1719 = vunpack.c.l.b16 %v1683
        %v1720 = vunpack.c.l.b16 %v1684
        %v1721 = vunpack.c.l.b16 %v1685
        %v1722 = vunpack.c.l.b16 %v1686
        %v1723 = vpack.c.b16 %v1708, %v1707
        %v1724 = vpack.c.b16 %v1710, %v1709
        %v1725 = vpack.c.b16 %v1712, %v1711
        %v1726 = vpack.c.b16 %v1714, %v1713
        %v1727 = vpack.c.b16 %v1716, %v1715
        %v1728 = vpack.c.b16 %v1718, %v1717
        %v1729 = vpack.c.b16 %v1720, %v1719
        %v1730 = vpack.c.b16 %v1722, %v1721
        %1739 = vmatprep.subr.bf16.mxu0 0
        %1740 = vmatpush1.bf16.msra.mxu0 %v1723
        %1741 = vmatprep.subr.bf16.mxu0 0
        %1742 = vmatpush1.bf16.msra.mxu0 %v1724
        %1743 = vmatprep.subr.bf16.mxu0 0
        %1744 = vmatpush1.bf16.msra.mxu0 %v1725
        %1745 = vmatprep.subr.bf16.mxu0 0
        %1746 = vmatpush1.bf16.msra.mxu0 %v1726
        %1747 = vmatprep.subr.bf16.mxu0 0
        %1748 = vmatpush1.bf16.msra.mxu0 %v1727
        %1749 = vmatprep.subr.bf16.mxu0 0
        %1750 = vmatpush1.bf16.msra.mxu0 %v1728
        %1751 = vmatprep.subr.bf16.mxu0 0
        %1752 = vmatpush1.bf16.msra.mxu0 %v1729
        %1753 = vmatprep.subr.bf16.mxu0 0
        %1754 = vmatpush1.bf16.msra.mxu0 %v1730
        %1755 = vmatprep.subr.bf16.mxu0 0
        %1756 = vmatpush1.bf16.msra.mxu0 0
        %1757 = vmatprep.subr.bf16.mxu0 0
        %1758 = vmatpush1.bf16.msra.mxu0 0
        %1759 = vmatprep.subr.bf16.mxu0 0
        %1760 = vmatpush1.bf16.msra.mxu0 0
        %1761 = vmatprep.subr.bf16.mxu0 0
        %1762 = vmatpush1.bf16.msra.mxu0 0
        %1763 = vmatprep.subr.bf16.mxu0 0
        %1764 = vmatpush1.bf16.msra.mxu0 0
        %1765 = vmatprep.subr.bf16.mxu0 0
        %1766 = vmatpush1.bf16.msra.mxu0 0
        %1767 = vmatprep.subr.bf16.mxu0 0
        %1768 = vmatpush1.bf16.msra.mxu0 0
        %1769 = vmatprep.subr.bf16.mxu0 0
        %1770 = vmatpush1.bf16.msra.mxu0 0
        %1771 = vmatprep.mubr.bf16.mxu0 0
        %1772 = vmatmul.mubr.bf16.gmra.mrb[0].mxu0 %v1367
        %v1773 = vpop.f32.mrb[0].mxu0
        %v1774 = vadd.f32 %v1690, %v1773
        %v1775 = vpop.f32.mrb[0].mxu0
        %v1776 = vpop.f32.mrb[0].mxu0
        %v1777 = vadd.f32 %v1690, %v1776
        %v1778 = vpop.f32.mrb[0].mxu0
        %1779 = vmatprep.mubr.bf16.mxu0 0
        %1780 = vmatmul.mubr.bf16.gmra.mrb[0].mxu0 %v1368
        %v1781 = vpop.f32.mrb[0].mxu0
        %v1782 = vadd.f32 %v1690, %v1781
        %v1783 = vpop.f32.mrb[0].mxu0
        %v1784 = vpop.f32.mrb[0].mxu0
        %v1785 = vadd.f32 %v1690, %v1784
        %v1786 = vpop.f32.mrb[0].mxu0
        %1787 = vdwg.mxu0
        %v1788 = vld [vmem:[#allocation9] sm:$0xf]
        %v1789 = vld [vmem:[#allocation9 + $0x4] sm:$0xf]
        %v1790 = vld [vmem:[#allocation9 + $0x8] sm:$0xf]
        %v1791 = vld [vmem:[#allocation9 + $0xc] sm:$0xf]
        %v1792 = vld [vmem:[%s954] sm:$0xf]
        %v1793 = vld [vmem:[%s954 + $0x4] sm:$0xf]
        %v1794 = vld [vmem:[%s954 + $0x8] sm:$0xf]
        %v1795 = vld [vmem:[%s954 + $0xc] sm:$0xf]
        %v1796 = vld [vmem:[%s954 + $0x10] sm:$0xf]
        %v1797 = vld [vmem:[%s954 + $0x14] sm:$0xf]
        %v1798 = vld [vmem:[%s954 + $0x18] sm:$0xf]
        %v1799 = vld [vmem:[%s954 + $0x1c] sm:$0xf]
        %v1800 = vld [vmem:[%s954 + $0x20] sm:$0xf]
        %v1801 = vld [vmem:[%s954 + $0x24] sm:$0xf]
        %v1802 = vld [vmem:[%s954 + $0x28] sm:$0xf]
        %v1803 = vld [vmem:[%s954 + $0x2c] sm:$0xf]
        %v1804 = vld [vmem:[%s954 + $0x30] sm:$0xf]
        %v1805 = vld [vmem:[%s954 + $0x34] sm:$0xf]
        %v1806 = vld [vmem:[%s954 + $0x38] sm:$0xf]
        %v1807 = vld [vmem:[%s954 + $0x3c] sm:$0xf]
        %v1808 = vlaneseq
        %v1809 = vshrl.u32 %v1808, 7
        %v1810 = vsub.s32 1, %v1809
        %v1811 = vrot.slane %v1369, %v1810
        %v1816 = vunpack.c.l.b16 %v1788
        %v1817 = vunpack.c.l.b16 %v1789
        %v1818 = vunpack.c.l.b16 %v1790
        %v1819 = vunpack.c.l.b16 %v1791
        %v1820 = vpack.c.b16 %v1817, %v1816
        %v1821 = vpack.c.b16 %v1819, %v1818
        %v1840 = vunpack.c.l.b16 %v1792
        %v1841 = vunpack.c.l.b16 %v1793
        %v1842 = vunpack.c.l.b16 %v1794
        %v1843 = vunpack.c.l.b16 %v1795
        %v1844 = vunpack.c.l.b16 %v1796
        %v1845 = vunpack.c.l.b16 %v1797
        %v1846 = vunpack.c.l.b16 %v1798
        %v1847 = vunpack.c.l.b16 %v1799
        %v1848 = vunpack.c.l.b16 %v1800
        %v1849 = vunpack.c.l.b16 %v1801
        %v1850 = vunpack.c.l.b16 %v1802
        %v1851 = vunpack.c.l.b16 %v1803
        %v1852 = vunpack.c.l.b16 %v1804
        %v1853 = vunpack.c.l.b16 %v1805
        %v1854 = vunpack.c.l.b16 %v1806
        %v1855 = vunpack.c.l.b16 %v1807
        %v1856 = vpack.c.b16 %v1841, %v1840
        %v1857 = vpack.c.b16 %v1843, %v1842
        %v1858 = vpack.c.b16 %v1845, %v1844
        %v1859 = vpack.c.b16 %v1847, %v1846
        %v1860 = vpack.c.b16 %v1849, %v1848
        %v1861 = vpack.c.b16 %v1851, %v1850
        %v1862 = vpack.c.b16 %v1853, %v1852
        %v1863 = vpack.c.b16 %v1855, %v1854
        %1872 = vmatprep.subr.bf16.mxu0 0
        %1873 = vmatpush1.bf16.msra.mxu0 %v1856
        %1874 = vmatprep.subr.bf16.mxu0 0
        %1875 = vmatpush1.bf16.msra.mxu0 %v1857
        %1876 = vmatprep.subr.bf16.mxu0 0
        %1877 = vmatpush1.bf16.msra.mxu0 %v1858
        %1878 = vmatprep.subr.bf16.mxu0 0
        %1879 = vmatpush1.bf16.msra.mxu0 %v1859
        %1880 = vmatprep.subr.bf16.mxu0 0
        %1881 = vmatpush1.bf16.msra.mxu0 %v1860
        %1882 = vmatprep.subr.bf16.mxu0 0
        %1883 = vmatpush1.bf16.msra.mxu0 %v1861
        %1884 = vmatprep.subr.bf16.mxu0 0
        %1885 = vmatpush1.bf16.msra.mxu0 %v1862
        %1886 = vmatprep.subr.bf16.mxu0 0
        %1887 = vmatpush1.bf16.msra.mxu0 %v1863
        %1888 = vmatprep.subr.bf16.mxu0 0
        %1889 = vmatpush1.bf16.msra.mxu0 0
        %1890 = vmatprep.subr.bf16.mxu0 0
        %1891 = vmatpush1.bf16.msra.mxu0 0
        %1892 = vmatprep.subr.bf16.mxu0 0
        %1893 = vmatpush1.bf16.msra.mxu0 0
        %1894 = vmatprep.subr.bf16.mxu0 0
        %1895 = vmatpush1.bf16.msra.mxu0 0
        %1896 = vmatprep.subr.bf16.mxu0 0
        %1897 = vmatpush1.bf16.msra.mxu0 0
        %1898 = vmatprep.subr.bf16.mxu0 0
        %1899 = vmatpush1.bf16.msra.mxu0 0
        %1900 = vmatprep.subr.bf16.mxu0 0
        %1901 = vmatpush1.bf16.msra.mxu0 0
        %1902 = vmatprep.subr.bf16.mxu0 0
        %1903 = vmatpush1.bf16.msra.mxu0 0
        %1904 = vmatprep.mubr.bf16.mxu0 0
        %1905 = vmatmul.mubr.bf16.gmra.mrb[0].mxu0 %v1820
        %v1906 = vpop.f32.mrb[0].mxu0
        %v1907 = vadd.f32 %v1811, %v1906
        %v1908 = vpop.f32.mrb[0].mxu0
        %v1909 = vpop.f32.mrb[0].mxu0
        %v1910 = vadd.f32 %v1811, %v1909
        %v1911 = vpop.f32.mrb[0].mxu0
        %1912 = vmatprep.mubr.bf16.mxu0 0
        %1913 = vmatmul.mubr.bf16.gmra.mrb[0].mxu0 %v1821
        %v1914 = vpop.f32.mrb[0].mxu0
        %v1915 = vadd.f32 %v1811, %v1914
        %v1916 = vpop.f32.mrb[0].mxu0
        %v1917 = vpop.f32.mrb[0].mxu0
        %v1918 = vadd.f32 %v1811, %v1917
        %v1919 = vpop.f32.mrb[0].mxu0
        %1920 = vdwg.mxu0
        %v1921 = vld [vmem:[#allocation10] sm:$0xf]
        %v1922 = vld [vmem:[#allocation10 + $0x4] sm:$0xf]
        %v1923 = vld [vmem:[%s1064] sm:$0xf]
        %v1924 = vld [vmem:[%s1064 + $0x4] sm:$0xf]
        %v1925 = vlaneseq
        %v1926 = vshrl.u32 %v1925, 7
        %v1927 = vsub.s32 2, %v1926
        %v1928 = vrot.slane %v1369, %v1927
        %v1931 = vunpack.c.l.b16 %v1921
        %v1932 = vunpack.c.l.b16 %v1922
        %v1933 = vpack.c.b16 %v1932, %v1931
        %v1936 = vunpack.c.l.b16 %v1923
        %v1937 = vunpack.c.l.b16 %v1924
        %v1938 = vpack.c.b16 %v1937, %v1936
        %vm1940 = vcmask 130048
        %v1942 = vsel %vm1940, %v1933, 0
        %1944 = vmatprep.subr.bf16.mxu0 0
        %1945 = vmatpush1.bf16.msra.mxu0 %v1938
        %1946 = vmatprep.subr.bf16.mxu0 0
        %1947 = vmatpush1.bf16.msra.mxu0 0
        %1948 = vmatprep.subr.bf16.mxu0 0
        %1949 = vmatpush1.bf16.msra.mxu0 0
        %1950 = vmatprep.subr.bf16.mxu0 0
        %1951 = vmatpush1.bf16.msra.mxu0 0
        %1952 = vmatprep.subr.bf16.mxu0 0
        %1953 = vmatpush1.bf16.msra.mxu0 0
        %1954 = vmatprep.subr.bf16.mxu0 0
        %1955 = vmatpush1.bf16.msra.mxu0 0
        %1956 = vmatprep.subr.bf16.mxu0 0
        %1957 = vmatpush1.bf16.msra.mxu0 0
        %1958 = vmatprep.subr.bf16.mxu0 0
        %1959 = vmatpush1.bf16.msra.mxu0 0
        %1960 = vmatprep.subr.bf16.mxu0 0
        %1961 = vmatpush1.bf16.msra.mxu0 0
        %1962 = vmatprep.subr.bf16.mxu0 0
        %1963 = vmatpush1.bf16.msra.mxu0 0
        %1964 = vmatprep.subr.bf16.mxu0 0
        %1965 = vmatpush1.bf16.msra.mxu0 0
        %1966 = vmatprep.subr.bf16.mxu0 0
        %1967 = vmatpush1.bf16.msra.mxu0 0
        %1968 = vmatprep.subr.bf16.mxu0 0
        %1969 = vmatpush1.bf16.msra.mxu0 0
        %1970 = vmatprep.subr.bf16.mxu0 0
        %1971 = vmatpush1.bf16.msra.mxu0 0
        %1972 = vmatprep.subr.bf16.mxu0 0
        %1973 = vmatpush1.bf16.msra.mxu0 0
        %1974 = vmatprep.subr.bf16.mxu0 0
        %1975 = vmatpush1.bf16.msra.mxu0 0
        %1976 = vmatprep.mubr.bf16.mxu0 0
        %1977 = vmatmul.mubr.bf16.gmra.mrb[0].mxu0 %v1942
        %v1978 = vpop.f32.mrb[0].mxu0
        %v1979 = vadd.f32 %v1928, %v1978
        %v1980 = vpop.f32.mrb[0].mxu0
        %v1981 = vpop.f32.mrb[0].mxu0
        %v1982 = vadd.f32 %v1928, %v1981
        %v1983 = vpop.f32.mrb[0].mxu0
        %1984 = vdwg.mxu0
        %v1985 = vpack.c.bf16 %v1624, %v1620
        %v1987 = vsel %vm1940, %v1365, 0
        %v1990 = vsel %vm1940, %v1366, 0
        %1992 = vmatprep.subr.bf16.mxu0 0
        %1993 = vmatpush1.bf16.msra.mxu0 %v1985
        %1994 = vmatprep.subr.bf16.mxu0 0
        %1995 = vmatpush1.bf16.msra.mxu0 0
        %1996 = vmatprep.subr.bf16.mxu0 0
        %1997 = vmatpush1.bf16.msra.mxu0 0
        %1998 = vmatprep.subr.bf16.mxu0 0
        %1999 = vmatpush1.bf16.msra.mxu0 0
        %2000 = vmatprep.subr.bf16.mxu0 0
        %2001 = vmatpush1.bf16.msra.mxu0 0
        %2002 = vmatprep.subr.bf16.mxu0 0
        %2003 = vmatpush1.bf16.msra.mxu0 0
        %2004 = vmatprep.subr.bf16.mxu0 0
        %2005 = vmatpush1.bf16.msra.mxu0 0
        %2006 = vmatprep.subr.bf16.mxu0 0
        %2007 = vmatpush1.bf16.msra.mxu0 0
        %2008 = vmatprep.subr.bf16.mxu0 0
        %2009 = vmatpush1.bf16.msra.mxu0 0
        %2010 = vmatprep.subr.bf16.mxu0 0
        %2011 = vmatpush1.bf16.msra.mxu0 0
        %2012 = vmatprep.subr.bf16.mxu0 0
        %2013 = vmatpush1.bf16.msra.mxu0 0
        %2014 = vmatprep.subr.bf16.mxu0 0
        %2015 = vmatpush1.bf16.msra.mxu0 0
        %2016 = vmatprep.subr.bf16.mxu0 0
        %2017 = vmatpush1.bf16.msra.mxu0 0
        %2018 = vmatprep.subr.bf16.mxu0 0
        %2019 = vmatpush1.bf16.msra.mxu0 0
        %2020 = vmatprep.subr.bf16.mxu0 0
        %2021 = vmatpush1.bf16.msra.mxu0 0
        %2022 = vmatprep.subr.bf16.mxu0 0
        %2023 = vmatpush1.bf16.msra.mxu0 0
        %2024 = vmatprep.mubr.bf16.mxu0 0
        %2025 = vmatmul.mubr.bf16.gmra.mrb[0].mxu0 %v1987
        %v2026 = vpop.f32.mrb[0].mxu0
        %v2027 = vadd.f32 0.0, %v2026
        %v2028 = vpop.f32.mrb[0].mxu0
        %v2029 = vpop.f32.mrb[0].mxu0
        %v2030 = vadd.f32 0.0, %v2029
        %v2031 = vpop.f32.mrb[0].mxu0
        %2032 = vmatprep.mubr.bf16.mxu0 0
        %2033 = vmatmul.mubr.bf16.gmra.mrb[0].mxu0 %v1990
        %v2034 = vpop.f32.mrb[0].mxu0
        %v2035 = vadd.f32 0.0, %v2034
        %v2036 = vpop.f32.mrb[0].mxu0
        %v2037 = vpop.f32.mrb[0].mxu0
        %v2038 = vadd.f32 0.0, %v2037
        %v2039 = vpop.f32.mrb[0].mxu0
        %2040 = vdwg.mxu0
        %v2041 = vpack.c.bf16 %v1626, %v1622
        %v2046 = vunpack.c.l.b16 %v1357
        %v2047 = vunpack.c.l.b16 %v1358
        %v2048 = vunpack.c.l.b16 %v1359
        %v2049 = vunpack.c.l.b16 %v1360
        %v2050 = vpack.c.b16 %v2047, %v2046
        %v2051 = vpack.c.b16 %v2049, %v2048
        %v2053 = vsel %vm1940, %v2050, 0
        %v2056 = vsel %vm1940, %v2051, 0
        %2058 = vmatprep.subr.bf16.mxu0 0
        %2059 = vmatpush1.bf16.msra.mxu0 %v2041
        %2060 = vmatprep.subr.bf16.mxu0 0
        %2061 = vmatpush1.bf16.msra.mxu0 0
        %2062 = vmatprep.subr.bf16.mxu0 0
        %2063 = vmatpush1.bf16.msra.mxu0 0
        %2064 = vmatprep.subr.bf16.mxu0 0
        %2065 = vmatpush1.bf16.msra.mxu0 0
        %2066 = vmatprep.subr.bf16.mxu0 0
        %2067 = vmatpush1.bf16.msra.mxu0 0
        %2068 = vmatprep.subr.bf16.mxu0 0
        %2069 = vmatpush1.bf16.msra.mxu0 0
        %2070 = vmatprep.subr.bf16.mxu0 0
        %2071 = vmatpush1.bf16.msra.mxu0 0
        %2072 = vmatprep.subr.bf16.mxu0 0
        %2073 = vmatpush1.bf16.msra.mxu0 0
        %2074 = vmatprep.subr.bf16.mxu0 0
        %2075 = vmatpush1.bf16.msra.mxu0 0
        %2076 = vmatprep.subr.bf16.mxu0 0
        %2077 = vmatpush1.bf16.msra.mxu0 0
        %2078 = vmatprep.subr.bf16.mxu0 0
        %2079 = vmatpush1.bf16.msra.mxu0 0
        %2080 = vmatprep.subr.bf16.mxu0 0
        %2081 = vmatpush1.bf16.msra.mxu0 0
        %2082 = vmatprep.subr.bf16.mxu0 0
        %2083 = vmatpush1.bf16.msra.mxu0 0
        %2084 = vmatprep.subr.bf16.mxu0 0
        %2085 = vmatpush1.bf16.msra.mxu0 0
        %2086 = vmatprep.subr.bf16.mxu0 0
        %2087 = vmatpush1.bf16.msra.mxu0 0
        %2088 = vmatprep.subr.bf16.mxu0 0
        %2089 = vmatpush1.bf16.msra.mxu0 0
        %2090 = vmatprep.mubr.bf16.mxu0 0
        %2091 = vmatmul.mubr.bf16.gmra.mrb[0].mxu0 %v2053
        %v2092 = vpop.f32.mrb[0].mxu0
        %v2093 = vadd.f32 %v1774, %v2092
        %v2094 = vpop.f32.mrb[0].mxu0
        %v2095 = vpop.f32.mrb[0].mxu0
        %v2096 = vadd.f32 %v1777, %v2095
        %v2097 = vpop.f32.mrb[0].mxu0
        %2098 = vmatprep.mubr.bf16.mxu0 0
        %2099 = vmatmul.mubr.bf16.gmra.mrb[0].mxu0 %v2056
        %v2100 = vpop.f32.mrb[0].mxu0
        %v2101 = vadd.f32 %v1782, %v2100
        %v2102 = vpop.f32.mrb[0].mxu0
        %v2103 = vpop.f32.mrb[0].mxu0
        %v2104 = vadd.f32 %v1785, %v2103
        %v2105 = vpop.f32.mrb[0].mxu0
        %2106 = vdwg.mxu0
        %v2107 = vpack.c.bf16 %v1667, %v1663
        %2108 = vmatprep.subr.bf16.mxu0 0
        %2109 = vmatpush1.bf16.msra.mxu0 %v2107
        %2110 = vmatprep.subr.bf16.mxu0 0
        %2111 = vmatpush1.bf16.msra.mxu0 0
        %2112 = vmatprep.subr.bf16.mxu0 0
        %2113 = vmatpush1.bf16.msra.mxu0 0
        %2114 = vmatprep.subr.bf16.mxu0 0
        %2115 = vmatpush1.bf16.msra.mxu0 0
        %2116 = vmatprep.subr.bf16.mxu0 0
        %2117 = vmatpush1.bf16.msra.mxu0 0
        %2118 = vmatprep.subr.bf16.mxu0 0
        %2119 = vmatpush1.bf16.msra.mxu0 0
        %2120 = vmatprep.subr.bf16.mxu0 0
        %2121 = vmatpush1.bf16.msra.mxu0 0
        %2122 = vmatprep.subr.bf16.mxu0 0
        %2123 = vmatpush1.bf16.msra.mxu0 0
        %2124 = vmatprep.subr.bf16.mxu0 0
        %2125 = vmatpush1.bf16.msra.mxu0 0
        %2126 = vmatprep.subr.bf16.mxu0 0
        %2127 = vmatpush1.bf16.msra.mxu0 0
        %2128 = vmatprep.subr.bf16.mxu0 0
        %2129 = vmatpush1.bf16.msra.mxu0 0
        %2130 = vmatprep.subr.bf16.mxu0 0
        %2131 = vmatpush1.bf16.msra.mxu0 0
        %2132 = vmatprep.subr.bf16.mxu0 0
        %2133 = vmatpush1.bf16.msra.mxu0 0
        %2134 = vmatprep.subr.bf16.mxu0 0
        %2135 = vmatpush1.bf16.msra.mxu0 0
        %2136 = vmatprep.subr.bf16.mxu0 0
        %2137 = vmatpush1.bf16.msra.mxu0 0
        %2138 = vmatprep.subr.bf16.mxu0 0
        %2139 = vmatpush1.bf16.msra.mxu0 0
        %2140 = vmatprep.mubr.bf16.mxu0 0
        %2141 = vmatmul.mubr.bf16.gmra.mrb[0].mxu0 %v2053
        %v2142 = vpop.f32.mrb[0].mxu0
        %v2143 = vadd.f32 %v1774, %v2142
        %v2144 = vpop.f32.mrb[0].mxu0
        %v2145 = vpop.f32.mrb[0].mxu0
        %v2146 = vadd.f32 %v1777, %v2145
        %v2147 = vpop.f32.mrb[0].mxu0
        %2148 = vmatprep.mubr.bf16.mxu0 0
        %2149 = vmatmul.mubr.bf16.gmra.mrb[0].mxu0 %v2056
        %v2150 = vpop.f32.mrb[0].mxu0
        %v2151 = vadd.f32 %v1782, %v2150
        %v2152 = vpop.f32.mrb[0].mxu0
        %v2153 = vpop.f32.mrb[0].mxu0
        %v2154 = vadd.f32 %v1785, %v2153
        %v2155 = vpop.f32.mrb[0].mxu0
        %2156 = vdwg.mxu0
        %v2157 = vmul.f32 %v2143, %v1907
        %v2158 = vmul.f32 %v2146, %v1910
        %v2159 = vmul.f32 %v2151, %v1915
        %v2160 = vmul.f32 %v2154, %v1918
        %v2161 = vmul.f32 %v2027, %v2093
        %v2162 = vmul.f32 %v2030, %v2096
        %v2163 = vmul.f32 %v2035, %v2101
        %v2164 = vmul.f32 %v2038, %v2104
        %v2165 = vld [vmem:[%s9] sm:$0xff]
        %v2166 = vld [vmem:[%s9 + $0x8] sm:$0xff]
        %v2167 = vld [vmem:[%s9 + $0x10] sm:$0xff]
        %v2168 = vld [vmem:[%s9 + $0x18] sm:$0xff]
        %v2169 = vld [vmem:[%s9 + $0x20] sm:$0xff]
        %v2170 = vld [vmem:[%s9 + $0x28] sm:$0xff]
        %v2171 = vld [vmem:[%s9 + $0x30] sm:$0xff]
        %v2172 = vld [vmem:[%s9 + $0x38] sm:$0xff]
        %v2173 = vld [vmem:[%s9 + $0x40] sm:$0xff]
        %v2174 = vld [vmem:[%s9 + $0x48] sm:$0xff]
        %v2175 = vld [vmem:[%s9 + $0x50] sm:$0xff]
        %v2176 = vld [vmem:[%s9 + $0x58] sm:$0xff]
        %v2177 = vld [vmem:[%s9 + $0x60] sm:$0xff]
        %v2178 = vld [vmem:[%s9 + $0x68] sm:$0xff]
        %v2179 = vld [vmem:[%s9 + $0x70] sm:$0xff]
        %v2180 = vld [vmem:[%s9 + $0x78] sm:$0xff]
        %2181 = vmatprep.subr.mxu0 0.0
        %2182 = vmatpush1.msra.mxu0 %v2165
        %2183 = vmatprep.subr.mxu0 0.0
        %2184 = vmatpush1.msra.mxu0 %v2166
        %2185 = vmatprep.subr.mxu0 0.0
        %2186 = vmatpush1.msra.mxu0 %v2167
        %2187 = vmatprep.subr.mxu0 0.0
        %2188 = vmatpush1.msra.mxu0 %v2168
        %2189 = vmatprep.subr.mxu0 0.0
        %2190 = vmatpush1.msra.mxu0 %v2169
        %2191 = vmatprep.subr.mxu0 0.0
        %2192 = vmatpush1.msra.mxu0 %v2170
        %2193 = vmatprep.subr.mxu0 0.0
        %2194 = vmatpush1.msra.mxu0 %v2171
        %2195 = vmatprep.subr.mxu0 0.0
        %2196 = vmatpush1.msra.mxu0 %v2172
        %2197 = vmatprep.subr.mxu0 0.0
        %2198 = vmatpush1.msra.mxu0 %v2173
        %2199 = vmatprep.subr.mxu0 0.0
        %2200 = vmatpush1.msra.mxu0 %v2174
        %2201 = vmatprep.subr.mxu0 0.0
        %2202 = vmatpush1.msra.mxu0 %v2175
        %2203 = vmatprep.subr.mxu0 0.0
        %2204 = vmatpush1.msra.mxu0 %v2176
        %2205 = vmatprep.subr.mxu0 0.0
        %2206 = vmatpush1.msra.mxu0 %v2177
        %2207 = vmatprep.subr.mxu0 0.0
        %2208 = vmatpush1.msra.mxu0 %v2178
        %2209 = vmatprep.subr.mxu0 0.0
        %2210 = vmatpush1.msra.mxu0 %v2179
        %2211 = vmatprep.subr.mxu0 0.0
        %2212 = vmatpush1.msra.mxu0 %v2180
        %2213 = vmatprep.subr.mxu0 0.0
        %2214 = vmatpush1.msra.mxu0 0.0
        %2215 = vmatprep.subr.mxu0 0.0
        %2216 = vmatpush1.msra.mxu0 0.0
        %2217 = vmatprep.subr.mxu0 0.0
        %2218 = vmatpush1.msra.mxu0 0.0
        %2219 = vmatprep.subr.mxu0 0.0
        %2220 = vmatpush1.msra.mxu0 0.0
        %2221 = vmatprep.subr.mxu0 0.0
        %2222 = vmatpush1.msra.mxu0 0.0
        %2223 = vmatprep.subr.mxu0 0.0
        %2224 = vmatpush1.msra.mxu0 0.0
        %2225 = vmatprep.subr.mxu0 0.0
        %2226 = vmatpush1.msra.mxu0 0.0
        %2227 = vmatprep.subr.mxu0 0.0
        %2228 = vmatpush1.msra.mxu0 0.0
        %2229 = vmatprep.subr.mxu0 0.0
        %2230 = vmatpush1.msra.mxu0 0.0
        %2231 = vmatprep.subr.mxu0 0.0
        %2232 = vmatpush1.msra.mxu0 0.0
        %2233 = vmatprep.subr.mxu0 0.0
        %2234 = vmatpush1.msra.mxu0 0.0
        %2235 = vmatprep.subr.mxu0 0.0
        %2236 = vmatpush1.msra.mxu0 0.0
        %2237 = vmatprep.subr.mxu0 0.0
        %2238 = vmatpush1.msra.mxu0 0.0
        %2239 = vmatprep.subr.mxu0 0.0
        %2240 = vmatpush1.msra.mxu0 0.0
        %2241 = vmatprep.subr.mxu0 0.0
        %2242 = vmatpush1.msra.mxu0 0.0
        %2243 = vmatprep.subr.mxu0 0.0
        %2244 = vmatpush1.msra.mxu0 0.0
        %2245 = vmatprep.mubr.f32.mxu0 0.0
        %2246 = vmatmul.mubr.f32.gmra.mrb[0].mxu0 %v2161
        %v2247 = vpop.f32.mrb[0].mxu0
        %v2248 = vadd.f32 0.0, %v2247
        %v2249 = vpop.f32.mrb[0].mxu0
        %2250 = vmatprep.mubr.f32.mxu0 0.0
        %2251 = vmatmul.mubr.f32.gmra.mrb[0].mxu0 %v2162
        %v2252 = vpop.f32.mrb[0].mxu0
        %v2253 = vadd.f32 0.0, %v2252
        %v2254 = vpop.f32.mrb[0].mxu0
        %2255 = vmatprep.mubr.f32.mxu0 0.0
        %2256 = vmatmul.mubr.f32.gmra.mrb[0].mxu0 %v2163
        %v2257 = vpop.f32.mrb[0].mxu0
        %v2258 = vadd.f32 0.0, %v2257
        %v2259 = vpop.f32.mrb[0].mxu0
        %2260 = vmatprep.mubr.f32.mxu0 0.0
        %2261 = vmatmul.mubr.f32.gmra.mrb[0].mxu0 %v2164
        %v2262 = vpop.f32.mrb[0].mxu0
        %v2263 = vadd.f32 0.0, %v2262
        %v2264 = vpop.f32.mrb[0].mxu0
        %2265 = vdwg.mxu0
        %v2266 = vlaneseq
        %v2267 = vshrl.u32 %v2266, 7
        %v2268 = vsub.s32 0, %v2267
        %v2269 = vrot.slane %v1361, %v2268
        %2271 = vbcast.lane.b32.xlu0 %v2269, 256
        %v2272 = vpop.permute.xlu0 %2271
        %s2274 = sor.u32 256, 8
        %2275 = vbcast.lane.b32.xlu0 %v2269, %s2274
        %v2276 = vpop.permute.xlu0 %2275
        %v2277 = vlaneseq
        %v2278 = vshrl.u32 %v2277, 7
        %v2279 = vsub.s32 1, %v2278
        %v2280 = vrot.slane %v1361, %v2279
        %2282 = vbcast.lane.b32.xlu0 %v2280, 256
        %v2283 = vpop.permute.xlu0 %2282
        %s2285 = sor.u32 256, 8
        %2286 = vbcast.lane.b32.xlu0 %v2280, %s2285
        %v2287 = vpop.permute.xlu0 %2286
        %v2288 = vlaneseq
        %v2289 = vshrl.u32 %v2288, 7
        %v2290 = vsub.s32 2, %v2289
        %v2291 = vrot.slane %v1361, %v2290
        %2293 = vbcast.lane.b32.xlu0 %v2291, 256
        %v2294 = vpop.permute.xlu0 %2293
        %s2296 = sor.u32 256, 8
        %2297 = vbcast.lane.b32.xlu0 %v2291, %s2296
        %v2298 = vpop.permute.xlu0 %2297
        %v2299 = vlaneseq
        %v2300 = vshrl.u32 %v2299, 7
        %v2301 = vsub.s32 3, %v2300
        %v2302 = vrot.slane %v1361, %v2301
        %2304 = vbcast.lane.b32.xlu0 %v2302, 256
        %v2305 = vpop.permute.xlu0 %2304
        %s2307 = sor.u32 256, 8
        %2308 = vbcast.lane.b32.xlu0 %v2302, %s2307
        %v2309 = vpop.permute.xlu0 %2308
        %v2310 = vlaneseq
        %v2311 = vshrl.u32 %v2310, 7
        %v2312 = vsub.s32 4, %v2311
        %v2313 = vrot.slane %v1361, %v2312
        %2315 = vbcast.lane.b32.xlu0 %v2313, 256
        %v2316 = vpop.permute.xlu0 %2315
        %s2318 = sor.u32 256, 8
        %2319 = vbcast.lane.b32.xlu0 %v2313, %s2318
        %v2320 = vpop.permute.xlu0 %2319
        %v2321 = vlaneseq
        %v2322 = vshrl.u32 %v2321, 7
        %v2323 = vsub.s32 5, %v2322
        %v2324 = vrot.slane %v1361, %v2323
        %2326 = vbcast.lane.b32.xlu0 %v2324, 256
        %v2327 = vpop.permute.xlu0 %2326
        %s2329 = sor.u32 256, 8
        %2330 = vbcast.lane.b32.xlu0 %v2324, %s2329
        %v2331 = vpop.permute.xlu0 %2330
        %v2332 = vlaneseq
        %v2333 = vshrl.u32 %v2332, 7
        %v2334 = vsub.s32 6, %v2333
        %v2335 = vrot.slane %v1361, %v2334
        %2337 = vbcast.lane.b32.xlu0 %v2335, 256
        %v2338 = vpop.permute.xlu0 %2337
        %s2340 = sor.u32 256, 8
        %2341 = vbcast.lane.b32.xlu0 %v2335, %s2340
        %v2342 = vpop.permute.xlu0 %2341
        %v2343 = vlaneseq
        %v2344 = vshrl.u32 %v2343, 7
        %v2345 = vsub.s32 7, %v2344
        %v2346 = vrot.slane %v1361, %v2345
        %2348 = vbcast.lane.b32.xlu0 %v2346, 256
        %v2349 = vpop.permute.xlu0 %2348
        %s2351 = sor.u32 256, 8
        %2352 = vbcast.lane.b32.xlu0 %v2346, %s2351
        %v2353 = vpop.permute.xlu0 %2352
        %v2354 = vlaneseq
        %v2355 = vshrl.u32 %v2354, 7
        %v2356 = vsub.s32 0, %v2355
        %v2357 = vrot.slane %v1362, %v2356
        %2359 = vbcast.lane.b32.xlu0 %v2357, 256
        %v2360 = vpop.permute.xlu0 %2359
        %s2362 = sor.u32 256, 8
        %2363 = vbcast.lane.b32.xlu0 %v2357, %s2362
        %v2364 = vpop.permute.xlu0 %2363
        %v2365 = vlaneseq
        %v2366 = vshrl.u32 %v2365, 7
        %v2367 = vsub.s32 1, %v2366
        %v2368 = vrot.slane %v1362, %v2367
        %2370 = vbcast.lane.b32.xlu0 %v2368, 256
        %v2371 = vpop.permute.xlu0 %2370
        %s2373 = sor.u32 256, 8
        %2374 = vbcast.lane.b32.xlu0 %v2368, %s2373
        %v2375 = vpop.permute.xlu0 %2374
        %v2376 = vlaneseq
        %v2377 = vshrl.u32 %v2376, 7
        %v2378 = vsub.s32 2, %v2377
        %v2379 = vrot.slane %v1362, %v2378
        %2381 = vbcast.lane.b32.xlu0 %v2379, 256
        %v2382 = vpop.permute.xlu0 %2381
        %s2384 = sor.u32 256, 8
        %2385 = vbcast.lane.b32.xlu0 %v2379, %s2384
        %v2386 = vpop.permute.xlu0 %2385
        %v2387 = vlaneseq
        %v2388 = vshrl.u32 %v2387, 7
        %v2389 = vsub.s32 3, %v2388
        %v2390 = vrot.slane %v1362, %v2389
        %2392 = vbcast.lane.b32.xlu0 %v2390, 256
        %v2393 = vpop.permute.xlu0 %2392
        %s2395 = sor.u32 256, 8
        %2396 = vbcast.lane.b32.xlu0 %v2390, %s2395
        %v2397 = vpop.permute.xlu0 %2396
        %v2398 = vlaneseq
        %v2399 = vshrl.u32 %v2398, 7
        %v2400 = vsub.s32 4, %v2399
        %v2401 = vrot.slane %v1362, %v2400
        %2403 = vbcast.lane.b32.xlu0 %v2401, 256
        %v2404 = vpop.permute.xlu0 %2403
        %s2406 = sor.u32 256, 8
        %2407 = vbcast.lane.b32.xlu0 %v2401, %s2406
        %v2408 = vpop.permute.xlu0 %2407
        %v2409 = vlaneseq
        %v2410 = vshrl.u32 %v2409, 7
        %v2411 = vsub.s32 5, %v2410
        %v2412 = vrot.slane %v1362, %v2411
        %2414 = vbcast.lane.b32.xlu0 %v2412, 256
        %v2415 = vpop.permute.xlu0 %2414
        %s2417 = sor.u32 256, 8
        %2418 = vbcast.lane.b32.xlu0 %v2412, %s2417
        %v2419 = vpop.permute.xlu0 %2418
        %v2420 = vlaneseq
        %v2421 = vshrl.u32 %v2420, 7
        %v2422 = vsub.s32 6, %v2421
        %v2423 = vrot.slane %v1362, %v2422
        %2425 = vbcast.lane.b32.xlu0 %v2423, 256
        %v2426 = vpop.permute.xlu0 %2425
        %s2428 = sor.u32 256, 8
        %2429 = vbcast.lane.b32.xlu0 %v2423, %s2428
        %v2430 = vpop.permute.xlu0 %2429
        %v2431 = vlaneseq
        %v2432 = vshrl.u32 %v2431, 7
        %v2433 = vsub.s32 7, %v2432
        %v2434 = vrot.slane %v1362, %v2433
        %2436 = vbcast.lane.b32.xlu0 %v2434, 256
        %v2437 = vpop.permute.xlu0 %2436
        %s2439 = sor.u32 256, 8
        %2440 = vbcast.lane.b32.xlu0 %v2434, %s2439
        %v2441 = vpop.permute.xlu0 %2440
        %v2442 = vlaneseq
        %v2443 = vshrl.u32 %v2442, 7
        %v2444 = vsub.s32 0, %v2443
        %v2445 = vrot.slane %v1363, %v2444
        %2447 = vbcast.lane.b32.xlu0 %v2445, 256
        %v2448 = vpop.permute.xlu0 %2447
        %s2450 = sor.u32 256, 8
        %2451 = vbcast.lane.b32.xlu0 %v2445, %s2450
        %v2452 = vpop.permute.xlu0 %2451
        %v2453 = vlaneseq
        %v2454 = vshrl.u32 %v2453, 7
        %v2455 = vsub.s32 1, %v2454
        %v2456 = vrot.slane %v1363, %v2455
        %2458 = vbcast.lane.b32.xlu0 %v2456, 256
        %v2459 = vpop.permute.xlu0 %2458
        %s2461 = sor.u32 256, 8
        %2462 = vbcast.lane.b32.xlu0 %v2456, %s2461
        %v2463 = vpop.permute.xlu0 %2462
        %v2464 = vlaneseq
        %v2465 = vshrl.u32 %v2464, 7
        %v2466 = vsub.s32 2, %v2465
        %v2467 = vrot.slane %v1363, %v2466
        %2469 = vbcast.lane.b32.xlu0 %v2467, 256
        %v2470 = vpop.permute.xlu0 %2469
        %s2472 = sor.u32 256, 8
        %2473 = vbcast.lane.b32.xlu0 %v2467, %s2472
        %v2474 = vpop.permute.xlu0 %2473
        %v2475 = vlaneseq
        %v2476 = vshrl.u32 %v2475, 7
        %v2477 = vsub.s32 3, %v2476
        %v2478 = vrot.slane %v1363, %v2477
        %2480 = vbcast.lane.b32.xlu0 %v2478, 256
        %v2481 = vpop.permute.xlu0 %2480
        %s2483 = sor.u32 256, 8
        %2484 = vbcast.lane.b32.xlu0 %v2478, %s2483
        %v2485 = vpop.permute.xlu0 %2484
        %v2486 = vlaneseq
        %v2487 = vshrl.u32 %v2486, 7
        %v2488 = vsub.s32 4, %v2487
        %v2489 = vrot.slane %v1363, %v2488
        %2491 = vbcast.lane.b32.xlu0 %v2489, 256
        %v2492 = vpop.permute.xlu0 %2491
        %s2494 = sor.u32 256, 8
        %2495 = vbcast.lane.b32.xlu0 %v2489, %s2494
        %v2496 = vpop.permute.xlu0 %2495
        %v2497 = vlaneseq
        %v2498 = vshrl.u32 %v2497, 7
        %v2499 = vsub.s32 5, %v2498
        %v2500 = vrot.slane %v1363, %v2499
        %2502 = vbcast.lane.b32.xlu0 %v2500, 256
        %v2503 = vpop.permute.xlu0 %2502
        %s2505 = sor.u32 256, 8
        %2506 = vbcast.lane.b32.xlu0 %v2500, %s2505
        %v2507 = vpop.permute.xlu0 %2506
        %v2508 = vlaneseq
        %v2509 = vshrl.u32 %v2508, 7
        %v2510 = vsub.s32 6, %v2509
        %v2511 = vrot.slane %v1363, %v2510
        %2513 = vbcast.lane.b32.xlu0 %v2511, 256
        %v2514 = vpop.permute.xlu0 %2513
        %s2516 = sor.u32 256, 8
        %2517 = vbcast.lane.b32.xlu0 %v2511, %s2516
        %v2518 = vpop.permute.xlu0 %2517
        %v2519 = vlaneseq
        %v2520 = vshrl.u32 %v2519, 7
        %v2521 = vsub.s32 7, %v2520
        %v2522 = vrot.slane %v1363, %v2521
        %2524 = vbcast.lane.b32.xlu0 %v2522, 256
        %v2525 = vpop.permute.xlu0 %2524
        %s2527 = sor.u32 256, 8
        %2528 = vbcast.lane.b32.xlu0 %v2522, %s2527
        %v2529 = vpop.permute.xlu0 %2528
        %v2530 = vlaneseq
        %v2531 = vshrl.u32 %v2530, 7
        %v2532 = vsub.s32 0, %v2531
        %v2533 = vrot.slane %v1364, %v2532
        %2535 = vbcast.lane.b32.xlu0 %v2533, 256
        %v2536 = vpop.permute.xlu0 %2535
        %s2538 = sor.u32 256, 8
        %2539 = vbcast.lane.b32.xlu0 %v2533, %s2538
        %v2540 = vpop.permute.xlu0 %2539
        %v2541 = vlaneseq
        %v2542 = vshrl.u32 %v2541, 7
        %v2543 = vsub.s32 1, %v2542
        %v2544 = vrot.slane %v1364, %v2543
        %2546 = vbcast.lane.b32.xlu0 %v2544, 256
        %v2547 = vpop.permute.xlu0 %2546
        %s2549 = sor.u32 256, 8
        %2550 = vbcast.lane.b32.xlu0 %v2544, %s2549
        %v2551 = vpop.permute.xlu0 %2550
        %v2552 = vlaneseq
        %v2553 = vshrl.u32 %v2552, 7
        %v2554 = vsub.s32 2, %v2553
        %v2555 = vrot.slane %v1364, %v2554
        %2557 = vbcast.lane.b32.xlu0 %v2555, 256
        %v2558 = vpop.permute.xlu0 %2557
        %s2560 = sor.u32 256, 8
        %2561 = vbcast.lane.b32.xlu0 %v2555, %s2560
        %v2562 = vpop.permute.xlu0 %2561
        %v2563 = vlaneseq
        %v2564 = vshrl.u32 %v2563, 7
        %v2565 = vsub.s32 3, %v2564
        %v2566 = vrot.slane %v1364, %v2565
        %2568 = vbcast.lane.b32.xlu0 %v2566, 256
        %v2569 = vpop.permute.xlu0 %2568
        %s2571 = sor.u32 256, 8
        %2572 = vbcast.lane.b32.xlu0 %v2566, %s2571
        %v2573 = vpop.permute.xlu0 %2572
        %v2574 = vlaneseq
        %v2575 = vshrl.u32 %v2574, 7
        %v2576 = vsub.s32 4, %v2575
        %v2577 = vrot.slane %v1364, %v2576
        %2579 = vbcast.lane.b32.xlu0 %v2577, 256
        %v2580 = vpop.permute.xlu0 %2579
        %s2582 = sor.u32 256, 8
        %2583 = vbcast.lane.b32.xlu0 %v2577, %s2582
        %v2584 = vpop.permute.xlu0 %2583
        %v2585 = vlaneseq
        %v2586 = vshrl.u32 %v2585, 7
        %v2587 = vsub.s32 5, %v2586
        %v2588 = vrot.slane %v1364, %v2587
        %2590 = vbcast.lane.b32.xlu0 %v2588, 256
        %v2591 = vpop.permute.xlu0 %2590
        %s2593 = sor.u32 256, 8
        %2594 = vbcast.lane.b32.xlu0 %v2588, %s2593
        %v2595 = vpop.permute.xlu0 %2594
        %v2596 = vlaneseq
        %v2597 = vshrl.u32 %v2596, 7
        %v2598 = vsub.s32 6, %v2597
        %v2599 = vrot.slane %v1364, %v2598
        %2601 = vbcast.lane.b32.xlu0 %v2599, 256
        %v2602 = vpop.permute.xlu0 %2601
        %s2604 = sor.u32 256, 8
        %2605 = vbcast.lane.b32.xlu0 %v2599, %s2604
        %v2606 = vpop.permute.xlu0 %2605
        %v2607 = vlaneseq
        %v2608 = vshrl.u32 %v2607, 7
        %v2609 = vsub.s32 7, %v2608
        %v2610 = vrot.slane %v1364, %v2609
        %2612 = vbcast.lane.b32.xlu0 %v2610, 256
        %v2613 = vpop.permute.xlu0 %2612
        %s2615 = sor.u32 256, 8
        %2616 = vbcast.lane.b32.xlu0 %v2610, %s2615
        %v2617 = vpop.permute.xlu0 %2616
        %vm2618 = vcmp.gt.f32.partialorder %v2272, 0.5
        %vm2619 = vcmp.gt.f32.partialorder %v2276, 0.5
        %vm2620 = vcmp.gt.f32.partialorder %v2283, 0.5
        %vm2621 = vcmp.gt.f32.partialorder %v2287, 0.5
        %vm2622 = vcmp.gt.f32.partialorder %v2294, 0.5
        %vm2623 = vcmp.gt.f32.partialorder %v2298, 0.5
        %vm2624 = vcmp.gt.f32.partialorder %v2305, 0.5
        %vm2625 = vcmp.gt.f32.partialorder %v2309, 0.5
        %vm2626 = vcmp.gt.f32.partialorder %v2316, 0.5
        %vm2627 = vcmp.gt.f32.partialorder %v2320, 0.5
        %vm2628 = vcmp.gt.f32.partialorder %v2327, 0.5
        %vm2629 = vcmp.gt.f32.partialorder %v2331, 0.5
        %vm2630 = vcmp.gt.f32.partialorder %v2338, 0.5
        %vm2631 = vcmp.gt.f32.partialorder %v2342, 0.5
        %vm2632 = vcmp.gt.f32.partialorder %v2349, 0.5
        %vm2633 = vcmp.gt.f32.partialorder %v2353, 0.5
        %vm2634 = vcmp.gt.f32.partialorder %v2360, 0.5
        %vm2635 = vcmp.gt.f32.partialorder %v2364, 0.5
        %vm2636 = vcmp.gt.f32.partialorder %v2371, 0.5
        %vm2637 = vcmp.gt.f32.partialorder %v2375, 0.5
        %vm2638 = vcmp.gt.f32.partialorder %v2382, 0.5
        %vm2639 = vcmp.gt.f32.partialorder %v2386, 0.5
        %vm2640 = vcmp.gt.f32.partialorder %v2393, 0.5
        %vm2641 = vcmp.gt.f32.partialorder %v2397, 0.5
        %vm2642 = vcmp.gt.f32.partialorder %v2404, 0.5
        %vm2643 = vcmp.gt.f32.partialorder %v2408, 0.5
        %vm2644 = vcmp.gt.f32.partialorder %v2415, 0.5
        %vm2645 = vcmp.gt.f32.partialorder %v2419, 0.5
        %vm2646 = vcmp.gt.f32.partialorder %v2426, 0.5
        %vm2647 = vcmp.gt.f32.partialorder %v2430, 0.5
        %vm2648 = vcmp.gt.f32.partialorder %v2437, 0.5
        %vm2649 = vcmp.gt.f32.partialorder %v2441, 0.5
        %vm2650 = vcmp.gt.f32.partialorder %v2448, 0.5
        %vm2651 = vcmp.gt.f32.partialorder %v2452, 0.5
        %vm2652 = vcmp.gt.f32.partialorder %v2459, 0.5
        %vm2653 = vcmp.gt.f32.partialorder %v2463, 0.5
        %vm2654 = vcmp.gt.f32.partialorder %v2470, 0.5
        %vm2655 = vcmp.gt.f32.partialorder %v2474, 0.5
        %vm2656 = vcmp.gt.f32.partialorder %v2481, 0.5
        %vm2657 = vcmp.gt.f32.partialorder %v2485, 0.5
        %vm2658 = vcmp.gt.f32.partialorder %v2492, 0.5
        %vm2659 = vcmp.gt.f32.partialorder %v2496, 0.5
        %vm2660 = vcmp.gt.f32.partialorder %v2503, 0.5
        %vm2661 = vcmp.gt.f32.partialorder %v2507, 0.5
        %vm2662 = vcmp.gt.f32.partialorder %v2514, 0.5
        %vm2663 = vcmp.gt.f32.partialorder %v2518, 0.5
        %vm2664 = vcmp.gt.f32.partialorder %v2525, 0.5
        %vm2665 = vcmp.gt.f32.partialorder %v2529, 0.5
        %vm2666 = vcmp.gt.f32.partialorder %v2536, 0.5
        %vm2667 = vcmp.gt.f32.partialorder %v2540, 0.5
        %vm2668 = vcmp.gt.f32.partialorder %v2547, 0.5
        %vm2669 = vcmp.gt.f32.partialorder %v2551, 0.5
        %vm2670 = vcmp.gt.f32.partialorder %v2558, 0.5
        %vm2671 = vcmp.gt.f32.partialorder %v2562, 0.5
        %vm2672 = vcmp.gt.f32.partialorder %v2569, 0.5
        %vm2673 = vcmp.gt.f32.partialorder %v2573, 0.5
        %vm2674 = vcmp.gt.f32.partialorder %v2580, 0.5
        %vm2675 = vcmp.gt.f32.partialorder %v2584, 0.5
        %vm2676 = vcmp.gt.f32.partialorder %v2591, 0.5
        %vm2677 = vcmp.gt.f32.partialorder %v2595, 0.5
        %vm2678 = vcmp.gt.f32.partialorder %v2602, 0.5
        %vm2679 = vcmp.gt.f32.partialorder %v2606, 0.5
        %vm2680 = vcmp.gt.f32.partialorder %v2613, 0.5
        %vm2681 = vcmp.gt.f32.partialorder %v2617, 0.5
        %v2686 = vcombine.high %v2248, %v2248
        %v2688 = vunpack.c.l.s4 1966171168
        %v2689 = vunpack.c.0.s8 %v2688
        %v2690 = vlaneseq
        %v2691 = vshrl.u32 %v2690, 7
        %v2692 = vsub.s32 %v2689, %v2691
        %v2693 = vrot.slane %v2248, %v2692
        %v2695 = vunpack.c.l.s4 1966171168
        %v2696 = vunpack.c.0.s8 %v2695
        %v2697 = vlaneseq
        %v2698 = vshrl.u32 %v2697, 7
        %v2699 = vsub.s32 %v2696, %v2698
        %v2700 = vrot.slane %v2686, %v2699
        %v2701 = vcombine.high %v2693, %v2693
        %v2702 = vcombine.high %v2700, %v2700
        %v2704 = vunpack.c.l.s4 1966171168
        %v2705 = vunpack.c.0.s8 %v2704
        %v2706 = vlaneseq
        %v2707 = vshrl.u32 %v2706, 7
        %v2708 = vsub.s32 %v2705, %v2707
        %v2709 = vrot.slane %v2693, %v2708
        %v2711 = vunpack.c.l.s4 1966171168
        %v2712 = vunpack.c.0.s8 %v2711
        %v2713 = vlaneseq
        %v2714 = vshrl.u32 %v2713, 7
        %v2715 = vsub.s32 %v2712, %v2714
        %v2716 = vrot.slane %v2700, %v2715
        %v2718 = vunpack.c.l.s4 1966171168
        %v2719 = vunpack.c.0.s8 %v2718
        %v2720 = vlaneseq
        %v2721 = vshrl.u32 %v2720, 7
        %v2722 = vsub.s32 %v2719, %v2721
        %v2723 = vrot.slane %v2701, %v2722
        %v2725 = vunpack.c.l.s4 1966171168
        %v2726 = vunpack.c.0.s8 %v2725
        %v2727 = vlaneseq
        %v2728 = vshrl.u32 %v2727, 7
        %v2729 = vsub.s32 %v2726, %v2728
        %v2730 = vrot.slane %v2702, %v2729
        %v2731 = vcombine.high %v2709, %v2709
        %v2732 = vcombine.high %v2716, %v2716
        %v2733 = vcombine.high %v2723, %v2723
        %v2734 = vcombine.high %v2730, %v2730
        %v2735 = vcombine.high %v2253, %v2253
        %v2737 = vunpack.c.l.s4 1966171168
        %v2738 = vunpack.c.0.s8 %v2737
        %v2739 = vlaneseq
        %v2740 = vshrl.u32 %v2739, 7
        %v2741 = vsub.s32 %v2738, %v2740
        %v2742 = vrot.slane %v2253, %v2741
        %v2744 = vunpack.c.l.s4 1966171168
        %v2745 = vunpack.c.0.s8 %v2744
        %v2746 = vlaneseq
        %v2747 = vshrl.u32 %v2746, 7
        %v2748 = vsub.s32 %v2745, %v2747
        %v2749 = vrot.slane %v2735, %v2748
        %v2750 = vcombine.high %v2742, %v2742
        %v2751 = vcombine.high %v2749, %v2749
        %v2753 = vunpack.c.l.s4 1966171168
        %v2754 = vunpack.c.0.s8 %v2753
        %v2755 = vlaneseq
        %v2756 = vshrl.u32 %v2755, 7
        %v2757 = vsub.s32 %v2754, %v2756
        %v2758 = vrot.slane %v2742, %v2757
        %v2760 = vunpack.c.l.s4 1966171168
        %v2761 = vunpack.c.0.s8 %v2760
        %v2762 = vlaneseq
        %v2763 = vshrl.u32 %v2762, 7
        %v2764 = vsub.s32 %v2761, %v2763
        %v2765 = vrot.slane %v2749, %v2764
        %v2767 = vunpack.c.l.s4 1966171168
        %v2768 = vunpack.c.0.s8 %v2767
        %v2769 = vlaneseq
        %v2770 = vshrl.u32 %v2769, 7
        %v2771 = vsub.s32 %v2768, %v2770
        %v2772 = vrot.slane %v2750, %v2771
        %v2774 = vunpack.c.l.s4 1966171168
        %v2775 = vunpack.c.0.s8 %v2774
        %v2776 = vlaneseq
        %v2777 = vshrl.u32 %v2776, 7
        %v2778 = vsub.s32 %v2775, %v2777
        %v2779 = vrot.slane %v2751, %v2778
        %v2780 = vcombine.high %v2758, %v2758
        %v2781 = vcombine.high %v2765, %v2765
        %v2782 = vcombine.high %v2772, %v2772
        %v2783 = vcombine.high %v2779, %v2779
        %v2784 = vcombine.high %v2258, %v2258
        %v2786 = vunpack.c.l.s4 1966171168
        %v2787 = vunpack.c.0.s8 %v2786
        %v2788 = vlaneseq
        %v2789 = vshrl.u32 %v2788, 7
        %v2790 = vsub.s32 %v2787, %v2789
        %v2791 = vrot.slane %v2258, %v2790
        %v2793 = vunpack.c.l.s4 1966171168
        %v2794 = vunpack.c.0.s8 %v2793
        %v2795 = vlaneseq
        %v2796 = vshrl.u32 %v2795, 7
        %v2797 = vsub.s32 %v2794, %v2796
        %v2798 = vrot.slane %v2784, %v2797
        %v2799 = vcombine.high %v2791, %v2791
        %v2800 = vcombine.high %v2798, %v2798
        %v2802 = vunpack.c.l.s4 1966171168
        %v2803 = vunpack.c.0.s8 %v2802
        %v2804 = vlaneseq
        %v2805 = vshrl.u32 %v2804, 7
        %v2806 = vsub.s32 %v2803, %v2805
        %v2807 = vrot.slane %v2791, %v2806
        %v2809 = vunpack.c.l.s4 1966171168
        %v2810 = vunpack.c.0.s8 %v2809
        %v2811 = vlaneseq
        %v2812 = vshrl.u32 %v2811, 7
        %v2813 = vsub.s32 %v2810, %v2812
        %v2814 = vrot.slane %v2798, %v2813
        %v2816 = vunpack.c.l.s4 1966171168
        %v2817 = vunpack.c.0.s8 %v2816
        %v2818 = vlaneseq
        %v2819 = vshrl.u32 %v2818, 7
        %v2820 = vsub.s32 %v2817, %v2819
        %v2821 = vrot.slane %v2799, %v2820
        %v2823 = vunpack.c.l.s4 1966171168
        %v2824 = vunpack.c.0.s8 %v2823
        %v2825 = vlaneseq
        %v2826 = vshrl.u32 %v2825, 7
        %v2827 = vsub.s32 %v2824, %v2826
        %v2828 = vrot.slane %v2800, %v2827
        %v2829 = vcombine.high %v2807, %v2807
        %v2830 = vcombine.high %v2814, %v2814
        %v2831 = vcombine.high %v2821, %v2821
        %v2832 = vcombine.high %v2828, %v2828
        %v2833 = vcombine.high %v2263, %v2263
        %v2835 = vunpack.c.l.s4 1966171168
        %v2836 = vunpack.c.0.s8 %v2835
        %v2837 = vlaneseq
        %v2838 = vshrl.u32 %v2837, 7
        %v2839 = vsub.s32 %v2836, %v2838
        %v2840 = vrot.slane %v2263, %v2839
        %v2842 = vunpack.c.l.s4 1966171168
        %v2843 = vunpack.c.0.s8 %v2842
        %v2844 = vlaneseq
        %v2845 = vshrl.u32 %v2844, 7
        %v2846 = vsub.s32 %v2843, %v2845
        %v2847 = vrot.slane %v2833, %v2846
        %v2848 = vcombine.high %v2840, %v2840
        %v2849 = vcombine.high %v2847, %v2847
        %v2851 = vunpack.c.l.s4 1966171168
        %v2852 = vunpack.c.0.s8 %v2851
        %v2853 = vlaneseq
        %v2854 = vshrl.u32 %v2853, 7
        %v2855 = vsub.s32 %v2852, %v2854
        %v2856 = vrot.slane %v2840, %v2855
        %v2858 = vunpack.c.l.s4 1966171168
        %v2859 = vunpack.c.0.s8 %v2858
        %v2860 = vlaneseq
        %v2861 = vshrl.u32 %v2860, 7
        %v2862 = vsub.s32 %v2859, %v2861
        %v2863 = vrot.slane %v2847, %v2862
        %v2865 = vunpack.c.l.s4 1966171168
        %v2866 = vunpack.c.0.s8 %v2865
        %v2867 = vlaneseq
        %v2868 = vshrl.u32 %v2867, 7
        %v2869 = vsub.s32 %v2866, %v2868
        %v2870 = vrot.slane %v2848, %v2869
        %v2872 = vunpack.c.l.s4 1966171168
        %v2873 = vunpack.c.0.s8 %v2872
        %v2874 = vlaneseq
        %v2875 = vshrl.u32 %v2874, 7
        %v2876 = vsub.s32 %v2873, %v2875
        %v2877 = vrot.slane %v2849, %v2876
        %v2878 = vcombine.high %v2856, %v2856
        %v2879 = vcombine.high %v2863, %v2863
        %v2880 = vcombine.high %v2870, %v2870
        %v2881 = vcombine.high %v2877, %v2877
        %v2882 = vsel %vm2618, 1, 0
        %v2883 = vsel %vm2619, 1, 0
        %v2884 = vsel %vm2620, 1, 0
        %v2885 = vsel %vm2621, 1, 0
        %v2886 = vsel %vm2622, 1, 0
        %v2887 = vsel %vm2623, 1, 0
        %v2888 = vsel %vm2624, 1, 0
        %v2889 = vsel %vm2625, 1, 0
        %v2890 = vsel %vm2626, 1, 0
        %v2891 = vsel %vm2627, 1, 0
        %v2892 = vsel %vm2628, 1, 0
        %v2893 = vsel %vm2629, 1, 0
        %v2894 = vsel %vm2630, 1, 0
        %v2895 = vsel %vm2631, 1, 0
        %v2896 = vsel %vm2632, 1, 0
        %v2897 = vsel %vm2633, 1, 0
        %v2898 = vsel %vm2634, 1, 0
        %v2899 = vsel %vm2635, 1, 0
        %v2900 = vsel %vm2636, 1, 0
        %v2901 = vsel %vm2637, 1, 0
        %v2902 = vsel %vm2638, 1, 0
        %v2903 = vsel %vm2639, 1, 0
        %v2904 = vsel %vm2640, 1, 0
        %v2905 = vsel %vm2641, 1, 0
        %v2906 = vsel %vm2642, 1, 0
        %v2907 = vsel %vm2643, 1, 0
        %v2908 = vsel %vm2644, 1, 0
        %v2909 = vsel %vm2645, 1, 0
        %v2910 = vsel %vm2646, 1, 0
        %v2911 = vsel %vm2647, 1, 0
        %v2912 = vsel %vm2648, 1, 0
        %v2913 = vsel %vm2649, 1, 0
        %v2914 = vsel %vm2650, 1, 0
        %v2915 = vsel %vm2651, 1, 0
        %v2916 = vsel %vm2652, 1, 0
        %v2917 = vsel %vm2653, 1, 0
        %v2918 = vsel %vm2654, 1, 0
        %v2919 = vsel %vm2655, 1, 0
        %v2920 = vsel %vm2656, 1, 0
        %v2921 = vsel %vm2657, 1, 0
        %v2922 = vsel %vm2658, 1, 0
        %v2923 = vsel %vm2659, 1, 0
        %v2924 = vsel %vm2660, 1, 0
        %v2925 = vsel %vm2661, 1, 0
        %v2926 = vsel %vm2662, 1, 0
        %v2927 = vsel %vm2663, 1, 0
        %v2928 = vsel %vm2664, 1, 0
        %v2929 = vsel %vm2665, 1, 0
        %v2930 = vsel %vm2666, 1, 0
        %v2931 = vsel %vm2667, 1, 0
        %v2932 = vsel %vm2668, 1, 0
        %v2933 = vsel %vm2669, 1, 0
        %v2934 = vsel %vm2670, 1, 0
        %v2935 = vsel %vm2671, 1, 0
        %v2936 = vsel %vm2672, 1, 0
        %v2937 = vsel %vm2673, 1, 0
        %v2938 = vsel %vm2674, 1, 0
        %v2939 = vsel %vm2675, 1, 0
        %v2940 = vsel %vm2676, 1, 0
        %v2941 = vsel %vm2677, 1, 0
        %v2942 = vsel %vm2678, 1, 0
        %v2943 = vsel %vm2679, 1, 0
        %v2944 = vsel %vm2680, 1, 0
        %v2945 = vsel %vm2681, 1, 0
        %vm2946 = vcmp.eq.s32.totalorder %v2882, 1
        %vm2947 = vcmp.eq.s32.totalorder %v2883, 1
        %vm2948 = vcmp.eq.s32.totalorder %v2884, 1
        %vm2949 = vcmp.eq.s32.totalorder %v2885, 1
        %vm2950 = vcmp.eq.s32.totalorder %v2886, 1
        %vm2951 = vcmp.eq.s32.totalorder %v2887, 1
        %vm2952 = vcmp.eq.s32.totalorder %v2888, 1
        %vm2953 = vcmp.eq.s32.totalorder %v2889, 1
        %vm2954 = vcmp.eq.s32.totalorder %v2890, 1
        %vm2955 = vcmp.eq.s32.totalorder %v2891, 1
        %vm2956 = vcmp.eq.s32.totalorder %v2892, 1
        %vm2957 = vcmp.eq.s32.totalorder %v2893, 1
        %vm2958 = vcmp.eq.s32.totalorder %v2894, 1
        %vm2959 = vcmp.eq.s32.totalorder %v2895, 1
        %vm2960 = vcmp.eq.s32.totalorder %v2896, 1
        %vm2961 = vcmp.eq.s32.totalorder %v2897, 1
        %vm2962 = vcmp.eq.s32.totalorder %v2898, 1
        %vm2963 = vcmp.eq.s32.totalorder %v2899, 1
        %vm2964 = vcmp.eq.s32.totalorder %v2900, 1
        %vm2965 = vcmp.eq.s32.totalorder %v2901, 1
        %vm2966 = vcmp.eq.s32.totalorder %v2902, 1
        %vm2967 = vcmp.eq.s32.totalorder %v2903, 1
        %vm2968 = vcmp.eq.s32.totalorder %v2904, 1
        %vm2969 = vcmp.eq.s32.totalorder %v2905, 1
        %vm2970 = vcmp.eq.s32.totalorder %v2906, 1
        %vm2971 = vcmp.eq.s32.totalorder %v2907, 1
        %vm2972 = vcmp.eq.s32.totalorder %v2908, 1
        %vm2973 = vcmp.eq.s32.totalorder %v2909, 1
        %vm2974 = vcmp.eq.s32.totalorder %v2910, 1
        %vm2975 = vcmp.eq.s32.totalorder %v2911, 1
        %vm2976 = vcmp.eq.s32.totalorder %v2912, 1
        %vm2977 = vcmp.eq.s32.totalorder %v2913, 1
        %vm2978 = vcmp.eq.s32.totalorder %v2914, 1
        %vm2979 = vcmp.eq.s32.totalorder %v2915, 1
        %vm2980 = vcmp.eq.s32.totalorder %v2916, 1
        %vm2981 = vcmp.eq.s32.totalorder %v2917, 1
        %vm2982 = vcmp.eq.s32.totalorder %v2918, 1
        %vm2983 = vcmp.eq.s32.totalorder %v2919, 1
        %vm2984 = vcmp.eq.s32.totalorder %v2920, 1
        %vm2985 = vcmp.eq.s32.totalorder %v2921, 1
        %vm2986 = vcmp.eq.s32.totalorder %v2922, 1
        %vm2987 = vcmp.eq.s32.totalorder %v2923, 1
        %vm2988 = vcmp.eq.s32.totalorder %v2924, 1
        %vm2989 = vcmp.eq.s32.totalorder %v2925, 1
        %vm2990 = vcmp.eq.s32.totalorder %v2926, 1
        %vm2991 = vcmp.eq.s32.totalorder %v2927, 1
        %vm2992 = vcmp.eq.s32.totalorder %v2928, 1
        %vm2993 = vcmp.eq.s32.totalorder %v2929, 1
        %vm2994 = vcmp.eq.s32.totalorder %v2930, 1
        %vm2995 = vcmp.eq.s32.totalorder %v2931, 1
        %vm2996 = vcmp.eq.s32.totalorder %v2932, 1
        %vm2997 = vcmp.eq.s32.totalorder %v2933, 1
        %vm2998 = vcmp.eq.s32.totalorder %v2934, 1
        %vm2999 = vcmp.eq.s32.totalorder %v2935, 1
        %vm3000 = vcmp.eq.s32.totalorder %v2936, 1
        %vm3001 = vcmp.eq.s32.totalorder %v2937, 1
        %vm3002 = vcmp.eq.s32.totalorder %v2938, 1
        %vm3003 = vcmp.eq.s32.totalorder %v2939, 1
        %vm3004 = vcmp.eq.s32.totalorder %v2940, 1
        %vm3005 = vcmp.eq.s32.totalorder %v2941, 1
        %vm3006 = vcmp.eq.s32.totalorder %v2942, 1
        %vm3007 = vcmp.eq.s32.totalorder %v2943, 1
        %vm3008 = vcmp.eq.s32.totalorder %v2944, 1
        %vm3009 = vcmp.eq.s32.totalorder %v2945, 1
        %v3010 = vlaneseq
        %v3011 = vshrl.u32 %v3010, 7
        %v3012 = vsub.s32 0, %v3011
        %v3013 = vrot.slane %v2709, %v3012
        %v3014 = vlaneseq
        %v3015 = vshrl.u32 %v3014, 7
        %v3016 = vsub.s32 0, %v3015
        %v3017 = vrot.slane %v2723, %v3016
        %v3018 = vlaneseq
        %v3019 = vshrl.u32 %v3018, 7
        %v3020 = vsub.s32 0, %v3019
        %v3021 = vrot.slane %v2731, %v3020
        %v3022 = vlaneseq
        %v3023 = vshrl.u32 %v3022, 7
        %v3024 = vsub.s32 0, %v3023
        %v3025 = vrot.slane %v2733, %v3024
        %v3026 = vlaneseq
        %v3027 = vshrl.u32 %v3026, 7
        %v3028 = vsub.s32 0, %v3027
        %v3029 = vrot.slane %v2716, %v3028
        %v3030 = vlaneseq
        %v3031 = vshrl.u32 %v3030, 7
        %v3032 = vsub.s32 0, %v3031
        %v3033 = vrot.slane %v2730, %v3032
        %v3034 = vlaneseq
        %v3035 = vshrl.u32 %v3034, 7
        %v3036 = vsub.s32 0, %v3035
        %v3037 = vrot.slane %v2732, %v3036
        %v3038 = vlaneseq
        %v3039 = vshrl.u32 %v3038, 7
        %v3040 = vsub.s32 0, %v3039
        %v3041 = vrot.slane %v2734, %v3040
        %v3042 = vlaneseq
        %v3043 = vshrl.u32 %v3042, 7
        %v3044 = vsub.s32 0, %v3043
        %v3045 = vrot.slane %v2758, %v3044
        %v3046 = vlaneseq
        %v3047 = vshrl.u32 %v3046, 7
        %v3048 = vsub.s32 0, %v3047
        %v3049 = vrot.slane %v2772, %v3048
        %v3050 = vlaneseq
        %v3051 = vshrl.u32 %v3050, 7
        %v3052 = vsub.s32 0, %v3051
        %v3053 = vrot.slane %v2780, %v3052
        %v3054 = vlaneseq
        %v3055 = vshrl.u32 %v3054, 7
        %v3056 = vsub.s32 0, %v3055
        %v3057 = vrot.slane %v2782, %v3056
        %v3058 = vlaneseq
        %v3059 = vshrl.u32 %v3058, 7
        %v3060 = vsub.s32 0, %v3059
        %v3061 = vrot.slane %v2765, %v3060
        %v3062 = vlaneseq
        %v3063 = vshrl.u32 %v3062, 7
        %v3064 = vsub.s32 0, %v3063
        %v3065 = vrot.slane %v2779, %v3064
        %v3066 = vlaneseq
        %v3067 = vshrl.u32 %v3066, 7
        %v3068 = vsub.s32 0, %v3067
        %v3069 = vrot.slane %v2781, %v3068
        %v3070 = vlaneseq
        %v3071 = vshrl.u32 %v3070, 7
        %v3072 = vsub.s32 0, %v3071
        %v3073 = vrot.slane %v2783, %v3072
        %v3074 = vlaneseq
        %v3075 = vshrl.u32 %v3074, 7
        %v3076 = vsub.s32 0, %v3075
        %v3077 = vrot.slane %v2807, %v3076
        %v3078 = vlaneseq
        %v3079 = vshrl.u32 %v3078, 7
        %v3080 = vsub.s32 0, %v3079
        %v3081 = vrot.slane %v2821, %v3080
        %v3082 = vlaneseq
        %v3083 = vshrl.u32 %v3082, 7
        %v3084 = vsub.s32 0, %v3083
        %v3085 = vrot.slane %v2829, %v3084
        %v3086 = vlaneseq
        %v3087 = vshrl.u32 %v3086, 7
        %v3088 = vsub.s32 0, %v3087
        %v3089 = vrot.slane %v2831, %v3088
        %v3090 = vlaneseq
        %v3091 = vshrl.u32 %v3090, 7
        %v3092 = vsub.s32 0, %v3091
        %v3093 = vrot.slane %v2814, %v3092
        %v3094 = vlaneseq
        %v3095 = vshrl.u32 %v3094, 7
        %v3096 = vsub.s32 0, %v3095
        %v3097 = vrot.slane %v2828, %v3096
        %v3098 = vlaneseq
        %v3099 = vshrl.u32 %v3098, 7
        %v3100 = vsub.s32 0, %v3099
        %v3101 = vrot.slane %v2830, %v3100
        %v3102 = vlaneseq
        %v3103 = vshrl.u32 %v3102, 7
        %v3104 = vsub.s32 0, %v3103
        %v3105 = vrot.slane %v2832, %v3104
        %v3106 = vlaneseq
        %v3107 = vshrl.u32 %v3106, 7
        %v3108 = vsub.s32 0, %v3107
        %v3109 = vrot.slane %v2856, %v3108
        %v3110 = vlaneseq
        %v3111 = vshrl.u32 %v3110, 7
        %v3112 = vsub.s32 0, %v3111
        %v3113 = vrot.slane %v2870, %v3112
        %v3114 = vlaneseq
        %v3115 = vshrl.u32 %v3114, 7
        %v3116 = vsub.s32 0, %v3115
        %v3117 = vrot.slane %v2878, %v3116
        %v3118 = vlaneseq
        %v3119 = vshrl.u32 %v3118, 7
        %v3120 = vsub.s32 0, %v3119
        %v3121 = vrot.slane %v2880, %v3120
        %v3122 = vlaneseq
        %v3123 = vshrl.u32 %v3122, 7
        %v3124 = vsub.s32 0, %v3123
        %v3125 = vrot.slane %v2863, %v3124
        %v3126 = vlaneseq
        %v3127 = vshrl.u32 %v3126, 7
        %v3128 = vsub.s32 0, %v3127
        %v3129 = vrot.slane %v2877, %v3128
        %v3130 = vlaneseq
        %v3131 = vshrl.u32 %v3130, 7
        %v3132 = vsub.s32 0, %v3131
        %v3133 = vrot.slane %v2879, %v3132
        %v3134 = vlaneseq
        %v3135 = vshrl.u32 %v3134, 7
        %v3136 = vsub.s32 0, %v3135
        %v3137 = vrot.slane %v2881, %v3136
        %v3170 = vsel %vm2946, %v3013, -1e+30
        %v3171 = vsel %vm2947, %v3013, -1e+30
        %v3172 = vsel %vm2948, %v3017, -1e+30
        %v3173 = vsel %vm2949, %v3017, -1e+30
        %v3174 = vsel %vm2950, %v3021, -1e+30
        %v3175 = vsel %vm2951, %v3021, -1e+30
        %v3176 = vsel %vm2952, %v3025, -1e+30
        %v3177 = vsel %vm2953, %v3025, -1e+30
        %v3178 = vsel %vm2954, %v3029, -1e+30
        %v3179 = vsel %vm2955, %v3029, -1e+30
        %v3180 = vsel %vm2956, %v3033, -1e+30
        %v3181 = vsel %vm2957, %v3033, -1e+30
        %v3182 = vsel %vm2958, %v3037, -1e+30
        %v3183 = vsel %vm2959, %v3037, -1e+30
        %v3184 = vsel %vm2960, %v3041, -1e+30
        %v3185 = vsel %vm2961, %v3041, -1e+30
        %v3186 = vsel %vm2962, %v3045, -1e+30
        %v3187 = vsel %vm2963, %v3045, -1e+30
        %v3188 = vsel %vm2964, %v3049, -1e+30
        %v3189 = vsel %vm2965, %v3049, -1e+30
        %v3190 = vsel %vm2966, %v3053, -1e+30
        %v3191 = vsel %vm2967, %v3053, -1e+30
        %v3192 = vsel %vm2968, %v3057, -1e+30
        %v3193 = vsel %vm2969, %v3057, -1e+30
        %v3194 = vsel %vm2970, %v3061, -1e+30
        %v3195 = vsel %vm2971, %v3061, -1e+30
        %v3196 = vsel %vm2972, %v3065, -1e+30
        %v3197 = vsel %vm2973, %v3065, -1e+30
        %v3198 = vsel %vm2974, %v3069, -1e+30
        %v3199 = vsel %vm2975, %v3069, -1e+30
        %v3200 = vsel %vm2976, %v3073, -1e+30
        %v3201 = vsel %vm2977, %v3073, -1e+30
        %v3202 = vsel %vm2978, %v3077, -1e+30
        %v3203 = vsel %vm2979, %v3077, -1e+30
        %v3204 = vsel %vm2980, %v3081, -1e+30
        %v3205 = vsel %vm2981, %v3081, -1e+30
        %v3206 = vsel %vm2982, %v3085, -1e+30
        %v3207 = vsel %vm2983, %v3085, -1e+30
        %v3208 = vsel %vm2984, %v3089, -1e+30
        %v3209 = vsel %vm2985, %v3089, -1e+30
        %v3210 = vsel %vm2986, %v3093, -1e+30
        %v3211 = vsel %vm2987, %v3093, -1e+30
        %v3212 = vsel %vm2988, %v3097, -1e+30
        %v3213 = vsel %vm2989, %v3097, -1e+30
        %v3214 = vsel %vm2990, %v3101, -1e+30
        %v3215 = vsel %vm2991, %v3101, -1e+30
        %v3216 = vsel %vm2992, %v3105, -1e+30
        %v3217 = vsel %vm2993, %v3105, -1e+30
        %v3218 = vsel %vm2994, %v3109, -1e+30
        %v3219 = vsel %vm2995, %v3109, -1e+30
        %v3220 = vsel %vm2996, %v3113, -1e+30
        %v3221 = vsel %vm2997, %v3113, -1e+30
        %v3222 = vsel %vm2998, %v3117, -1e+30
        %v3223 = vsel %vm2999, %v3117, -1e+30
        %v3224 = vsel %vm3000, %v3121, -1e+30
        %v3225 = vsel %vm3001, %v3121, -1e+30
        %v3226 = vsel %vm3002, %v3125, -1e+30
        %v3227 = vsel %vm3003, %v3125, -1e+30
        %v3228 = vsel %vm3004, %v3129, -1e+30
        %v3229 = vsel %vm3005, %v3129, -1e+30
        %v3230 = vsel %vm3006, %v3133, -1e+30
        %v3231 = vsel %vm3007, %v3133, -1e+30
        %v3232 = vsel %vm3008, %v3137, -1e+30
        %v3233 = vsel %vm3009, %v3137, -1e+30
        %v3234 = vmax.f32 %v3170, %v3174
        %v3235 = vmax.f32 %v3172, %v3176
        %v3236 = vmax.f32 %v3234, %v3178
        %v3237 = vmax.f32 %v3235, %v3180
        %v3238 = vmax.f32 %v3236, %v3182
        %v3239 = vmax.f32 %v3237, %v3184
        %v3240 = vmax.f32 %v3238, %v3186
        %v3241 = vmax.f32 %v3239, %v3188
        %v3242 = vmax.f32 %v3240, %v3190
        %v3243 = vmax.f32 %v3241, %v3192
        %v3244 = vmax.f32 %v3242, %v3194
        %v3245 = vmax.f32 %v3243, %v3196
        %v3246 = vmax.f32 %v3244, %v3198
        %v3247 = vmax.f32 %v3245, %v3200
        %v3248 = vmax.f32 %v3246, %v3202
        %v3249 = vmax.f32 %v3247, %v3204
        %v3250 = vmax.f32 %v3248, %v3206
        %v3251 = vmax.f32 %v3249, %v3208
        %v3252 = vmax.f32 %v3250, %v3210
        %v3253 = vmax.f32 %v3251, %v3212
        %v3254 = vmax.f32 %v3252, %v3214
        %v3255 = vmax.f32 %v3253, %v3216
        %v3256 = vmax.f32 %v3254, %v3218
        %v3257 = vmax.f32 %v3255, %v3220
        %v3258 = vmax.f32 %v3256, %v3222
        %v3259 = vmax.f32 %v3257, %v3224
        %v3260 = vmax.f32 %v3258, %v3226
        %v3261 = vmax.f32 %v3259, %v3228
        %v3262 = vmax.f32 %v3260, %v3230
        %v3263 = vmax.f32 %v3261, %v3232
        %v3264 = vmax.f32 %v3262, %v3263
        %v3265 = vmax.f32 %v3171, %v3175
        %v3266 = vmax.f32 %v3173, %v3177
        %v3267 = vmax.f32 %v3265, %v3179
        %v3268 = vmax.f32 %v3266, %v3181
        %v3269 = vmax.f32 %v3267, %v3183
        %v3270 = vmax.f32 %v3268, %v3185
        %v3271 = vmax.f32 %v3269, %v3187
        %v3272 = vmax.f32 %v3270, %v3189
        %v3273 = vmax.f32 %v3271, %v3191
        %v3274 = vmax.f32 %v3272, %v3193
        %v3275 = vmax.f32 %v3273, %v3195
        %v3276 = vmax.f32 %v3274, %v3197
        %v3277 = vmax.f32 %v3275, %v3199
        %v3278 = vmax.f32 %v3276, %v3201
        %v3279 = vmax.f32 %v3277, %v3203
        %v3280 = vmax.f32 %v3278, %v3205
        %v3281 = vmax.f32 %v3279, %v3207
        %v3282 = vmax.f32 %v3280, %v3209
        %v3283 = vmax.f32 %v3281, %v3211
        %v3284 = vmax.f32 %v3282, %v3213
        %v3285 = vmax.f32 %v3283, %v3215
        %v3286 = vmax.f32 %v3284, %v3217
        %v3287 = vmax.f32 %v3285, %v3219
        %v3288 = vmax.f32 %v3286, %v3221
        %v3289 = vmax.f32 %v3287, %v3223
        %v3290 = vmax.f32 %v3288, %v3225
        %v3291 = vmax.f32 %v3289, %v3227
        %v3292 = vmax.f32 %v3290, %v3229
        %v3293 = vmax.f32 %v3291, %v3231
        %v3294 = vmax.f32 %v3292, %v3233
        %v3295 = vmax.f32 %v3293, %v3294
        %v3296 = vpack.c.bf16 %v3295, %v3264
        %3297 = vmatprep.subr.bf16.mxu0 0
        %3298 = vmatpush1.bf16.msra.mxu0 %v3296
        %3299 = vmatprep.subr.bf16.mxu0 0
        %3300 = vmatpush1.bf16.msra.mxu0 0
        %3301 = vmatprep.subr.bf16.mxu0 0
        %3302 = vmatpush1.bf16.msra.mxu0 0
        %3303 = vmatprep.subr.bf16.mxu0 0
        %3304 = vmatpush1.bf16.msra.mxu0 0
        %3305 = vmatprep.subr.bf16.mxu0 0
        %3306 = vmatpush1.bf16.msra.mxu0 0
        %3307 = vmatprep.subr.bf16.mxu0 0
        %3308 = vmatpush1.bf16.msra.mxu0 0
        %3309 = vmatprep.subr.bf16.mxu0 0
        %3310 = vmatpush1.bf16.msra.mxu0 0
        %3311 = vmatprep.subr.bf16.mxu0 0
        %3312 = vmatpush1.bf16.msra.mxu0 0
        %3313 = vmatprep.subr.bf16.mxu0 0
        %3314 = vmatpush1.bf16.msra.mxu0 0
        %3315 = vmatprep.subr.bf16.mxu0 0
        %3316 = vmatpush1.bf16.msra.mxu0 0
        %3317 = vmatprep.subr.bf16.mxu0 0
        %3318 = vmatpush1.bf16.msra.mxu0 0
        %3319 = vmatprep.subr.bf16.mxu0 0
        %3320 = vmatpush1.bf16.msra.mxu0 0
        %3321 = vmatprep.subr.bf16.mxu0 0
        %3322 = vmatpush1.bf16.msra.mxu0 0
        %3323 = vmatprep.subr.bf16.mxu0 0
        %3324 = vmatpush1.bf16.msra.mxu0 0
        %3325 = vmatprep.subr.bf16.mxu0 0
        %3326 = vmatpush1.bf16.msra.mxu0 0
        %3327 = vmatprep.subr.bf16.mxu0 0
        %3328 = vmatpush1.bf16.msra.mxu0 0
        %3329 = vmatprep.mubr.bf16.mxu0 0
        %3330 = vmatmul.mubr.bf16.gmra.mrb[0].mxu0 %v1987
        %v3331 = vpop.f32.mrb[0].mxu0
        %v3332 = vadd.f32 0.0, %v3331
        %v3333 = vpop.f32.mrb[0].mxu0
        %v3334 = vpop.f32.mrb[0].mxu0
        %v3335 = vadd.f32 0.0, %v3334
        %v3336 = vpop.f32.mrb[0].mxu0
        %3337 = vmatprep.mubr.bf16.mxu0 0
        %3338 = vmatmul.mubr.bf16.gmra.mrb[0].mxu0 %v1990
        %v3339 = vpop.f32.mrb[0].mxu0
        %v3340 = vadd.f32 0.0, %v3339
        %v3341 = vpop.f32.mrb[0].mxu0
        %v3342 = vpop.f32.mrb[0].mxu0
        %v3343 = vadd.f32 0.0, %v3342
        %v3344 = vpop.f32.mrb[0].mxu0
        %3345 = vdwg.mxu0
        %v3346 = vsub.f32 %v2248, %v3332
        %v3347 = vsub.f32 %v2253, %v3335
        %v3348 = vsub.f32 %v2258, %v3340
        %v3349 = vsub.f32 %v2263, %v3343
        %v3350 = vmul.f32 %v3346, 1.442695
        %v3351 = vpow.pop %v3350
        %v3352 = vmul.f32 %v3347, 1.442695
        %v3353 = vpow.pop %v3352
        %v3354 = vmul.f32 %v3348, 1.442695
        %v3355 = vpow.pop %v3354
        %v3356 = vmul.f32 %v3349, 1.442695
        %v3357 = vpow.pop %v3356
        %3358 = vxpose.xlu0.b32.start [1/16] %v1361, 128
        %3359 = vxpose.xlu0.b32.cont [2/16] %v1362, 128
        %3360 = vxpose.xlu0.b32.cont [3/16] %v1363, 128
        %3361 = vxpose.xlu0.b32.cont [4/16] %v1364, 128
        %3362 = vxpose.xlu0.b32.cont [5/16] 0.0, 128
        %3363 = vxpose.xlu0.b32.cont [6/16] 0.0, 128
        %3364 = vxpose.xlu0.b32.cont [7/16] 0.0, 128
        %3365 = vxpose.xlu0.b32.cont [8/16] 0.0, 128
        %3366 = vxpose.xlu0.b32.cont [9/16] 0.0, 128
        %3367 = vxpose.xlu0.b32.cont [10/16] 0.0, 128
        %3368 = vxpose.xlu0.b32.cont [11/16] 0.0, 128
        %3369 = vxpose.xlu0.b32.cont [12/16] 0.0, 128
        %3370 = vxpose.xlu0.b32.cont [13/16] 0.0, 128
        %3371 = vxpose.xlu0.b32.cont [14/16] 0.0, 128
        %3372 = vxpose.xlu0.b32.cont [15/16] 0.0, 128
        %3373 = vxpose.xlu0.b32.end [16/16] 0.0, 128
        %v3374 = vpop.trf.xlu0
        %v3375 = vpop.trf.xlu0
        %v3376 = vpop.trf.xlu0
        %v3377 = vpop.trf.xlu0
        %v3378 = vpop.trf.xlu0
        %v3379 = vpop.trf.xlu0
        %v3380 = vpop.trf.xlu0
        %v3381 = vpop.trf.xlu0
        %v3382 = vpop.trf.xlu0
        %v3383 = vpop.trf.xlu0
        %v3384 = vpop.trf.xlu0
        %v3385 = vpop.trf.xlu0
        %v3386 = vpop.trf.xlu0
        %v3387 = vpop.trf.xlu0
        %v3388 = vpop.trf.xlu0
        %v3389 = vpop.trf.xlu0
        %vm3390 = vcmask 261120
        %v3392 = vsel %vm3390, %v3374, 0
        %v3395 = vsel %vm3390, %v3375, 0
        %3397 = vmatprep.subr.mxu0 0.0
        %3398 = vmatpush1.msra.mxu0 %v3351
        %3399 = vmatprep.subr.mxu0 0.0
        %3400 = vmatpush1.msra.mxu0 %v3353
        %3401 = vmatprep.subr.mxu0 0.0
        %3402 = vmatpush1.msra.mxu0 %v3355
        %3403 = vmatprep.subr.mxu0 0.0
        %3404 = vmatpush1.msra.mxu0 %v3357
        %3405 = vmatprep.subr.mxu0 0.0
        %3406 = vmatpush1.msra.mxu0 0.0
        %3407 = vmatprep.subr.mxu0 0.0
        %3408 = vmatpush1.msra.mxu0 0.0
        %3409 = vmatprep.subr.mxu0 0.0
        %3410 = vmatpush1.msra.mxu0 0.0
        %3411 = vmatprep.subr.mxu0 0.0
        %3412 = vmatpush1.msra.mxu0 0.0
        %3413 = vmatprep.subr.mxu0 0.0
        %3414 = vmatpush1.msra.mxu0 0.0
        %3415 = vmatprep.subr.mxu0 0.0
        %3416 = vmatpush1.msra.mxu0 0.0
        %3417 = vmatprep.subr.mxu0 0.0
        %3418 = vmatpush1.msra.mxu0 0.0
        %3419 = vmatprep.subr.mxu0 0.0
        %3420 = vmatpush1.msra.mxu0 0.0
        %3421 = vmatprep.subr.mxu0 0.0
        %3422 = vmatpush1.msra.mxu0 0.0
        %3423 = vmatprep.subr.mxu0 0.0
        %3424 = vmatpush1.msra.mxu0 0.0
        %3425 = vmatprep.subr.mxu0 0.0
        %3426 = vmatpush1.msra.mxu0 0.0
        %3427 = vmatprep.subr.mxu0 0.0
        %3428 = vmatpush1.msra.mxu0 0.0
        %3429 = vmatprep.subr.mxu0 0.0
        %3430 = vmatpush1.msra.mxu0 0.0
        %3431 = vmatprep.subr.mxu0 0.0
        %3432 = vmatpush1.msra.mxu0 0.0
        %3433 = vmatprep.subr.mxu0 0.0
        %3434 = vmatpush1.msra.mxu0 0.0
        %3435 = vmatprep.subr.mxu0 0.0
        %3436 = vmatpush1.msra.mxu0 0.0
        %3437 = vmatprep.subr.mxu0 0.0
        %3438 = vmatpush1.msra.mxu0 0.0
        %3439 = vmatprep.subr.mxu0 0.0
        %3440 = vmatpush1.msra.mxu0 0.0
        %3441 = vmatprep.subr.mxu0 0.0
        %3442 = vmatpush1.msra.mxu0 0.0
        %3443 = vmatprep.subr.mxu0 0.0
        %3444 = vmatpush1.msra.mxu0 0.0
        %3445 = vmatprep.subr.mxu0 0.0
        %3446 = vmatpush1.msra.mxu0 0.0
        %3447 = vmatprep.subr.mxu0 0.0
        %3448 = vmatpush1.msra.mxu0 0.0
        %3449 = vmatprep.subr.mxu0 0.0
        %3450 = vmatpush1.msra.mxu0 0.0
        %3451 = vmatprep.subr.mxu0 0.0
        %3452 = vmatpush1.msra.mxu0 0.0
        %3453 = vmatprep.subr.mxu0 0.0
        %3454 = vmatpush1.msra.mxu0 0.0
        %3455 = vmatprep.subr.mxu0 0.0
        %3456 = vmatpush1.msra.mxu0 0.0
        %3457 = vmatprep.subr.mxu0 0.0
        %3458 = vmatpush1.msra.mxu0 0.0
        %3459 = vmatprep.subr.mxu0 0.0
        %3460 = vmatpush1.msra.mxu0 0.0
        %3461 = vmatprep.mubr.f32.mxu0 0.0
        %3462 = vmatmul.mubr.f32.gmra.mrb[0].mxu0 %v3392
        %v3463 = vpop.f32.mrb[0].mxu0
        %v3464 = vadd.f32 1e-16, %v3463
        %v3465 = vpop.f32.mrb[0].mxu0
        %3466 = vmatprep.mubr.f32.mxu0 0.0
        %3467 = vmatmul.mubr.f32.gmra.mrb[0].mxu0 %v3395
        %v3468 = vpop.f32.mrb[0].mxu0
        %v3469 = vadd.f32 1e-16, %v3468
        %v3470 = vpop.f32.mrb[0].mxu0
        %3471 = vdwg.mxu0
        %v3472 = vrcp.pop %v3464
        %v3473 = vrcp.pop %v3469
        %v3474 = vmul.f32 %v3351, %v2157
        %v3475 = vmul.f32 %v3353, %v2158
        %v3476 = vmul.f32 %v3355, %v2159
        %v3477 = vmul.f32 %v3357, %v2160
        %v3478 = vpack.c.bf16 %v3475, %v3474
        %v3479 = vpack.c.bf16 %v3477, %v3476
        %3480 = vxpose.xlu0.c.b16.start [1/8] %v1365, 128
        %3481 = vxpose.xlu0.c.b16.cont [2/8] %v1366, 128
        %3482 = vxpose.xlu0.c.b16.cont [3/8] 0, 128
        %3483 = vxpose.xlu0.c.b16.cont [4/8] 0, 128
        %3484 = vxpose.xlu0.c.b16.cont [5/8] 0, 128
        %3485 = vxpose.xlu0.c.b16.cont [6/8] 0, 128
        %3486 = vxpose.xlu0.c.b16.cont [7/8] 0, 128
        %3487 = vxpose.xlu0.c.b16.end [8/8] 0, 128
        %v3488 = vpop.trf.xlu0
        %v3489 = vpop.trf.xlu0
        %v3490 = vpop.trf.xlu0
        %v3491 = vpop.trf.xlu0
        %v3492 = vpop.trf.xlu0
        %v3493 = vpop.trf.xlu0
        %v3494 = vpop.trf.xlu0
        %v3495 = vpop.trf.xlu0
        %v3497 = vsel %vm3390, %v3488, 0
        %3499 = vmatprep.subr.bf16.mxu0 0
        %3500 = vmatpush1.bf16.msra.mxu0 %v3478
        %3501 = vmatprep.subr.bf16.mxu0 0
        %3502 = vmatpush1.bf16.msra.mxu0 %v3479
        %3503 = vmatprep.subr.bf16.mxu0 0
        %3504 = vmatpush1.bf16.msra.mxu0 0
        %3505 = vmatprep.subr.bf16.mxu0 0
        %3506 = vmatpush1.bf16.msra.mxu0 0
        %3507 = vmatprep.subr.bf16.mxu0 0
        %3508 = vmatpush1.bf16.msra.mxu0 0
        %3509 = vmatprep.subr.bf16.mxu0 0
        %3510 = vmatpush1.bf16.msra.mxu0 0
        %3511 = vmatprep.subr.bf16.mxu0 0
        %3512 = vmatpush1.bf16.msra.mxu0 0
        %3513 = vmatprep.subr.bf16.mxu0 0
        %3514 = vmatpush1.bf16.msra.mxu0 0
        %3515 = vmatprep.subr.bf16.mxu0 0
        %3516 = vmatpush1.bf16.msra.mxu0 0
        %3517 = vmatprep.subr.bf16.mxu0 0
        %3518 = vmatpush1.bf16.msra.mxu0 0
        %3519 = vmatprep.subr.bf16.mxu0 0
        %3520 = vmatpush1.bf16.msra.mxu0 0
        %3521 = vmatprep.subr.bf16.mxu0 0
        %3522 = vmatpush1.bf16.msra.mxu0 0
        %3523 = vmatprep.subr.bf16.mxu0 0
        %3524 = vmatpush1.bf16.msra.mxu0 0
        %3525 = vmatprep.subr.bf16.mxu0 0
        %3526 = vmatpush1.bf16.msra.mxu0 0
        %3527 = vmatprep.subr.bf16.mxu0 0
        %3528 = vmatpush1.bf16.msra.mxu0 0
        %3529 = vmatprep.subr.bf16.mxu0 0
        %3530 = vmatpush1.bf16.msra.mxu0 0
        %3531 = vmatprep.mubr.bf16.mxu0 0
        %3532 = vmatmul.mubr.bf16.gmra.mrb[0].mxu0 %v3497
        %v3533 = vpop.f32.mrb[0].mxu0
        %v3534 = vadd.f32 0.0, %v3533
        %v3535 = vpop.f32.mrb[0].mxu0
        %v3536 = vpop.f32.mrb[0].mxu0
        %v3537 = vadd.f32 0.0, %v3536
        %v3538 = vpop.f32.mrb[0].mxu0
        %3539 = vdwg.mxu0
        %v3540 = vmul.f32 %v3534, %v3472
        %v3541 = vmul.f32 %v3537, %v3473
        %v3542 = vmul.f32 %v3540, %v1979
        %v3543 = vmul.f32 %v3541, %v1982
        %v3544 = vadd.f32 %v3542, %v1665
        %v3545 = vadd.f32 %v3543, %v1669
        %v3546 = vld [vmem:[%s6] sm:$0xff]
        %v3547 = vld [vmem:[%s6 + $0x8] sm:$0xff]
        %v3548 = vld [vmem:[%s7] sm:$0x3]
        %3549 = vadd.xlane.f32.xlu0 %v3544
        %v3550 = vpop.xlane.xlu0 %3549
        %3551 = vadd.xlane.f32.xlu0 %v3545
        %v3552 = vpop.xlane.xlu0 %3551
        %3553 = vxpose.xlu0.b32.start [1/16] %v3546, 128
        %3554 = vxpose.xlu0.b32.cont [2/16] %v3547, 128
        %3555 = vxpose.xlu0.b32.cont [3/16] 0.0, 128
        %3556 = vxpose.xlu0.b32.cont [4/16] 0.0, 128
        %3557 = vxpose.xlu0.b32.cont [5/16] 0.0, 128
        %3558 = vxpose.xlu0.b32.cont [6/16] 0.0, 128
        %3559 = vxpose.xlu0.b32.cont [7/16] 0.0, 128
        %3560 = vxpose.xlu0.b32.cont [8/16] 0.0, 128
        %3561 = vxpose.xlu0.b32.cont [9/16] 0.0, 128
        %3562 = vxpose.xlu0.b32.cont [10/16] 0.0, 128
        %3563 = vxpose.xlu0.b32.cont [11/16] 0.0, 128
        %3564 = vxpose.xlu0.b32.cont [12/16] 0.0, 128
        %3565 = vxpose.xlu0.b32.cont [13/16] 0.0, 128
        %3566 = vxpose.xlu0.b32.cont [14/16] 0.0, 128
        %3567 = vxpose.xlu0.b32.cont [15/16] 0.0, 128
        %3568 = vxpose.xlu0.b32.end [16/16] 0.0, 128
        %v3569 = vpop.trf.xlu0
        %v3570 = vpop.trf.xlu0
        %v3571 = vpop.trf.xlu0
        %v3572 = vpop.trf.xlu0
        %v3573 = vpop.trf.xlu0
        %v3574 = vpop.trf.xlu0
        %v3575 = vpop.trf.xlu0
        %v3576 = vpop.trf.xlu0
        %v3577 = vpop.trf.xlu0
        %v3578 = vpop.trf.xlu0
        %v3579 = vpop.trf.xlu0
        %v3580 = vpop.trf.xlu0
        %v3581 = vpop.trf.xlu0
        %v3582 = vpop.trf.xlu0
        %v3583 = vpop.trf.xlu0
        %v3584 = vpop.trf.xlu0
        %v3586 = vsel %vm1940, %v3569, 0
        %3588 = vmatprep.subr.mxu0 0.0
        %3589 = vmatpush1.msra.mxu0 %v3550
        %3590 = vmatprep.subr.mxu0 0.0
        %3591 = vmatpush1.msra.mxu0 %v3552
        %3592 = vmatprep.subr.mxu0 0.0
        %3593 = vmatpush1.msra.mxu0 0.0
        %3594 = vmatprep.subr.mxu0 0.0
        %3595 = vmatpush1.msra.mxu0 0.0
        %3596 = vmatprep.subr.mxu0 0.0
        %3597 = vmatpush1.msra.mxu0 0.0
        %3598 = vmatprep.subr.mxu0 0.0
        %3599 = vmatpush1.msra.mxu0 0.0
        %3600 = vmatprep.subr.mxu0 0.0
        %3601 = vmatpush1.msra.mxu0 0.0
        %3602 = vmatprep.subr.mxu0 0.0
        %3603 = vmatpush1.msra.mxu0 0.0
        %3604 = vmatprep.subr.mxu0 0.0
        %3605 = vmatpush1.msra.mxu0 0.0
        %3606 = vmatprep.subr.mxu0 0.0
        %3607 = vmatpush1.msra.mxu0 0.0
        %3608 = vmatprep.subr.mxu0 0.0
        %3609 = vmatpush1.msra.mxu0 0.0
        %3610 = vmatprep.subr.mxu0 0.0
        %3611 = vmatpush1.msra.mxu0 0.0
        %3612 = vmatprep.subr.mxu0 0.0
        %3613 = vmatpush1.msra.mxu0 0.0
        %3614 = vmatprep.subr.mxu0 0.0
        %3615 = vmatpush1.msra.mxu0 0.0
        %3616 = vmatprep.subr.mxu0 0.0
        %3617 = vmatpush1.msra.mxu0 0.0
        %3618 = vmatprep.subr.mxu0 0.0
        %3619 = vmatpush1.msra.mxu0 0.0
        %3620 = vmatprep.subr.mxu0 0.0
        %3621 = vmatpush1.msra.mxu0 0.0
        %3622 = vmatprep.subr.mxu0 0.0
        %3623 = vmatpush1.msra.mxu0 0.0
        %3624 = vmatprep.subr.mxu0 0.0
        %3625 = vmatpush1.msra.mxu0 0.0
        %3626 = vmatprep.subr.mxu0 0.0
        %3627 = vmatpush1.msra.mxu0 0.0
        %3628 = vmatprep.subr.mxu0 0.0
        %3629 = vmatpush1.msra.mxu0 0.0
        %3630 = vmatprep.subr.mxu0 0.0
        %3631 = vmatpush1.msra.mxu0 0.0
        %3632 = vmatprep.subr.mxu0 0.0
        %3633 = vmatpush1.msra.mxu0 0.0
        %3634 = vmatprep.subr.mxu0 0.0
        %3635 = vmatpush1.msra.mxu0 0.0
        %3636 = vmatprep.subr.mxu0 0.0
        %3637 = vmatpush1.msra.mxu0 0.0
        %3638 = vmatprep.subr.mxu0 0.0
        %3639 = vmatpush1.msra.mxu0 0.0
        %3640 = vmatprep.subr.mxu0 0.0
        %3641 = vmatpush1.msra.mxu0 0.0
        %3642 = vmatprep.subr.mxu0 0.0
        %3643 = vmatpush1.msra.mxu0 0.0
        %3644 = vmatprep.subr.mxu0 0.0
        %3645 = vmatpush1.msra.mxu0 0.0
        %3646 = vmatprep.subr.mxu0 0.0
        %3647 = vmatpush1.msra.mxu0 0.0
        %3648 = vmatprep.subr.mxu0 0.0
        %3649 = vmatpush1.msra.mxu0 0.0
        %3650 = vmatprep.subr.mxu0 0.0
        %3651 = vmatpush1.msra.mxu0 0.0
        %3652 = vmatprep.mubr.f32.mxu0 0.0
        %3653 = vmatmul.mubr.f32.gmra.mrb[0].mxu0 %v3586
        %v3654 = vpop.f32.mrb[0].mxu0
        %v3655 = vadd.f32 0.0, %v3654
        %v3656 = vpop.f32.mrb[0].mxu0
        %3657 = vdwg.mxu0
        %v3658 = vmul.f32 %v3655, %v3548
        %vm3659 = vcmask 15360
        %v3661 = vsel %vm3659, %v3546, 0
        %v3664 = vsel %vm3659, %v3547, 0
        %vm3666 = vcmask 1041408
        %v3668 = vsel %vm3666, %v3658, 0
        %3670 = vmatprep.subr.mxu0 0.0
        %3671 = vmatpush1.msra.mxu0 %v3668
        %3672 = vmatprep.subr.mxu0 0.0
        %3673 = vmatpush1.msra.mxu0 0.0
        %3674 = vmatprep.subr.mxu0 0.0
        %3675 = vmatpush1.msra.mxu0 0.0
        %3676 = vmatprep.subr.mxu0 0.0
        %3677 = vmatpush1.msra.mxu0 0.0
        %3678 = vmatprep.subr.mxu0 0.0
        %3679 = vmatpush1.msra.mxu0 0.0
        %3680 = vmatprep.subr.mxu0 0.0
        %3681 = vmatpush1.msra.mxu0 0.0
        %3682 = vmatprep.subr.mxu0 0.0
        %3683 = vmatpush1.msra.mxu0 0.0
        %3684 = vmatprep.subr.mxu0 0.0
        %3685 = vmatpush1.msra.mxu0 0.0
        %3686 = vmatprep.subr.mxu0 0.0
        %3687 = vmatpush1.msra.mxu0 0.0
        %3688 = vmatprep.subr.mxu0 0.0
        %3689 = vmatpush1.msra.mxu0 0.0
        %3690 = vmatprep.subr.mxu0 0.0
        %3691 = vmatpush1.msra.mxu0 0.0
        %3692 = vmatprep.subr.mxu0 0.0
        %3693 = vmatpush1.msra.mxu0 0.0
        %3694 = vmatprep.subr.mxu0 0.0
        %3695 = vmatpush1.msra.mxu0 0.0
        %3696 = vmatprep.subr.mxu0 0.0
        %3697 = vmatpush1.msra.mxu0 0.0
        %3698 = vmatprep.subr.mxu0 0.0
        %3699 = vmatpush1.msra.mxu0 0.0
        %3700 = vmatprep.subr.mxu0 0.0
        %3701 = vmatpush1.msra.mxu0 0.0
        %3702 = vmatprep.subr.mxu0 0.0
        %3703 = vmatpush1.msra.mxu0 0.0
        %3704 = vmatprep.subr.mxu0 0.0
        %3705 = vmatpush1.msra.mxu0 0.0
        %3706 = vmatprep.subr.mxu0 0.0
        %3707 = vmatpush1.msra.mxu0 0.0
        %3708 = vmatprep.subr.mxu0 0.0
        %3709 = vmatpush1.msra.mxu0 0.0
        %3710 = vmatprep.subr.mxu0 0.0
        %3711 = vmatpush1.msra.mxu0 0.0
        %3712 = vmatprep.subr.mxu0 0.0
        %3713 = vmatpush1.msra.mxu0 0.0
        %3714 = vmatprep.subr.mxu0 0.0
        %3715 = vmatpush1.msra.mxu0 0.0
        %3716 = vmatprep.subr.mxu0 0.0
        %3717 = vmatpush1.msra.mxu0 0.0
        %3718 = vmatprep.subr.mxu0 0.0
        %3719 = vmatpush1.msra.mxu0 0.0
        %3720 = vmatprep.subr.mxu0 0.0
        %3721 = vmatpush1.msra.mxu0 0.0
        %3722 = vmatprep.subr.mxu0 0.0
        %3723 = vmatpush1.msra.mxu0 0.0
        %3724 = vmatprep.subr.mxu0 0.0
        %3725 = vmatpush1.msra.mxu0 0.0
        %3726 = vmatprep.subr.mxu0 0.0
        %3727 = vmatpush1.msra.mxu0 0.0
        %3728 = vmatprep.subr.mxu0 0.0
        %3729 = vmatpush1.msra.mxu0 0.0
        %3730 = vmatprep.subr.mxu0 0.0
        %3731 = vmatpush1.msra.mxu0 0.0
        %3732 = vmatprep.subr.mxu0 0.0
        %3733 = vmatpush1.msra.mxu0 0.0
        %3734 = vmatprep.mubr.f32.mxu0 0.0
        %3735 = vmatmul.mubr.f32.gmra.mrb[0].mxu0 %v3661
        %v3736 = vpop.f32.mrb[0].mxu0
        %v3737 = vadd.f32 0.0, %v3736
        %v3738 = vpop.f32.mrb[0].mxu0
        %3739 = vmatprep.mubr.f32.mxu0 0.0
        %3740 = vmatmul.mubr.f32.gmra.mrb[0].mxu0 %v3664
        %v3741 = vpop.f32.mrb[0].mxu0
        %v3742 = vadd.f32 0.0, %v3741
        %v3743 = vpop.f32.mrb[0].mxu0
        %3744 = vdwg.mxu0
        %3746 = vset.pattern.permute.xlu0 0
        %3747 = vperm.xlu0 %3746, %v3737
        %v3748 = vpop.permute.xlu0 %3747
        %3751 = vset.pattern.permute.xlu0 0
        %3752 = vperm.xlu0 %3751, %v3742
        %v3753 = vpop.permute.xlu0 %3752
        %v3755 = vsub.f32 %v3544, %v3748
        %v3756 = vsub.f32 %v3545, %v3753
        %v3757 = vmul.f32 %v3755, %v3755
        %v3758 = vmul.f32 %v3756, %v3756
        %3759 = vadd.xlane.f32.xlu0 %v3757
        %v3760 = vpop.xlane.xlu0 %3759
        %3761 = vadd.xlane.f32.xlu0 %v3758
        %v3762 = vpop.xlane.xlu0 %3761
        %3763 = vmatprep.subr.mxu0 0.0
        %3764 = vmatpush1.msra.mxu0 %v3760
        %3765 = vmatprep.subr.mxu0 0.0
        %3766 = vmatpush1.msra.mxu0 %v3762
        %3767 = vmatprep.subr.mxu0 0.0
        %3768 = vmatpush1.msra.mxu0 0.0
        %3769 = vmatprep.subr.mxu0 0.0
        %3770 = vmatpush1.msra.mxu0 0.0
        %3771 = vmatprep.subr.mxu0 0.0
        %3772 = vmatpush1.msra.mxu0 0.0
        %3773 = vmatprep.subr.mxu0 0.0
        %3774 = vmatpush1.msra.mxu0 0.0
        %3775 = vmatprep.subr.mxu0 0.0
        %3776 = vmatpush1.msra.mxu0 0.0
        %3777 = vmatprep.subr.mxu0 0.0
        %3778 = vmatpush1.msra.mxu0 0.0
        %3779 = vmatprep.subr.mxu0 0.0
        %3780 = vmatpush1.msra.mxu0 0.0
        %3781 = vmatprep.subr.mxu0 0.0
        %3782 = vmatpush1.msra.mxu0 0.0
        %3783 = vmatprep.subr.mxu0 0.0
        %3784 = vmatpush1.msra.mxu0 0.0
        %3785 = vmatprep.subr.mxu0 0.0
        %3786 = vmatpush1.msra.mxu0 0.0
        %3787 = vmatprep.subr.mxu0 0.0
        %3788 = vmatpush1.msra.mxu0 0.0
        %3789 = vmatprep.subr.mxu0 0.0
        %3790 = vmatpush1.msra.mxu0 0.0
        %3791 = vmatprep.subr.mxu0 0.0
        %3792 = vmatpush1.msra.mxu0 0.0
        %3793 = vmatprep.subr.mxu0 0.0
        %3794 = vmatpush1.msra.mxu0 0.0
        %3795 = vmatprep.subr.mxu0 0.0
        %3796 = vmatpush1.msra.mxu0 0.0
        %3797 = vmatprep.subr.mxu0 0.0
        %3798 = vmatpush1.msra.mxu0 0.0
        %3799 = vmatprep.subr.mxu0 0.0
        %3800 = vmatpush1.msra.mxu0 0.0
        %3801 = vmatprep.subr.mxu0 0.0
        %3802 = vmatpush1.msra.mxu0 0.0
        %3803 = vmatprep.subr.mxu0 0.0
        %3804 = vmatpush1.msra.mxu0 0.0
        %3805 = vmatprep.subr.mxu0 0.0
        %3806 = vmatpush1.msra.mxu0 0.0
        %3807 = vmatprep.subr.mxu0 0.0
        %3808 = vmatpush1.msra.mxu0 0.0
        %3809 = vmatprep.subr.mxu0 0.0
        %3810 = vmatpush1.msra.mxu0 0.0
        %3811 = vmatprep.subr.mxu0 0.0
        %3812 = vmatpush1.msra.mxu0 0.0
        %3813 = vmatprep.subr.mxu0 0.0
        %3814 = vmatpush1.msra.mxu0 0.0
        %3815 = vmatprep.subr.mxu0 0.0
        %3816 = vmatpush1.msra.mxu0 0.0
        %3817 = vmatprep.subr.mxu0 0.0
        %3818 = vmatpush1.msra.mxu0 0.0
        %3819 = vmatprep.subr.mxu0 0.0
        %3820 = vmatpush1.msra.mxu0 0.0
        %3821 = vmatprep.subr.mxu0 0.0
        %3822 = vmatpush1.msra.mxu0 0.0
        %3823 = vmatprep.subr.mxu0 0.0
        %3824 = vmatpush1.msra.mxu0 0.0
        %3825 = vmatprep.subr.mxu0 0.0
        %3826 = vmatpush1.msra.mxu0 0.0
        %3827 = vmatprep.mubr.f32.mxu0 0.0
        %3828 = vmatmul.mubr.f32.gmra.mrb[0].mxu0 %v3586
        %v3829 = vpop.f32.mrb[0].mxu0
        %v3830 = vadd.f32 0.0, %v3829
        %v3831 = vpop.f32.mrb[0].mxu0
        %3832 = vdwg.mxu0
        %v3833 = vmul.f32 %v3830, %v3548
        %v3834 = vadd.f32 %v3833, 1e-08
        %v3835 = vrsqrt.pop %v3834
        %v3837 = vsel %vm3666, %v3835, 0
        %3839 = vmatprep.subr.mxu0 0.0
        %3840 = vmatpush1.msra.mxu0 %v3837
        %3841 = vmatprep.subr.mxu0 0.0
        %3842 = vmatpush1.msra.mxu0 0.0
        %3843 = vmatprep.subr.mxu0 0.0
        %3844 = vmatpush1.msra.mxu0 0.0
        %3845 = vmatprep.subr.mxu0 0.0
        %3846 = vmatpush1.msra.mxu0 0.0
        %3847 = vmatprep.subr.mxu0 0.0
        %3848 = vmatpush1.msra.mxu0 0.0
        %3849 = vmatprep.subr.mxu0 0.0
        %3850 = vmatpush1.msra.mxu0 0.0
        %3851 = vmatprep.subr.mxu0 0.0
        %3852 = vmatpush1.msra.mxu0 0.0
        %3853 = vmatprep.subr.mxu0 0.0
        %3854 = vmatpush1.msra.mxu0 0.0
        %3855 = vmatprep.subr.mxu0 0.0
        %3856 = vmatpush1.msra.mxu0 0.0
        %3857 = vmatprep.subr.mxu0 0.0
        %3858 = vmatpush1.msra.mxu0 0.0
        %3859 = vmatprep.subr.mxu0 0.0
        %3860 = vmatpush1.msra.mxu0 0.0
        %3861 = vmatprep.subr.mxu0 0.0
        %3862 = vmatpush1.msra.mxu0 0.0
        %3863 = vmatprep.subr.mxu0 0.0
        %3864 = vmatpush1.msra.mxu0 0.0
        %3865 = vmatprep.subr.mxu0 0.0
        %3866 = vmatpush1.msra.mxu0 0.0
        %3867 = vmatprep.subr.mxu0 0.0
        %3868 = vmatpush1.msra.mxu0 0.0
        %3869 = vmatprep.subr.mxu0 0.0
        %3870 = vmatpush1.msra.mxu0 0.0
        %3871 = vmatprep.subr.mxu0 0.0
        %3872 = vmatpush1.msra.mxu0 0.0
        %3873 = vmatprep.subr.mxu0 0.0
        %3874 = vmatpush1.msra.mxu0 0.0
        %3875 = vmatprep.subr.mxu0 0.0
        %3876 = vmatpush1.msra.mxu0 0.0
        %3877 = vmatprep.subr.mxu0 0.0
        %3878 = vmatpush1.msra.mxu0 0.0
        %3879 = vmatprep.subr.mxu0 0.0
        %3880 = vmatpush1.msra.mxu0 0.0
        %3881 = vmatprep.subr.mxu0 0.0
        %3882 = vmatpush1.msra.mxu0 0.0
        %3883 = vmatprep.subr.mxu0 0.0
        %3884 = vmatpush1.msra.mxu0 0.0
        %3885 = vmatprep.subr.mxu0 0.0
        %3886 = vmatpush1.msra.mxu0 0.0
        %3887 = vmatprep.subr.mxu0 0.0
        %3888 = vmatpush1.msra.mxu0 0.0
        %3889 = vmatprep.subr.mxu0 0.0
        %3890 = vmatpush1.msra.mxu0 0.0
        %3891 = vmatprep.subr.mxu0 0.0
        %3892 = vmatpush1.msra.mxu0 0.0
        %3893 = vmatprep.subr.mxu0 0.0
        %3894 = vmatpush1.msra.mxu0 0.0
        %3895 = vmatprep.subr.mxu0 0.0
        %3896 = vmatpush1.msra.mxu0 0.0
        %3897 = vmatprep.subr.mxu0 0.0
        %3898 = vmatpush1.msra.mxu0 0.0
        %3899 = vmatprep.subr.mxu0 0.0
        %3900 = vmatpush1.msra.mxu0 0.0
        %3901 = vmatprep.subr.mxu0 0.0
        %3902 = vmatpush1.msra.mxu0 0.0
        %3903 = vmatprep.mubr.f32.mxu0 0.0
        %3904 = vmatmul.mubr.f32.gmra.mrb[0].mxu0 %v3661
        %v3905 = vpop.f32.mrb[0].mxu0
        %v3906 = vadd.f32 0.0, %v3905
        %v3907 = vpop.f32.mrb[0].mxu0
        %3908 = vmatprep.mubr.f32.mxu0 0.0
        %3909 = vmatmul.mubr.f32.gmra.mrb[0].mxu0 %v3664
        %v3910 = vpop.f32.mrb[0].mxu0
        %v3911 = vadd.f32 0.0, %v3910
        %v3912 = vpop.f32.mrb[0].mxu0
        %3913 = vdwg.mxu0
        %3915 = vset.pattern.permute.xlu0 0
        %3916 = vperm.xlu0 %3915, %v3906
        %v3917 = vpop.permute.xlu0 %3916
        %3920 = vset.pattern.permute.xlu0 0
        %3921 = vperm.xlu0 %3920, %v3911
        %v3922 = vpop.permute.xlu0 %3921
        %v3924 = vmul.f32 %v3755, %v3917
        %v3925 = vmul.f32 %v3756, %v3922
        %v3926 = vpack.c.bf16 %v3925, %v3924
        %v3927 = vld [vmem:[%s945] sm:$0xf]
        %v3928 = vld [vmem:[%s945 + $0x4] sm:$0xf]
        %v3929 = vld [vmem:[%s945 + $0x8] sm:$0xf]
        %v3930 = vld [vmem:[%s945 + $0xc] sm:$0xf]
        %v3931 = vld [vmem:[%s945 + $0x10] sm:$0xf]
        %v3932 = vld [vmem:[%s945 + $0x14] sm:$0xf]
        %v3933 = vld [vmem:[%s945 + $0x18] sm:$0xf]
        %v3934 = vld [vmem:[%s945 + $0x1c] sm:$0xf]
        %v3935 = vld [vmem:[%s945 + $0x20] sm:$0xf]
        %v3936 = vld [vmem:[%s945 + $0x24] sm:$0xf]
        %v3937 = vld [vmem:[%s945 + $0x28] sm:$0xf]
        %v3938 = vld [vmem:[%s945 + $0x2c] sm:$0xf]
        %v3939 = vld [vmem:[%s945 + $0x30] sm:$0xf]
        %v3940 = vld [vmem:[%s945 + $0x34] sm:$0xf]
        %v3941 = vld [vmem:[%s945 + $0x38] sm:$0xf]
        %v3942 = vld [vmem:[%s945 + $0x3c] sm:$0xf]
        %v3943 = vlaneseq
        %v3944 = vshrl.u32 %v3943, 7
        %v3945 = vsub.s32 3, %v3944
        %v3946 = vrot.slane %v1369, %v3945
        %v3963 = vunpack.c.l.b16 %v3927
        %v3964 = vunpack.c.l.b16 %v3928
        %v3965 = vunpack.c.l.b16 %v3929
        %v3966 = vunpack.c.l.b16 %v3930
        %v3967 = vunpack.c.l.b16 %v3931
        %v3968 = vunpack.c.l.b16 %v3932
        %v3969 = vunpack.c.l.b16 %v3933
        %v3970 = vunpack.c.l.b16 %v3934
        %v3971 = vunpack.c.l.b16 %v3935
        %v3972 = vunpack.c.l.b16 %v3936
        %v3973 = vunpack.c.l.b16 %v3937
        %v3974 = vunpack.c.l.b16 %v3938
        %v3975 = vunpack.c.l.b16 %v3939
        %v3976 = vunpack.c.l.b16 %v3940
        %v3977 = vunpack.c.l.b16 %v3941
        %v3978 = vunpack.c.l.b16 %v3942
        %v3979 = vpack.c.b16 %v3964, %v3963
        %v3980 = vpack.c.b16 %v3966, %v3965
        %v3981 = vpack.c.b16 %v3968, %v3967
        %v3982 = vpack.c.b16 %v3970, %v3969
        %v3983 = vpack.c.b16 %v3972, %v3971
        %v3984 = vpack.c.b16 %v3974, %v3973
        %v3985 = vpack.c.b16 %v3976, %v3975
        %v3986 = vpack.c.b16 %v3978, %v3977
        %3995 = vmatprep.subr.bf16.mxu0 0
        %3996 = vmatpush1.bf16.msra.mxu0 %v3979
        %3997 = vmatprep.subr.bf16.mxu0 0
        %3998 = vmatpush1.bf16.msra.mxu0 %v3980
        %3999 = vmatprep.subr.bf16.mxu0 0
        %4000 = vmatpush1.bf16.msra.mxu0 %v3981
        %4001 = vmatprep.subr.bf16.mxu0 0
        %4002 = vmatpush1.bf16.msra.mxu0 %v3982
        %4003 = vmatprep.subr.bf16.mxu0 0
        %4004 = vmatpush1.bf16.msra.mxu0 %v3983
        %4005 = vmatprep.subr.bf16.mxu0 0
        %4006 = vmatpush1.bf16.msra.mxu0 %v3984
        %4007 = vmatprep.subr.bf16.mxu0 0
        %4008 = vmatpush1.bf16.msra.mxu0 %v3985
        %4009 = vmatprep.subr.bf16.mxu0 0
        %4010 = vmatpush1.bf16.msra.mxu0 %v3986
        %4011 = vmatprep.subr.bf16.mxu0 0
        %4012 = vmatpush1.bf16.msra.mxu0 0
        %4013 = vmatprep.subr.bf16.mxu0 0
        %4014 = vmatpush1.bf16.msra.mxu0 0
        %4015 = vmatprep.subr.bf16.mxu0 0
        %4016 = vmatpush1.bf16.msra.mxu0 0
        %4017 = vmatprep.subr.bf16.mxu0 0
        %4018 = vmatpush1.bf16.msra.mxu0 0
        %4019 = vmatprep.subr.bf16.mxu0 0
        %4020 = vmatpush1.bf16.msra.mxu0 0
        %4021 = vmatprep.subr.bf16.mxu0 0
        %4022 = vmatpush1.bf16.msra.mxu0 0
        %4023 = vmatprep.subr.bf16.mxu0 0
        %4024 = vmatpush1.bf16.msra.mxu0 0
        %4025 = vmatprep.subr.bf16.mxu0 0
        %4026 = vmatpush1.bf16.msra.mxu0 0
        %4027 = vmatprep.mubr.bf16.mxu0 0
        %4028 = vmatmul.mubr.bf16.gmra.mrb[0].mxu0 %v3926
        %v4029 = vpop.f32.mrb[0].mxu0
        %v4030 = vadd.f32 %v3946, %v4029
        %v4031 = vpop.f32.mrb[0].mxu0
        %v4032 = vpop.f32.mrb[0].mxu0
        %v4033 = vadd.f32 %v3946, %v4032
        %v4034 = vpop.f32.mrb[0].mxu0
        %4035 = vdwg.mxu0
        %v4036 = vxor.u32 %v4030, 2147483648
        %v4037 = vxor.u32 %v4033, 2147483648
        %v4038 = vmul.f32 %v4036, 1.442695
        %v4039 = vpow.pop %v4038
        %v4040 = vmul.f32 %v4037, 1.442695
        %v4041 = vpow.pop %v4040
        %v4042 = vadd.f32 %v4039, 1.0
        %v4043 = vadd.f32 %v4041, 1.0
        %v4044 = vrcp.pop %v4042
        %v4045 = vmul.f32 1.0, %v4044
        %v4046 = vrcp.pop %v4043
        %v4047 = vmul.f32 1.0, %v4046
        %v4048 = vmul.f32 %v4030, %v4045
        %v4049 = vmul.f32 %v4033, %v4047
        %v4050 = vpack.c.bf16 %v4049, %v4048
        %s4051 = scalar_lea.vmem %s945, 64 [#allocation20]
        %v4052 = vld [vmem:[%s4051] sm:$0xf]
        %v4053 = vld [vmem:[%s4051 + $0x4] sm:$0xf]
        %v4054 = vld [vmem:[%s4051 + $0x8] sm:$0xf]
        %v4055 = vld [vmem:[%s4051 + $0xc] sm:$0xf]
        %v4056 = vld [vmem:[%s4051 + $0x10] sm:$0xf]
        %v4057 = vld [vmem:[%s4051 + $0x14] sm:$0xf]
        %v4058 = vld [vmem:[%s4051 + $0x18] sm:$0xf]
        %v4059 = vld [vmem:[%s4051 + $0x1c] sm:$0xf]
        %v4060 = vld [vmem:[%s4051 + $0x20] sm:$0xf]
        %v4061 = vld [vmem:[%s4051 + $0x24] sm:$0xf]
        %v4062 = vld [vmem:[%s4051 + $0x28] sm:$0xf]
        %v4063 = vld [vmem:[%s4051 + $0x2c] sm:$0xf]
        %v4064 = vld [vmem:[%s4051 + $0x30] sm:$0xf]
        %v4065 = vld [vmem:[%s4051 + $0x34] sm:$0xf]
        %v4066 = vld [vmem:[%s4051 + $0x38] sm:$0xf]
        %v4067 = vld [vmem:[%s4051 + $0x3c] sm:$0xf]
        %v4068 = vlaneseq
        %v4069 = vshrl.u32 %v4068, 7
        %v4070 = vsub.s32 4, %v4069
        %v4071 = vrot.slane %v1369, %v4070
        %v4088 = vunpack.c.l.b16 %v4052
        %v4089 = vunpack.c.l.b16 %v4053
        %v4090 = vunpack.c.l.b16 %v4054
        %v4091 = vunpack.c.l.b16 %v4055
        %v4092 = vunpack.c.l.b16 %v4056
        %v4093 = vunpack.c.l.b16 %v4057
        %v4094 = vunpack.c.l.b16 %v4058
        %v4095 = vunpack.c.l.b16 %v4059
        %v4096 = vunpack.c.l.b16 %v4060
        %v4097 = vunpack.c.l.b16 %v4061
        %v4098 = vunpack.c.l.b16 %v4062
        %v4099 = vunpack.c.l.b16 %v4063
        %v4100 = vunpack.c.l.b16 %v4064
        %v4101 = vunpack.c.l.b16 %v4065
        %v4102 = vunpack.c.l.b16 %v4066
        %v4103 = vunpack.c.l.b16 %v4067
        %v4104 = vpack.c.b16 %v4089, %v4088
        %v4105 = vpack.c.b16 %v4091, %v4090
        %v4106 = vpack.c.b16 %v4093, %v4092
        %v4107 = vpack.c.b16 %v4095, %v4094
        %v4108 = vpack.c.b16 %v4097, %v4096
        %v4109 = vpack.c.b16 %v4099, %v4098
        %v4110 = vpack.c.b16 %v4101, %v4100
        %v4111 = vpack.c.b16 %v4103, %v4102
        %4120 = vmatprep.subr.bf16.mxu0 0
        %4121 = vmatpush1.bf16.msra.mxu0 %v4104
        %4122 = vmatprep.subr.bf16.mxu0 0
        %4123 = vmatpush1.bf16.msra.mxu0 %v4105
        %4124 = vmatprep.subr.bf16.mxu0 0
        %4125 = vmatpush1.bf16.msra.mxu0 %v4106
        %4126 = vmatprep.subr.bf16.mxu0 0
        %4127 = vmatpush1.bf16.msra.mxu0 %v4107
        %4128 = vmatprep.subr.bf16.mxu0 0
        %4129 = vmatpush1.bf16.msra.mxu0 %v4108
        %4130 = vmatprep.subr.bf16.mxu0 0
        %4131 = vmatpush1.bf16.msra.mxu0 %v4109
        %4132 = vmatprep.subr.bf16.mxu0 0
        %4133 = vmatpush1.bf16.msra.mxu0 %v4110
        %4134 = vmatprep.subr.bf16.mxu0 0
        %4135 = vmatpush1.bf16.msra.mxu0 %v4111
        %4136 = vmatprep.subr.bf16.mxu0 0
        %4137 = vmatpush1.bf16.msra.mxu0 0
        %4138 = vmatprep.subr.bf16.mxu0 0
        %4139 = vmatpush1.bf16.msra.mxu0 0
        %4140 = vmatprep.subr.bf16.mxu0 0
        %4141 = vmatpush1.bf16.msra.mxu0 0
        %4142 = vmatprep.subr.bf16.mxu0 0
        %4143 = vmatpush1.bf16.msra.mxu0 0
        %4144 = vmatprep.subr.bf16.mxu0 0
        %4145 = vmatpush1.bf16.msra.mxu0 0
        %4146 = vmatprep.subr.bf16.mxu0 0
        %4147 = vmatpush1.bf16.msra.mxu0 0
        %4148 = vmatprep.subr.bf16.mxu0 0
        %4149 = vmatpush1.bf16.msra.mxu0 0
        %4150 = vmatprep.subr.bf16.mxu0 0
        %4151 = vmatpush1.bf16.msra.mxu0 0
        %4152 = vmatprep.mubr.bf16.mxu0 0
        %4153 = vmatmul.mubr.bf16.gmra.mrb[0].mxu0 %v4050
        %v4154 = vpop.f32.mrb[0].mxu0
        %v4155 = vadd.f32 %v4071, %v4154
        %v4156 = vpop.f32.mrb[0].mxu0
        %v4157 = vpop.f32.mrb[0].mxu0
        %v4158 = vadd.f32 %v4071, %v4157
        %v4159 = vpop.f32.mrb[0].mxu0
        %4160 = vdwg.mxu0
        %v4161 = vxor.u32 %v4155, 2147483648
        %v4162 = vxor.u32 %v4158, 2147483648
        %v4163 = vmul.f32 %v4161, 1.442695
        %v4164 = vpow.pop %v4163
        %v4165 = vmul.f32 %v4162, 1.442695
        %v4166 = vpow.pop %v4165
        %v4167 = vadd.f32 %v4164, 1.0
        %v4168 = vadd.f32 %v4166, 1.0
        %v4169 = vrcp.pop %v4167
        %v4170 = vmul.f32 1.0, %v4169
        %v4171 = vrcp.pop %v4168
        %v4172 = vmul.f32 1.0, %v4171
        %v4173 = vmul.f32 %v4155, %v4170
        %v4174 = vmul.f32 %v4158, %v4172
        %v4175 = vadd.f32 %v3924, %v4173
        %v4176 = vadd.f32 %v3925, %v4174
        %v4177 = vpack.c.bf16 %v4176, %v4175
        %s4178 = scalar_lea.vmem %s945, 128 [#allocation20]
        %v4179 = vld [vmem:[%s4178] sm:$0xf]
        %v4180 = vld [vmem:[%s4178 + $0x4] sm:$0xf]
        %v4181 = vld [vmem:[%s4178 + $0x8] sm:$0xf]
        %v4182 = vld [vmem:[%s4178 + $0xc] sm:$0xf]
        %v4183 = vld [vmem:[%s4178 + $0x10] sm:$0xf]
        %v4184 = vld [vmem:[%s4178 + $0x14] sm:$0xf]
        %v4185 = vld [vmem:[%s4178 + $0x18] sm:$0xf]
        %v4186 = vld [vmem:[%s4178 + $0x1c] sm:$0xf]
        %v4187 = vld [vmem:[%s4178 + $0x20] sm:$0xf]
        %v4188 = vld [vmem:[%s4178 + $0x24] sm:$0xf]
        %v4189 = vld [vmem:[%s4178 + $0x28] sm:$0xf]
        %v4190 = vld [vmem:[%s4178 + $0x2c] sm:$0xf]
        %v4191 = vld [vmem:[%s4178 + $0x30] sm:$0xf]
        %v4192 = vld [vmem:[%s4178 + $0x34] sm:$0xf]
        %v4193 = vld [vmem:[%s4178 + $0x38] sm:$0xf]
        %v4194 = vld [vmem:[%s4178 + $0x3c] sm:$0xf]
        %v4195 = vlaneseq
        %v4196 = vshrl.u32 %v4195, 7
        %v4197 = vsub.s32 5, %v4196
        %v4198 = vrot.slane %v1369, %v4197
        %v4215 = vunpack.c.l.b16 %v4179
        %v4216 = vunpack.c.l.b16 %v4180
        %v4217 = vunpack.c.l.b16 %v4181
        %v4218 = vunpack.c.l.b16 %v4182
        %v4219 = vunpack.c.l.b16 %v4183
        %v4220 = vunpack.c.l.b16 %v4184
        %v4221 = vunpack.c.l.b16 %v4185
        %v4222 = vunpack.c.l.b16 %v4186
        %v4223 = vunpack.c.l.b16 %v4187
        %v4224 = vunpack.c.l.b16 %v4188
        %v4225 = vunpack.c.l.b16 %v4189
        %v4226 = vunpack.c.l.b16 %v4190
        %v4227 = vunpack.c.l.b16 %v4191
        %v4228 = vunpack.c.l.b16 %v4192
        %v4229 = vunpack.c.l.b16 %v4193
        %v4230 = vunpack.c.l.b16 %v4194
        %v4231 = vpack.c.b16 %v4216, %v4215
        %v4232 = vpack.c.b16 %v4218, %v4217
        %v4233 = vpack.c.b16 %v4220, %v4219
        %v4234 = vpack.c.b16 %v4222, %v4221
        %v4235 = vpack.c.b16 %v4224, %v4223
        %v4236 = vpack.c.b16 %v4226, %v4225
        %v4237 = vpack.c.b16 %v4228, %v4227
        %v4238 = vpack.c.b16 %v4230, %v4229
        %4247 = vmatprep.subr.bf16.mxu0 0
        %4248 = vmatpush1.bf16.msra.mxu0 %v4231
        %4249 = vmatprep.subr.bf16.mxu0 0
        %4250 = vmatpush1.bf16.msra.mxu0 %v4232
        %4251 = vmatprep.subr.bf16.mxu0 0
        %4252 = vmatpush1.bf16.msra.mxu0 %v4233
        %4253 = vmatprep.subr.bf16.mxu0 0
        %4254 = vmatpush1.bf16.msra.mxu0 %v4234
        %4255 = vmatprep.subr.bf16.mxu0 0
        %4256 = vmatpush1.bf16.msra.mxu0 %v4235
        %4257 = vmatprep.subr.bf16.mxu0 0
        %4258 = vmatpush1.bf16.msra.mxu0 %v4236
        %4259 = vmatprep.subr.bf16.mxu0 0
        %4260 = vmatpush1.bf16.msra.mxu0 %v4237
        %4261 = vmatprep.subr.bf16.mxu0 0
        %4262 = vmatpush1.bf16.msra.mxu0 %v4238
        %4263 = vmatprep.subr.bf16.mxu0 0
        %4264 = vmatpush1.bf16.msra.mxu0 0
        %4265 = vmatprep.subr.bf16.mxu0 0
        %4266 = vmatpush1.bf16.msra.mxu0 0
        %4267 = vmatprep.subr.bf16.mxu0 0
        %4268 = vmatpush1.bf16.msra.mxu0 0
        %4269 = vmatprep.subr.bf16.mxu0 0
        %4270 = vmatpush1.bf16.msra.mxu0 0
        %4271 = vmatprep.subr.bf16.mxu0 0
        %4272 = vmatpush1.bf16.msra.mxu0 0
        %4273 = vmatprep.subr.bf16.mxu0 0
        %4274 = vmatpush1.bf16.msra.mxu0 0
        %4275 = vmatprep.subr.bf16.mxu0 0
        %4276 = vmatpush1.bf16.msra.mxu0 0
        %4277 = vmatprep.subr.bf16.mxu0 0
        %4278 = vmatpush1.bf16.msra.mxu0 0
        %4279 = vmatprep.mubr.bf16.mxu0 0
        %4280 = vmatmul.mubr.bf16.gmra.mrb[0].mxu0 %v4177
        %v4281 = vpop.f32.mrb[0].mxu0
        %v4282 = vadd.f32 %v4198, %v4281
        %v4283 = vpop.f32.mrb[0].mxu0
        %v4284 = vpop.f32.mrb[0].mxu0
        %v4285 = vadd.f32 %v4198, %v4284
        %v4286 = vpop.f32.mrb[0].mxu0
        %4287 = vdwg.mxu0
        %v4288 = vxor.u32 %v4282, 2147483648
        %v4289 = vxor.u32 %v4285, 2147483648
        %v4290 = vmul.f32 %v4288, 1.442695
        %v4291 = vpow.pop %v4290
        %v4292 = vmul.f32 %v4289, 1.442695
        %v4293 = vpow.pop %v4292
        %v4294 = vadd.f32 %v4291, 1.0
        %v4295 = vadd.f32 %v4293, 1.0
        %v4296 = vrcp.pop %v4294
        %v4297 = vmul.f32 1.0, %v4296
        %v4298 = vrcp.pop %v4295
        %v4299 = vmul.f32 1.0, %v4298
        %v4300 = vmul.f32 %v4282, %v4297
        %v4301 = vmul.f32 %v4285, %v4299
        %v4302 = vadd.f32 %v4300, %v1354
        %v4303 = vadd.f32 %v4301, %v1355
        %v4304 = vpack.c.bf16 %v4303, %v4302
        %s4305 = scalar_lea.vmem %s945, 192 [#allocation20]
        %v4306 = vld [vmem:[%s4305] sm:$0xf]
        %v4307 = vld [vmem:[%s4305 + $0x4] sm:$0xf]
        %v4308 = vld [vmem:[%s4305 + $0x8] sm:$0xf]
        %v4309 = vld [vmem:[%s4305 + $0xc] sm:$0xf]
        %v4310 = vld [vmem:[%s4305 + $0x10] sm:$0xf]
        %v4311 = vld [vmem:[%s4305 + $0x14] sm:$0xf]
        %v4312 = vld [vmem:[%s4305 + $0x18] sm:$0xf]
        %v4313 = vld [vmem:[%s4305 + $0x1c] sm:$0xf]
        %v4314 = vld [vmem:[%s4305 + $0x20] sm:$0xf]
        %v4315 = vld [vmem:[%s4305 + $0x24] sm:$0xf]
        %v4316 = vld [vmem:[%s4305 + $0x28] sm:$0xf]
        %v4317 = vld [vmem:[%s4305 + $0x2c] sm:$0xf]
        %v4318 = vld [vmem:[%s4305 + $0x30] sm:$0xf]
        %v4319 = vld [vmem:[%s4305 + $0x34] sm:$0xf]
        %v4320 = vld [vmem:[%s4305 + $0x38] sm:$0xf]
        %v4321 = vld [vmem:[%s4305 + $0x3c] sm:$0xf]
        %v4322 = vlaneseq
        %v4323 = vshrl.u32 %v4322, 7
        %v4324 = vsub.s32 6, %v4323
        %v4325 = vrot.slane %v1369, %v4324
        %v4342 = vunpack.c.l.b16 %v4306
        %v4343 = vunpack.c.l.b16 %v4307
        %v4344 = vunpack.c.l.b16 %v4308
        %v4345 = vunpack.c.l.b16 %v4309
        %v4346 = vunpack.c.l.b16 %v4310
        %v4347 = vunpack.c.l.b16 %v4311
        %v4348 = vunpack.c.l.b16 %v4312
        %v4349 = vunpack.c.l.b16 %v4313
        %v4350 = vunpack.c.l.b16 %v4314
        %v4351 = vunpack.c.l.b16 %v4315
        %v4352 = vunpack.c.l.b16 %v4316
        %v4353 = vunpack.c.l.b16 %v4317
        %v4354 = vunpack.c.l.b16 %v4318
        %v4355 = vunpack.c.l.b16 %v4319
        %v4356 = vunpack.c.l.b16 %v4320
        %v4357 = vunpack.c.l.b16 %v4321
        %v4358 = vpack.c.b16 %v4343, %v4342
        %v4359 = vpack.c.b16 %v4345, %v4344
        %v4360 = vpack.c.b16 %v4347, %v4346
        %v4361 = vpack.c.b16 %v4349, %v4348
        %v4362 = vpack.c.b16 %v4351, %v4350
        %v4363 = vpack.c.b16 %v4353, %v4352
        %v4364 = vpack.c.b16 %v4355, %v4354
        %v4365 = vpack.c.b16 %v4357, %v4356
        %4374 = vmatprep.subr.bf16.mxu0 0
        %4375 = vmatpush1.bf16.msra.mxu0 %v4358
        %4376 = vmatprep.subr.bf16.mxu0 0
        %4377 = vmatpush1.bf16.msra.mxu0 %v4359
        %4378 = vmatprep.subr.bf16.mxu0 0
        %4379 = vmatpush1.bf16.msra.mxu0 %v4360
        %4380 = vmatprep.subr.bf16.mxu0 0
        %4381 = vmatpush1.bf16.msra.mxu0 %v4361
        %4382 = vmatprep.subr.bf16.mxu0 0
        %4383 = vmatpush1.bf16.msra.mxu0 %v4362
        %4384 = vmatprep.subr.bf16.mxu0 0
        %4385 = vmatpush1.bf16.msra.mxu0 %v4363
        %4386 = vmatprep.subr.bf16.mxu0 0
        %4387 = vmatpush1.bf16.msra.mxu0 %v4364
        %4388 = vmatprep.subr.bf16.mxu0 0
        %4389 = vmatpush1.bf16.msra.mxu0 %v4365
        %4390 = vmatprep.subr.bf16.mxu0 0
        %4391 = vmatpush1.bf16.msra.mxu0 0
        %4392 = vmatprep.subr.bf16.mxu0 0
        %4393 = vmatpush1.bf16.msra.mxu0 0
        %4394 = vmatprep.subr.bf16.mxu0 0
        %4395 = vmatpush1.bf16.msra.mxu0 0
        %4396 = vmatprep.subr.bf16.mxu0 0
        %4397 = vmatpush1.bf16.msra.mxu0 0
        %4398 = vmatprep.subr.bf16.mxu0 0
        %4399 = vmatpush1.bf16.msra.mxu0 0
        %4400 = vmatprep.subr.bf16.mxu0 0
        %4401 = vmatpush1.bf16.msra.mxu0 0
        %4402 = vmatprep.subr.bf16.mxu0 0
        %4403 = vmatpush1.bf16.msra.mxu0 0
        %4404 = vmatprep.subr.bf16.mxu0 0
        %4405 = vmatpush1.bf16.msra.mxu0 0
        %4406 = vmatprep.mubr.bf16.mxu0 0
        %4407 = vmatmul.mubr.bf16.gmra.mrb[0].mxu0 %v4304
        %v4408 = vpop.f32.mrb[0].mxu0
        %v4409 = vadd.f32 %v4325, %v4408
        %v4410 = vpop.f32.mrb[0].mxu0
        %v4411 = vpop.f32.mrb[0].mxu0
        %v4412 = vadd.f32 %v4325, %v4411
        %v4413 = vpop.f32.mrb[0].mxu0
        %4414 = vdwg.mxu0
        %v4415 = vxor.u32 %v4409, 2147483648
        %v4416 = vxor.u32 %v4412, 2147483648
        %v4417 = vmul.f32 %v4415, 1.442695
        %v4418 = vpow.pop %v4417
        %v4419 = vmul.f32 %v4416, 1.442695
        %v4420 = vpow.pop %v4419
        %v4421 = vadd.f32 %v4418, 1.0
        %v4422 = vadd.f32 %v4420, 1.0
        %v4423 = vrcp.pop %v4421
        %v4424 = vmul.f32 1.0, %v4423
        %v4425 = vrcp.pop %v4422
        %v4426 = vmul.f32 1.0, %v4425
        %v4427 = vmul.f32 %v4409, %v4424
        %v4428 = vmul.f32 %v4412, %v4426
        %v4429 = vpack.c.bf16 %v4428, %v4427
        %s4430 = scalar_lea.vmem %s945, 256 [#allocation20]
        %v4431 = vld [vmem:[%s4430] sm:$0xf]
        %v4432 = vld [vmem:[%s4430 + $0x4] sm:$0xf]
        %v4433 = vld [vmem:[%s4430 + $0x8] sm:$0xf]
        %v4434 = vld [vmem:[%s4430 + $0xc] sm:$0xf]
        %v4435 = vld [vmem:[%s4430 + $0x10] sm:$0xf]
        %v4436 = vld [vmem:[%s4430 + $0x14] sm:$0xf]
        %v4437 = vld [vmem:[%s4430 + $0x18] sm:$0xf]
        %v4438 = vld [vmem:[%s4430 + $0x1c] sm:$0xf]
        %v4439 = vld [vmem:[%s4430 + $0x20] sm:$0xf]
        %v4440 = vld [vmem:[%s4430 + $0x24] sm:$0xf]
        %v4441 = vld [vmem:[%s4430 + $0x28] sm:$0xf]
        %v4442 = vld [vmem:[%s4430 + $0x2c] sm:$0xf]
        %v4443 = vld [vmem:[%s4430 + $0x30] sm:$0xf]
        %v4444 = vld [vmem:[%s4430 + $0x34] sm:$0xf]
        %v4445 = vld [vmem:[%s4430 + $0x38] sm:$0xf]
        %v4446 = vld [vmem:[%s4430 + $0x3c] sm:$0xf]
        %v4447 = vlaneseq
        %v4448 = vshrl.u32 %v4447, 7
        %v4449 = vsub.s32 7, %v4448
        %v4450 = vrot.slane %v1369, %v4449
        %v4467 = vunpack.c.l.b16 %v4431
        %v4468 = vunpack.c.l.b16 %v4432
        %v4469 = vunpack.c.l.b16 %v4433
        %v4470 = vunpack.c.l.b16 %v4434
        %v4471 = vunpack.c.l.b16 %v4435
        %v4472 = vunpack.c.l.b16 %v4436
        %v4473 = vunpack.c.l.b16 %v4437
        %v4474 = vunpack.c.l.b16 %v4438
        %v4475 = vunpack.c.l.b16 %v4439
        %v4476 = vunpack.c.l.b16 %v4440
        %v4477 = vunpack.c.l.b16 %v4441
        %v4478 = vunpack.c.l.b16 %v4442
        %v4479 = vunpack.c.l.b16 %v4443
        %v4480 = vunpack.c.l.b16 %v4444
        %v4481 = vunpack.c.l.b16 %v4445
        %v4482 = vunpack.c.l.b16 %v4446
        %v4483 = vpack.c.b16 %v4468, %v4467
        %v4484 = vpack.c.b16 %v4470, %v4469
        %v4485 = vpack.c.b16 %v4472, %v4471
        %v4486 = vpack.c.b16 %v4474, %v4473
        %v4487 = vpack.c.b16 %v4476, %v4475
        %v4488 = vpack.c.b16 %v4478, %v4477
        %v4489 = vpack.c.b16 %v4480, %v4479
        %v4490 = vpack.c.b16 %v4482, %v4481
        %4499 = vmatprep.subr.bf16.mxu0 0
        %4500 = vmatpush1.bf16.msra.mxu0 %v4483
        %4501 = vmatprep.subr.bf16.mxu0 0
        %4502 = vmatpush1.bf16.msra.mxu0 %v4484
        %4503 = vmatprep.subr.bf16.mxu0 0
        %4504 = vmatpush1.bf16.msra.mxu0 %v4485
        %4505 = vmatprep.subr.bf16.mxu0 0
        %4506 = vmatpush1.bf16.msra.mxu0 %v4486
        %4507 = vmatprep.subr.bf16.mxu0 0
        %4508 = vmatpush1.bf16.msra.mxu0 %v4487
        %4509 = vmatprep.subr.bf16.mxu0 0
        %4510 = vmatpush1.bf16.msra.mxu0 %v4488
        %4511 = vmatprep.subr.bf16.mxu0 0
        %4512 = vmatpush1.bf16.msra.mxu0 %v4489
        %4513 = vmatprep.subr.bf16.mxu0 0
        %4514 = vmatpush1.bf16.msra.mxu0 %v4490
        %4515 = vmatprep.subr.bf16.mxu0 0
        %4516 = vmatpush1.bf16.msra.mxu0 0
        %4517 = vmatprep.subr.bf16.mxu0 0
        %4518 = vmatpush1.bf16.msra.mxu0 0
        %4519 = vmatprep.subr.bf16.mxu0 0
        %4520 = vmatpush1.bf16.msra.mxu0 0
        %4521 = vmatprep.subr.bf16.mxu0 0
        %4522 = vmatpush1.bf16.msra.mxu0 0
        %4523 = vmatprep.subr.bf16.mxu0 0
        %4524 = vmatpush1.bf16.msra.mxu0 0
        %4525 = vmatprep.subr.bf16.mxu0 0
        %4526 = vmatpush1.bf16.msra.mxu0 0
        %4527 = vmatprep.subr.bf16.mxu0 0
        %4528 = vmatpush1.bf16.msra.mxu0 0
        %4529 = vmatprep.subr.bf16.mxu0 0
        %4530 = vmatpush1.bf16.msra.mxu0 0
        %4531 = vmatprep.mubr.bf16.mxu0 0
        %4532 = vmatmul.mubr.bf16.gmra.mrb[0].mxu0 %v4429
        %v4533 = vpop.f32.mrb[0].mxu0
        %v4534 = vadd.f32 %v4450, %v4533
        %v4535 = vpop.f32.mrb[0].mxu0
        %v4536 = vpop.f32.mrb[0].mxu0
        %v4537 = vadd.f32 %v4450, %v4536
        %v4538 = vpop.f32.mrb[0].mxu0
        %4539 = vdwg.mxu0
        %v4540 = vxor.u32 %v4534, 2147483648
        %v4541 = vxor.u32 %v4537, 2147483648
        %v4542 = vmul.f32 %v4540, 1.442695
        %v4543 = vpow.pop %v4542
        %v4544 = vmul.f32 %v4541, 1.442695
        %v4545 = vpow.pop %v4544
        %v4546 = vadd.f32 %v4543, 1.0
        %v4547 = vadd.f32 %v4545, 1.0
        %v4548 = vrcp.pop %v4546
        %v4549 = vmul.f32 1.0, %v4548
        %v4550 = vrcp.pop %v4547
        %v4551 = vmul.f32 1.0, %v4550
        %v4552 = vmul.f32 %v4534, %v4549
        %v4553 = vmul.f32 %v4537, %v4551
        %v4554 = vadd.f32 %v4302, %v4552
        %v4555 = vadd.f32 %v4303, %v4553
        %v4556 = vpack.c.bf16 %v4555, %v4554
        %s4557 = scalar_lea.vmem %s945, 320 [#allocation20]
        %v4558 = vld [vmem:[%s4557] sm:$0xf]
        %v4559 = vld [vmem:[%s4557 + $0x4] sm:$0xf]
        %v4560 = vld [vmem:[%s4557 + $0x8] sm:$0xf]
        %v4561 = vld [vmem:[%s4557 + $0xc] sm:$0xf]
        %v4562 = vld [vmem:[%s4557 + $0x10] sm:$0xf]
        %v4563 = vld [vmem:[%s4557 + $0x14] sm:$0xf]
        %v4564 = vld [vmem:[%s4557 + $0x18] sm:$0xf]
        %v4565 = vld [vmem:[%s4557 + $0x1c] sm:$0xf]
        %v4566 = vld [vmem:[%s4557 + $0x20] sm:$0xf]
        %v4567 = vld [vmem:[%s4557 + $0x24] sm:$0xf]
        %v4568 = vld [vmem:[%s4557 + $0x28] sm:$0xf]
        %v4569 = vld [vmem:[%s4557 + $0x2c] sm:$0xf]
        %v4570 = vld [vmem:[%s4557 + $0x30] sm:$0xf]
        %v4571 = vld [vmem:[%s4557 + $0x34] sm:$0xf]
        %v4572 = vld [vmem:[%s4557 + $0x38] sm:$0xf]
        %v4573 = vld [vmem:[%s4557 + $0x3c] sm:$0xf]
        %v4574 = vlaneseq
        %v4575 = vshrl.u32 %v4574, 7
        %v4576 = vsub.s32 0, %v4575
        %v4577 = vrot.slane %v1370, %v4576
        %v4594 = vunpack.c.l.b16 %v4558
        %v4595 = vunpack.c.l.b16 %v4559
        %v4596 = vunpack.c.l.b16 %v4560
        %v4597 = vunpack.c.l.b16 %v4561
        %v4598 = vunpack.c.l.b16 %v4562
        %v4599 = vunpack.c.l.b16 %v4563
        %v4600 = vunpack.c.l.b16 %v4564
        %v4601 = vunpack.c.l.b16 %v4565
        %v4602 = vunpack.c.l.b16 %v4566
        %v4603 = vunpack.c.l.b16 %v4567
        %v4604 = vunpack.c.l.b16 %v4568
        %v4605 = vunpack.c.l.b16 %v4569
        %v4606 = vunpack.c.l.b16 %v4570
        %v4607 = vunpack.c.l.b16 %v4571
        %v4608 = vunpack.c.l.b16 %v4572
        %v4609 = vunpack.c.l.b16 %v4573
        %v4610 = vpack.c.b16 %v4595, %v4594
        %v4611 = vpack.c.b16 %v4597, %v4596
        %v4612 = vpack.c.b16 %v4599, %v4598
        %v4613 = vpack.c.b16 %v4601, %v4600
        %v4614 = vpack.c.b16 %v4603, %v4602
        %v4615 = vpack.c.b16 %v4605, %v4604
        %v4616 = vpack.c.b16 %v4607, %v4606
        %v4617 = vpack.c.b16 %v4609, %v4608
        %4626 = vmatprep.subr.bf16.mxu0 0
        %4627 = vmatpush1.bf16.msra.mxu0 %v4610
        %4628 = vmatprep.subr.bf16.mxu0 0
        %4629 = vmatpush1.bf16.msra.mxu0 %v4611
        %4630 = vmatprep.subr.bf16.mxu0 0
        %4631 = vmatpush1.bf16.msra.mxu0 %v4612
        %4632 = vmatprep.subr.bf16.mxu0 0
        %4633 = vmatpush1.bf16.msra.mxu0 %v4613
        %4634 = vmatprep.subr.bf16.mxu0 0
        %4635 = vmatpush1.bf16.msra.mxu0 %v4614
        %4636 = vmatprep.subr.bf16.mxu0 0
        %4637 = vmatpush1.bf16.msra.mxu0 %v4615
        %4638 = vmatprep.subr.bf16.mxu0 0
        %4639 = vmatpush1.bf16.msra.mxu0 %v4616
        %4640 = vmatprep.subr.bf16.mxu0 0
        %4641 = vmatpush1.bf16.msra.mxu0 %v4617
        %4642 = vmatprep.subr.bf16.mxu0 0
        %4643 = vmatpush1.bf16.msra.mxu0 0
        %4644 = vmatprep.subr.bf16.mxu0 0
        %4645 = vmatpush1.bf16.msra.mxu0 0
        %4646 = vmatprep.subr.bf16.mxu0 0
        %4647 = vmatpush1.bf16.msra.mxu0 0
        %4648 = vmatprep.subr.bf16.mxu0 0
        %4649 = vmatpush1.bf16.msra.mxu0 0
        %4650 = vmatprep.subr.bf16.mxu0 0
        %4651 = vmatpush1.bf16.msra.mxu0 0
        %4652 = vmatprep.subr.bf16.mxu0 0
        %4653 = vmatpush1.bf16.msra.mxu0 0
        %4654 = vmatprep.subr.bf16.mxu0 0
        %4655 = vmatpush1.bf16.msra.mxu0 0
        %4656 = vmatprep.subr.bf16.mxu0 0
        %4657 = vmatpush1.bf16.msra.mxu0 0
        %4658 = vmatprep.mubr.bf16.mxu0 0
        %4659 = vmatmul.mubr.bf16.gmra.mrb[0].mxu0 %v4556
        %v4660 = vpop.f32.mrb[0].mxu0
        %v4661 = vadd.f32 %v4577, %v4660
        %v4662 = vpop.f32.mrb[0].mxu0
        %v4663 = vpop.f32.mrb[0].mxu0
        %v4664 = vadd.f32 %v4577, %v4663
        %v4665 = vpop.f32.mrb[0].mxu0
        %4666 = vdwg.mxu0
        %v4667 = vxor.u32 %v4661, 2147483648
        %v4668 = vxor.u32 %v4664, 2147483648
        %v4669 = vmul.f32 %v4667, 1.442695
        %v4670 = vpow.pop %v4669
        %v4671 = vmul.f32 %v4668, 1.442695
        %v4672 = vpow.pop %v4671
        %v4673 = vadd.f32 %v4670, 1.0
        %v4674 = vadd.f32 %v4672, 1.0
        %v4675 = vrcp.pop %v4673
        %v4676 = vmul.f32 1.0, %v4675
        %v4677 = vrcp.pop %v4674
        %v4678 = vmul.f32 1.0, %v4677
        %v4679 = vmul.f32 %v4661, %v4676
        %v4680 = vmul.f32 %v4664, %v4678
        %v4681 = vpack.c.bf16 %v4680, %v4679
        %s4682 = scalar_lea.vmem %s945, 384 [#allocation20]
        %v4683 = vld [vmem:[%s4682] sm:$0xf]
        %v4684 = vld [vmem:[%s4682 + $0x4] sm:$0xf]
        %v4685 = vld [vmem:[%s4682 + $0x8] sm:$0xf]
        %v4686 = vld [vmem:[%s4682 + $0xc] sm:$0xf]
        %v4687 = vld [vmem:[%s4682 + $0x10] sm:$0xf]
        %v4688 = vld [vmem:[%s4682 + $0x14] sm:$0xf]
        %v4689 = vld [vmem:[%s4682 + $0x18] sm:$0xf]
        %v4690 = vld [vmem:[%s4682 + $0x1c] sm:$0xf]
        %v4691 = vld [vmem:[%s4682 + $0x20] sm:$0xf]
        %v4692 = vld [vmem:[%s4682 + $0x24] sm:$0xf]
        %v4693 = vld [vmem:[%s4682 + $0x28] sm:$0xf]
        %v4694 = vld [vmem:[%s4682 + $0x2c] sm:$0xf]
        %v4695 = vld [vmem:[%s4682 + $0x30] sm:$0xf]
        %v4696 = vld [vmem:[%s4682 + $0x34] sm:$0xf]
        %v4697 = vld [vmem:[%s4682 + $0x38] sm:$0xf]
        %v4698 = vld [vmem:[%s4682 + $0x3c] sm:$0xf]
        %v4699 = vlaneseq
        %v4700 = vshrl.u32 %v4699, 7
        %v4701 = vsub.s32 1, %v4700
        %v4702 = vrot.slane %v1370, %v4701
        %v4719 = vunpack.c.l.b16 %v4683
        %v4720 = vunpack.c.l.b16 %v4684
        %v4721 = vunpack.c.l.b16 %v4685
        %v4722 = vunpack.c.l.b16 %v4686
        %v4723 = vunpack.c.l.b16 %v4687
        %v4724 = vunpack.c.l.b16 %v4688
        %v4725 = vunpack.c.l.b16 %v4689
        %v4726 = vunpack.c.l.b16 %v4690
        %v4727 = vunpack.c.l.b16 %v4691
        %v4728 = vunpack.c.l.b16 %v4692
        %v4729 = vunpack.c.l.b16 %v4693
        %v4730 = vunpack.c.l.b16 %v4694
        %v4731 = vunpack.c.l.b16 %v4695
        %v4732 = vunpack.c.l.b16 %v4696
        %v4733 = vunpack.c.l.b16 %v4697
        %v4734 = vunpack.c.l.b16 %v4698
        %v4735 = vpack.c.b16 %v4720, %v4719
        %v4736 = vpack.c.b16 %v4722, %v4721
        %v4737 = vpack.c.b16 %v4724, %v4723
        %v4738 = vpack.c.b16 %v4726, %v4725
        %v4739 = vpack.c.b16 %v4728, %v4727
        %v4740 = vpack.c.b16 %v4730, %v4729
        %v4741 = vpack.c.b16 %v4732, %v4731
        %v4742 = vpack.c.b16 %v4734, %v4733
        %4751 = vmatprep.subr.bf16.mxu0 0
        %4752 = vmatpush1.bf16.msra.mxu0 %v4735
        %4753 = vmatprep.subr.bf16.mxu0 0
        %4754 = vmatpush1.bf16.msra.mxu0 %v4736
        %4755 = vmatprep.subr.bf16.mxu0 0
        %4756 = vmatpush1.bf16.msra.mxu0 %v4737
        %4757 = vmatprep.subr.bf16.mxu0 0
        %4758 = vmatpush1.bf16.msra.mxu0 %v4738
        %4759 = vmatprep.subr.bf16.mxu0 0
        %4760 = vmatpush1.bf16.msra.mxu0 %v4739
        %4761 = vmatprep.subr.bf16.mxu0 0
        %4762 = vmatpush1.bf16.msra.mxu0 %v4740
        %4763 = vmatprep.subr.bf16.mxu0 0
        %4764 = vmatpush1.bf16.msra.mxu0 %v4741
        %4765 = vmatprep.subr.bf16.mxu0 0
        %4766 = vmatpush1.bf16.msra.mxu0 %v4742
        %4767 = vmatprep.subr.bf16.mxu0 0
        %4768 = vmatpush1.bf16.msra.mxu0 0
        %4769 = vmatprep.subr.bf16.mxu0 0
        %4770 = vmatpush1.bf16.msra.mxu0 0
        %4771 = vmatprep.subr.bf16.mxu0 0
        %4772 = vmatpush1.bf16.msra.mxu0 0
        %4773 = vmatprep.subr.bf16.mxu0 0
        %4774 = vmatpush1.bf16.msra.mxu0 0
        %4775 = vmatprep.subr.bf16.mxu0 0
        %4776 = vmatpush1.bf16.msra.mxu0 0
        %4777 = vmatprep.subr.bf16.mxu0 0
        %4778 = vmatpush1.bf16.msra.mxu0 0
        %4779 = vmatprep.subr.bf16.mxu0 0
        %4780 = vmatpush1.bf16.msra.mxu0 0
        %4781 = vmatprep.subr.bf16.mxu0 0
        %4782 = vmatpush1.bf16.msra.mxu0 0
        %4783 = vmatprep.mubr.bf16.mxu0 0
        %4784 = vmatmul.mubr.bf16.gmra.mrb[0].mxu0 %v4681
        %v4785 = vpop.f32.mrb[0].mxu0
        %v4786 = vadd.f32 %v4702, %v4785
        %v4787 = vpop.f32.mrb[0].mxu0
        %v4788 = vpop.f32.mrb[0].mxu0
        %v4789 = vadd.f32 %v4702, %v4788
        %v4790 = vpop.f32.mrb[0].mxu0
        %4791 = vdwg.mxu0
        %v4792 = vxor.u32 %v4786, 2147483648
        %v4793 = vxor.u32 %v4789, 2147483648
        %v4794 = vmul.f32 %v4792, 1.442695
        %v4795 = vpow.pop %v4794
        %v4796 = vmul.f32 %v4793, 1.442695
        %v4797 = vpow.pop %v4796
        %v4798 = vadd.f32 %v4795, 1.0
        %v4799 = vadd.f32 %v4797, 1.0
        %v4800 = vrcp.pop %v4798
        %v4801 = vmul.f32 1.0, %v4800
        %v4802 = vrcp.pop %v4799
        %v4803 = vmul.f32 1.0, %v4802
        %v4804 = vmul.f32 %v4786, %v4801
        %v4805 = vmul.f32 %v4789, %v4803
        %v4806 = vadd.f32 %v4554, %v4804
        %v4807 = vadd.f32 %v4555, %v4805
        %4808 = vst [vmem:[#allocation2] sm:$0xff] %v4806
        %4809 = vst [vmem:[#allocation2 + $0x8] sm:$0xff] %v4807
        %p4810 = scmp.eq.s32.totalorder %s43, 1
        // Predicated region
        $region177: #{tpu_custom_call.1} parent=119 // pred_check
          %p4811 = pneg %p4810
        $region178: #{tpu_custom_call.1} parent=119 // pred_check_branch
          %4813 = sbr.rel (%p4811) target = $region180
        $region179: #{tpu_custom_call.1} parent=119 // pred_region
          %v4814 = vld [vmem:[%s8] sm:$0xf]
          %v4815 = vld [vmem:[%s8 + $0x4] sm:$0xf]
          %v4816 = vpack.c.bf16 %v4807, %v4806
          %v4819 = vunpack.c.l.b16 %v4814
          %v4820 = vunpack.c.l.b16 %v4815
          %v4821 = vpack.c.b16 %v4820, %v4819
          %4823 = vxpose.xlu0.c.b16.start [1/8] %v4821, 128
          %4824 = vxpose.xlu0.c.b16.cont [2/8] 0, 128
          %4825 = vxpose.xlu0.c.b16.cont [3/8] 0, 128
          %4826 = vxpose.xlu0.c.b16.cont [4/8] 0, 128
          %4827 = vxpose.xlu0.c.b16.cont [5/8] 0, 128
          %4828 = vxpose.xlu0.c.b16.cont [6/8] 0, 128
          %4829 = vxpose.xlu0.c.b16.cont [7/8] 0, 128
          %4830 = vxpose.xlu0.c.b16.end [8/8] 0, 128
          %v4831 = vpop.trf.xlu0
          %v4832 = vpop.trf.xlu0
          %v4833 = vpop.trf.xlu0
          %v4834 = vpop.trf.xlu0
          %v4835 = vpop.trf.xlu0
          %v4836 = vpop.trf.xlu0
          %v4837 = vpop.trf.xlu0
          %v4838 = vpop.trf.xlu0
          %v4840 = vsel %vm1940, %v4831, 0
          %4842 = vmatprep.subr.bf16.mxu0 0
          %4843 = vmatpush1.bf16.msra.mxu0 %v4816
          %4844 = vmatprep.subr.bf16.mxu0 0
          %4845 = vmatpush1.bf16.msra.mxu0 0
          %4846 = vmatprep.subr.bf16.mxu0 0
          %4847 = vmatpush1.bf16.msra.mxu0 0
          %4848 = vmatprep.subr.bf16.mxu0 0
          %4849 = vmatpush1.bf16.msra.mxu0 0
          %4850 = vmatprep.subr.bf16.mxu0 0
          %4851 = vmatpush1.bf16.msra.mxu0 0
          %4852 = vmatprep.subr.bf16.mxu0 0
          %4853 = vmatpush1.bf16.msra.mxu0 0
          %4854 = vmatprep.subr.bf16.mxu0 0
          %4855 = vmatpush1.bf16.msra.mxu0 0
          %4856 = vmatprep.subr.bf16.mxu0 0
          %4857 = vmatpush1.bf16.msra.mxu0 0
          %4858 = vmatprep.subr.bf16.mxu0 0
          %4859 = vmatpush1.bf16.msra.mxu0 0
          %4860 = vmatprep.subr.bf16.mxu0 0
          %4861 = vmatpush1.bf16.msra.mxu0 0
          %4862 = vmatprep.subr.bf16.mxu0 0
          %4863 = vmatpush1.bf16.msra.mxu0 0
          %4864 = vmatprep.subr.bf16.mxu0 0
          %4865 = vmatpush1.bf16.msra.mxu0 0
          %4866 = vmatprep.subr.bf16.mxu0 0
          %4867 = vmatpush1.bf16.msra.mxu0 0
          %4868 = vmatprep.subr.bf16.mxu0 0
          %4869 = vmatpush1.bf16.msra.mxu0 0
          %4870 = vmatprep.subr.bf16.mxu0 0
          %4871 = vmatpush1.bf16.msra.mxu0 0
          %4872 = vmatprep.subr.bf16.mxu0 0
          %4873 = vmatpush1.bf16.msra.mxu0 0
          %4874 = vmatprep.mubr.bf16.mxu0 0
          %4875 = vmatmul.mubr.bf16.gmra.mrb[0].mxu0 %v4840
          %v4876 = vpop.f32.mrb[0].mxu0
          %v4877 = vadd.f32 0.0, %v4876
          %v4878 = vpop.f32.mrb[0].mxu0
          %v4879 = vpop.f32.mrb[0].mxu0
          %v4880 = vpop.f32.mrb[0].mxu0
          %4881 = vdwg.mxu0
          %v4882 = vpack.c.bf16 %v4877, %v4877
          %v4883 = vld [vmem:[#allocation22] sm:$0xf]
          %v4884 = vld [vmem:[#allocation22 + $0x4] sm:$0xf]
          %v4885 = vld [vmem:[#allocation22 + $0x8] sm:$0xf]
          %v4886 = vld [vmem:[#allocation22 + $0xc] sm:$0xf]
          %v4887 = vld [vmem:[#allocation22 + $0x10] sm:$0xf]
          %v4888 = vld [vmem:[#allocation22 + $0x14] sm:$0xf]
          %v4889 = vld [vmem:[#allocation22 + $0x18] sm:$0xf]
          %v4890 = vld [vmem:[#allocation22 + $0x1c] sm:$0xf]
          %v4891 = vld [vmem:[#allocation22 + $0x20] sm:$0xf]
          %v4892 = vld [vmem:[#allocation22 + $0x24] sm:$0xf]
          %v4893 = vld [vmem:[#allocation22 + $0x28] sm:$0xf]
          %v4894 = vld [vmem:[#allocation22 + $0x2c] sm:$0xf]
          %v4895 = vld [vmem:[#allocation22 + $0x30] sm:$0xf]
          %v4896 = vld [vmem:[#allocation22 + $0x34] sm:$0xf]
          %v4897 = vld [vmem:[#allocation22 + $0x38] sm:$0xf]
          %v4898 = vld [vmem:[#allocation22 + $0x3c] sm:$0xf]
          %v4899 = vld [vmem:[%s22] sm:$0x1]
          %v4901 = vlaneseq
          %v4902 = vshrl.u32 %v4901, 7
          %v4903 = vsub.s32 0, %v4902
          %v4904 = vrot.slane %v4899, %v4903
          %v4922 = vunpack.c.l.b16 %v4883
          %v4923 = vunpack.c.l.b16 %v4884
          %v4924 = vunpack.c.l.b16 %v4885
          %v4925 = vunpack.c.l.b16 %v4886
          %v4926 = vunpack.c.l.b16 %v4887
          %v4927 = vunpack.c.l.b16 %v4888
          %v4928 = vunpack.c.l.b16 %v4889
          %v4929 = vunpack.c.l.b16 %v4890
          %v4930 = vunpack.c.l.b16 %v4891
          %v4931 = vunpack.c.l.b16 %v4892
          %v4932 = vunpack.c.l.b16 %v4893
          %v4933 = vunpack.c.l.b16 %v4894
          %v4934 = vunpack.c.l.b16 %v4895
          %v4935 = vunpack.c.l.b16 %v4896
          %v4936 = vunpack.c.l.b16 %v4897
          %v4937 = vunpack.c.l.b16 %v4898
          %v4938 = vpack.c.b16 %v4923, %v4922
          %v4939 = vpack.c.b16 %v4925, %v4924
          %v4940 = vpack.c.b16 %v4927, %v4926
          %v4941 = vpack.c.b16 %v4929, %v4928
          %v4942 = vpack.c.b16 %v4931, %v4930
          %v4943 = vpack.c.b16 %v4933, %v4932
          %v4944 = vpack.c.b16 %v4935, %v4934
          %v4945 = vpack.c.b16 %v4937, %v4936
          %4954 = vmatprep.subr.bf16.mxu0 0
          %4955 = vmatpush1.bf16.msra.mxu0 %v4938
          %4956 = vmatprep.subr.bf16.mxu0 0
          %4957 = vmatpush1.bf16.msra.mxu0 %v4939
          %4958 = vmatprep.subr.bf16.mxu0 0
          %4959 = vmatpush1.bf16.msra.mxu0 %v4940
          %4960 = vmatprep.subr.bf16.mxu0 0
          %4961 = vmatpush1.bf16.msra.mxu0 %v4941
          %4962 = vmatprep.subr.bf16.mxu0 0
          %4963 = vmatpush1.bf16.msra.mxu0 %v4942
          %4964 = vmatprep.subr.bf16.mxu0 0
          %4965 = vmatpush1.bf16.msra.mxu0 %v4943
          %4966 = vmatprep.subr.bf16.mxu0 0
          %4967 = vmatpush1.bf16.msra.mxu0 %v4944
          %4968 = vmatprep.subr.bf16.mxu0 0
          %4969 = vmatpush1.bf16.msra.mxu0 %v4945
          %4970 = vmatprep.subr.bf16.mxu0 0
          %4971 = vmatpush1.bf16.msra.mxu0 0
          %4972 = vmatprep.subr.bf16.mxu0 0
          %4973 = vmatpush1.bf16.msra.mxu0 0
          %4974 = vmatprep.subr.bf16.mxu0 0
          %4975 = vmatpush1.bf16.msra.mxu0 0
          %4976 = vmatprep.subr.bf16.mxu0 0
          %4977 = vmatpush1.bf16.msra.mxu0 0
          %4978 = vmatprep.subr.bf16.mxu0 0
          %4979 = vmatpush1.bf16.msra.mxu0 0
          %4980 = vmatprep.subr.bf16.mxu0 0
          %4981 = vmatpush1.bf16.msra.mxu0 0
          %4982 = vmatprep.subr.bf16.mxu0 0
          %4983 = vmatpush1.bf16.msra.mxu0 0
          %4984 = vmatprep.subr.bf16.mxu0 0
          %4985 = vmatpush1.bf16.msra.mxu0 0
          %4986 = vmatprep.mubr.bf16.mxu0 0
          %4987 = vmatmul.mubr.bf16.gmra.mrb[0].mxu0 %v4882
          %v4988 = vpop.f32.mrb[0].mxu0
          %v4989 = vadd.f32 %v4904, %v4988
          %v4990 = vpop.f32.mrb[0].mxu0
          %v4991 = vpop.f32.mrb[0].mxu0
          %v4992 = vpop.f32.mrb[0].mxu0
          %4993 = vdwg.mxu0
          %v4994 = vxor.u32 %v4989, 2147483648
          %v4995 = vmul.f32 %v4994, 1.442695
          %v4996 = vpow.pop %v4995
          %v4997 = vadd.f32 %v4996, 1.0
          %v4998 = vrcp.pop %v4997
          %v4999 = vmul.f32 1.0, %v4998
          %v5000 = vmul.f32 %v4989, %v4999
          %v5001 = vpack.c.bf16 %v5000, %v5000
          %v5002 = vld [vmem:[%s23] sm:$0xf]
          %v5003 = vld [vmem:[%s23 + $0x4] sm:$0xf]
          %v5004 = vld [vmem:[%s23 + $0x8] sm:$0xf]
          %v5005 = vld [vmem:[%s23 + $0xc] sm:$0xf]
          %v5006 = vld [vmem:[%s23 + $0x10] sm:$0xf]
          %v5007 = vld [vmem:[%s23 + $0x14] sm:$0xf]
          %v5008 = vld [vmem:[%s23 + $0x18] sm:$0xf]
          %v5009 = vld [vmem:[%s23 + $0x1c] sm:$0xf]
          %v5010 = vld [vmem:[%s23 + $0x20] sm:$0xf]
          %v5011 = vld [vmem:[%s23 + $0x24] sm:$0xf]
          %v5012 = vld [vmem:[%s23 + $0x28] sm:$0xf]
          %v5013 = vld [vmem:[%s23 + $0x2c] sm:$0xf]
          %v5014 = vld [vmem:[%s23 + $0x30] sm:$0xf]
          %v5015 = vld [vmem:[%s23 + $0x34] sm:$0xf]
          %v5016 = vld [vmem:[%s23 + $0x38] sm:$0xf]
          %v5017 = vld [vmem:[%s23 + $0x3c] sm:$0xf]
          %v5018 = vld [vmem:[#allocation4] sm:$0x1]
          %v5020 = vlaneseq
          %v5021 = vshrl.u32 %v5020, 7
          %v5022 = vsub.s32 0, %v5021
          %v5023 = vrot.slane %v5018, %v5022
          %v5041 = vunpack.c.l.b16 %v5002
          %v5042 = vunpack.c.l.b16 %v5003
          %v5043 = vunpack.c.l.b16 %v5004
          %v5044 = vunpack.c.l.b16 %v5005
          %v5045 = vunpack.c.l.b16 %v5006
          %v5046 = vunpack.c.l.b16 %v5007
          %v5047 = vunpack.c.l.b16 %v5008
          %v5048 = vunpack.c.l.b16 %v5009
          %v5049 = vunpack.c.l.b16 %v5010
          %v5050 = vunpack.c.l.b16 %v5011
          %v5051 = vunpack.c.l.b16 %v5012
          %v5052 = vunpack.c.l.b16 %v5013
          %v5053 = vunpack.c.l.b16 %v5014
          %v5054 = vunpack.c.l.b16 %v5015
          %v5055 = vunpack.c.l.b16 %v5016
          %v5056 = vunpack.c.l.b16 %v5017
          %v5057 = vpack.c.b16 %v5042, %v5041
          %v5058 = vpack.c.b16 %v5044, %v5043
          %v5059 = vpack.c.b16 %v5046, %v5045
          %v5060 = vpack.c.b16 %v5048, %v5047
          %v5061 = vpack.c.b16 %v5050, %v5049
          %v5062 = vpack.c.b16 %v5052, %v5051
          %v5063 = vpack.c.b16 %v5054, %v5053
          %v5064 = vpack.c.b16 %v5056, %v5055
          %5073 = vmatprep.subr.bf16.mxu0 0
          %5074 = vmatpush1.bf16.msra.mxu0 %v5057
          %5075 = vmatprep.subr.bf16.mxu0 0
          %5076 = vmatpush1.bf16.msra.mxu0 %v5058
          %5077 = vmatprep.subr.bf16.mxu0 0
          %5078 = vmatpush1.bf16.msra.mxu0 %v5059
          %5079 = vmatprep.subr.bf16.mxu0 0
          %5080 = vmatpush1.bf16.msra.mxu0 %v5060
          %5081 = vmatprep.subr.bf16.mxu0 0
          %5082 = vmatpush1.bf16.msra.mxu0 %v5061
          %5083 = vmatprep.subr.bf16.mxu0 0
          %5084 = vmatpush1.bf16.msra.mxu0 %v5062
          %5085 = vmatprep.subr.bf16.mxu0 0
          %5086 = vmatpush1.bf16.msra.mxu0 %v5063
          %5087 = vmatprep.subr.bf16.mxu0 0
          %5088 = vmatpush1.bf16.msra.mxu0 %v5064
          %5089 = vmatprep.subr.bf16.mxu0 0
          %5090 = vmatpush1.bf16.msra.mxu0 0
          %5091 = vmatprep.subr.bf16.mxu0 0
          %5092 = vmatpush1.bf16.msra.mxu0 0
          %5093 = vmatprep.subr.bf16.mxu0 0
          %5094 = vmatpush1.bf16.msra.mxu0 0
          %5095 = vmatprep.subr.bf16.mxu0 0
          %5096 = vmatpush1.bf16.msra.mxu0 0
          %5097 = vmatprep.subr.bf16.mxu0 0
          %5098 = vmatpush1.bf16.msra.mxu0 0
          %5099 = vmatprep.subr.bf16.mxu0 0
          %5100 = vmatpush1.bf16.msra.mxu0 0
          %5101 = vmatprep.subr.bf16.mxu0 0
          %5102 = vmatpush1.bf16.msra.mxu0 0
          %5103 = vmatprep.subr.bf16.mxu0 0
          %5104 = vmatpush1.bf16.msra.mxu0 0
          %5105 = vmatprep.mubr.bf16.mxu0 0
          %5106 = vmatmul.mubr.bf16.gmra.mrb[0].mxu0 %v5001
          %v5107 = vpop.f32.mrb[0].mxu0
          %v5108 = vadd.f32 %v5023, %v5107
          %v5109 = vpop.f32.mrb[0].mxu0
          %v5110 = vpop.f32.mrb[0].mxu0
          %v5111 = vpop.f32.mrb[0].mxu0
          %5112 = vdwg.mxu0
          %vm5113 = vcmask 1024
          %5114 = vst.msk [vmem:[%s25] sm:$0x3] %vm5113, %v5108
        $region180: #{tpu_custom_call.1} parent=119 // pred_fallthru
          _
        // Predicated region
        $region181: #{tpu_custom_call.1} parent=119 // pred_check
          %p5115 = pneg %p616
        $region182: #{tpu_custom_call.1} parent=119 // pred_check_branch
          %5117 = sbr.rel (%p5115) target = $region184
        $region183: #{tpu_custom_call.1} parent=119 // pred_region
          _
        $region184: #{tpu_custom_call.1} parent=119 // pred_fallthru
          _
        // Predicated region
        $region185: #{tpu_custom_call.1} parent=119 // pred_check
          %p5118 = pneg %p616
        $region186: #{tpu_custom_call.1} parent=119 // pred_check_branch
          %5120 = sbr.rel (%p5118) target = $region188
        $region187: #{tpu_custom_call.1} parent=119 // pred_region
          _
        $region188: #{tpu_custom_call.1} parent=119 // pred_fallthru
          _
      $region120: #{tpu_custom_call.1} parent=5 // pred_fallthru
        _
      %p5121 = scmp.le.s32.totalorder 2, %s38
      // Predicated region
      $region189: #{tpu_custom_call.1} parent=5 // pred_check
        %p5122 = pneg %p5121
      $region190: #{tpu_custom_call.1} parent=5 // pred_check_branch
        %5124 = sbr.rel (%p5122) target = $region192
      $region191: #{tpu_custom_call.1} parent=5 // pred_region
        %s5125 = ssub.s32 %s38, 2
      $region192: #{tpu_custom_call.1} parent=5 // pred_fallthru
        _
    $region6: #{tpu_custom_call.1} parent=1 // loop_footer
      %s42 = sadd.s32 1, %s38
    $region7: #{tpu_custom_call.1} parent=1 // loop_footer_branch
      %37 = sbr.rel target = $region3
    $region8: #{tpu_custom_call.1} parent=1 // loop_exit
      _
    %5126 = vsyncpa [#allocation6], 1
    %s5127 = scalar_lea.sflag [#allocation6], 1
    %5128 = vsyncpa %s5127, 1
    %5129 = vsyncpa [#allocation8], 1
    %5130 = vsyncpa [#allocation11], 1
    %5131 = vsyncpa [#allocation14], 1
    %5132 = vsyncpa [#allocation17], 1

</llo_original>
